<compile_context>
chip_gen: v7x
topology: tpu7x:2x2x1
jax: 0.10.0
libtpu: 0.0.40
codegen_flags: <defaults>
</compile_context>

<pallas_src>
import functools

import jax
import jax.numpy as jnp
from jax import lax
from jax.experimental import pallas as pl
from jax.experimental.pallas import tpu as pltpu

NEG_SLOPE = -0.153


def _model_kernel(x_ref, w_ref, o_ref, *, h, w, neg_slope):
    # x_ref: (N, Cin, H*W) f32 VMEM  -- free reshape of the NCHW input (no wrapper transpose)
    # w_ref: (Cin, Cout)   f32 SMEM  -- ConvTranspose2d weight[:, :, 0, 0], read as scalars
    # o_ref: (N, Cout)     f32 VMEM  -- adaptive_avg_pool2d((1,1)) result per (n, co)
    n, cin, hw = x_ref.shape
    cout = w_ref.shape[1]

    # Interior mask for the conv_t "padding=1" crop, pre-scaled by the average-pool factor.
    # Built from iota compares (no vector int div needed; h is a small static Python int).
    scale = jnp.float32(1.0 / float((h - 2) * (w - 2)))
    p = lax.broadcasted_iota(jnp.int32, (1, hw), 1)
    row = jnp.zeros((1, hw), jnp.int32)
    for k in range(1, h):
        row = row + (p >= k * w).astype(jnp.int32)
    col = p - row * w
    interior = (row >= 1) & (row <= h - 2) & (col >= 1) & (col <= w - 2)
    m = jnp.where(interior, scale, jnp.float32(0.0))            # (1, HW)

    for co in range(cout):
        # channel mix z[n,p] = sum_ci w[ci,co] * x[n,ci,p]; planes re-loaded from VMEM inside
        # the loop (vld slots are plentiful) so only one plane + one accumulator stay live.
        z = x_ref[:, 0, :] * w_ref[0, co]
        for ci in range(1, cin):
            z = z + x_ref[:, ci, :] * w_ref[ci, co]
        # where(z>0, z, z*NEG_SLOPE); the module's trailing ReLU is an identity because the
        # negative slope (-0.153) makes the "negative" branch non-negative.
        y = jnp.where(z > 0, z, z * neg_slope)
        # masked spatial mean == mean over the cropped interior; one column store per co.
        o_ref[:, pl.ds(co, 1)] = jnp.sum(y * m, axis=-1, keepdims=True)


@jax.jit
def model_forward(x, w_full):
    # x: (N, Cin, H, W) float32; w_full: (Cin, Cout, 1, 1) float32 (ConvTranspose2d weight)
    n, c, h, w = x.shape
    assert h > 2 and w > 2, "conv_transpose(k=1, s=1, p=1) needs H > 2 and W > 2"
    cout = w_full.shape[1]

    xr = x.reshape(n, c, h * w)        # contiguous collapse: metadata-only, no HBM copy
    wk = w_full.reshape(c, cout)       # (Cin, Cout) 1x1 tap

    out = pl.pallas_call(
        functools.partial(_model_kernel, h=h, w=w, neg_slope=NEG_SLOPE),
        out_shape=jax.ShapeDtypeStruct((n, cout), jnp.float32),
        in_specs=[
            pl.BlockSpec(memory_space=pltpu.MemorySpace.VMEM),   # x (N, C, HW)
            pl.BlockSpec(memory_space=pltpu.MemorySpace.SMEM),   # 3x3 weight -> scalars
        ],
        out_specs=pl.BlockSpec(memory_space=pltpu.MemorySpace.VMEM),
    )(xr, wk)
    return out.reshape(n, cout, 1, 1)


def _ref_forward(x, w_full):
    w2 = w_full[:, :, 0, 0]
    xc = x[:, :, 1:-1, 1:-1]
    z = jnp.einsum("ncij,cd->ndij", xc, w2)
    y = jnp.where(z > 0, z, z * NEG_SLOPE)
    y = jnp.maximum(y, 0.0)
    return jnp.mean(y, axis=(2, 3), keepdims=True)


if __name__ == "__main__":
    key = jax.random.PRNGKey(0)
    kx, kw = jax.random.split(key)

    # spec shape (87, 3, 4, 36): already small (~150 KB), exercises the N=87 regime
    N, C, H, W = 87, 3, 4, 36
    x = jax.random.normal(kx, (N, C, H, W), dtype=jnp.float32)
    # ConvTranspose2d(3, 3, 1) weight has shape (Cin, Cout, 1, 1)
    w_full = jax.random.normal(kw, (C, C, 1, 1), dtype=jnp.float32) * 0.5

    out = jax.block_until_ready(model_forward(x, w_full))

    expected = _ref_forward(x, w_full)
    assert out.shape == (N, C, 1, 1), out.shape
    assert jnp.allclose(out, expected, rtol=1e-5, atol=1e-5), "mismatch vs reference"

    print("KERNEL_OK")
</pallas_src>

<mosaic_0001>
module attributes {stable_mosaic.version = 11 : i64} {
  func.func @_model_kernel(%arg0: memref<87x3x144xf32, #tpu.memory_space<vmem>>, %arg1: memref<3x3xf32, #tpu.memory_space<smem>>, %arg2: memref<87x3xf32, #tpu.memory_space<vmem>>) attributes {dimension_semantics = [], scalar_prefetch = 0 : i64, scratch_operands = 0 : i64, tpu.core_type = #tpu.core_type<tc>} {
    %0 = tpu.iota {dimensions = array<i32: 1>} : vector<1x144xi32>
    %c0_i32 = arith.constant 0 : i32
    %1 = vector.broadcast %c0_i32 : i32 to vector<1x144xi32>
    %c36_i32 = arith.constant 36 : i32
    %2 = vector.broadcast %c36_i32 : i32 to vector<1x144xi32>
    %3 = arith.cmpi sge, %0, %2 : vector<1x144xi32>
    %4 = arith.extui %3 : vector<1x144xi1> to vector<1x144xi32>
    %5 = arith.addi %1, %4 : vector<1x144xi32>
    %c72_i32 = arith.constant 72 : i32
    %6 = vector.broadcast %c72_i32 : i32 to vector<1x144xi32>
    %7 = arith.cmpi sge, %0, %6 : vector<1x144xi32>
    %8 = arith.extui %7 : vector<1x144xi1> to vector<1x144xi32>
    %9 = arith.addi %5, %8 : vector<1x144xi32>
    %c108_i32 = arith.constant 108 : i32
    %10 = vector.broadcast %c108_i32 : i32 to vector<1x144xi32>
    %11 = arith.cmpi sge, %0, %10 : vector<1x144xi32>
    %12 = arith.extui %11 : vector<1x144xi1> to vector<1x144xi32>
    %13 = arith.addi %9, %12 : vector<1x144xi32>
    %c36_i32_0 = arith.constant 36 : i32
    %14 = vector.broadcast %c36_i32_0 : i32 to vector<1x144xi32>
    %15 = arith.muli %13, %14 : vector<1x144xi32>
    %16 = arith.subi %0, %15 : vector<1x144xi32>
    %c1_i32 = arith.constant 1 : i32
    %17 = vector.broadcast %c1_i32 : i32 to vector<1x144xi32>
    %18 = arith.cmpi sge, %13, %17 : vector<1x144xi32>
    %c2_i32 = arith.constant 2 : i32
    %19 = vector.broadcast %c2_i32 : i32 to vector<1x144xi32>
    %20 = arith.cmpi sle, %13, %19 : vector<1x144xi32>
    %21 = arith.andi %18, %20 : vector<1x144xi1>
    %c1_i32_1 = arith.constant 1 : i32
    %22 = vector.broadcast %c1_i32_1 : i32 to vector<1x144xi32>
    %23 = arith.cmpi sge, %16, %22 : vector<1x144xi32>
    %24 = arith.andi %21, %23 : vector<1x144xi1>
    %c34_i32 = arith.constant 34 : i32
    %25 = vector.broadcast %c34_i32 : i32 to vector<1x144xi32>
    %26 = arith.cmpi sle, %16, %25 : vector<1x144xi32>
    %27 = arith.andi %24, %26 : vector<1x144xi1>
    %cst = arith.constant 0.0147058824 : f32
    %cst_2 = arith.constant 0.000000e+00 : f32
    %28 = vector.broadcast %cst : f32 to vector<1x144xf32>
    %29 = vector.broadcast %cst_2 : f32 to vector<1x144xf32>
    %30 = arith.select %27, %28, %29 : vector<1x144xi1>, vector<1x144xf32>
    %c0 = arith.constant 0 : index
    %c0_3 = arith.constant 0 : index
    %c0_4 = arith.constant 0 : index
    %31 = vector.load %arg0[%c0, %c0_3, %c0_4] : memref<87x3x144xf32, #tpu.memory_space<vmem>>, vector<87x1x144xf32>
    %32 = vector.shape_cast %31 : vector<87x1x144xf32> to vector<87x144xf32>
    %c0_5 = arith.constant 0 : index
    %c0_6 = arith.constant 0 : index
    %33 = memref.load %arg1[%c0_5, %c0_6] : memref<3x3xf32, #tpu.memory_space<smem>>
    %34 = vector.broadcast %33 : f32 to vector<87x144xf32>
    %35 = arith.mulf %32, %34 : vector<87x144xf32>
    %c0_7 = arith.constant 0 : index
    %c1 = arith.constant 1 : index
    %c0_8 = arith.constant 0 : index
    %36 = vector.load %arg0[%c0_7, %c1, %c0_8] : memref<87x3x144xf32, #tpu.memory_space<vmem>>, vector<87x1x144xf32>
    %37 = vector.shape_cast %36 : vector<87x1x144xf32> to vector<87x144xf32>
    %c1_9 = arith.constant 1 : index
    %c0_10 = arith.constant 0 : index
    %38 = memref.load %arg1[%c1_9, %c0_10] : memref<3x3xf32, #tpu.memory_space<smem>>
    %39 = vector.broadcast %38 : f32 to vector<87x144xf32>
    %40 = arith.mulf %37, %39 : vector<87x144xf32>
    %41 = arith.addf %35, %40 : vector<87x144xf32>
    %c0_11 = arith.constant 0 : index
    %c2 = arith.constant 2 : index
    %c0_12 = arith.constant 0 : index
    %42 = vector.load %arg0[%c0_11, %c2, %c0_12] : memref<87x3x144xf32, #tpu.memory_space<vmem>>, vector<87x1x144xf32>
    %43 = vector.shape_cast %42 : vector<87x1x144xf32> to vector<87x144xf32>
    %c2_13 = arith.constant 2 : index
    %c0_14 = arith.constant 0 : index
    %44 = memref.load %arg1[%c2_13, %c0_14] : memref<3x3xf32, #tpu.memory_space<smem>>
    %45 = vector.broadcast %44 : f32 to vector<87x144xf32>
    %46 = arith.mulf %43, %45 : vector<87x144xf32>
    %47 = arith.addf %41, %46 : vector<87x144xf32>
    %cst_15 = arith.constant 0.000000e+00 : f32
    %48 = vector.broadcast %cst_15 : f32 to vector<87x144xf32>
    %49 = arith.cmpf ogt, %47, %48 : vector<87x144xf32>
    %cst_16 = arith.constant -1.530000e-01 : f32
    %50 = vector.broadcast %cst_16 : f32 to vector<87x144xf32>
    %51 = arith.mulf %47, %50 : vector<87x144xf32>
    %52 = arith.select %49, %47, %51 : vector<87x144xi1>, vector<87x144xf32>
    %53 = vector.broadcast %30 : vector<1x144xf32> to vector<87x144xf32>
    %54 = arith.mulf %52, %53 : vector<87x144xf32>
    %cst_17 = arith.constant dense<0.000000e+00> : vector<87xf32>
    %55 = vector.multi_reduction <add>, %54, %cst_17 [1] : vector<87x144xf32> to vector<87xf32>
    %56 = vector.shape_cast %55 : vector<87xf32> to vector<87x1xf32>
    %c0_18 = arith.constant 0 : index
    %c0_19 = arith.constant 0 : index
    %57 = vector.load %arg2[%c0_18, %c0_19] : memref<87x3xf32, #tpu.memory_space<vmem>>, vector<87x1xf32>
    tpu.vector_store %arg2[%c0_18, %c0_19], %56 {strides = array<i32>} : memref<87x3xf32, #tpu.memory_space<vmem>>, vector<87x1xf32>,
    %c0_20 = arith.constant 0 : index
    %c0_21 = arith.constant 0 : index
    %c0_22 = arith.constant 0 : index
    %58 = vector.load %arg0[%c0_20, %c0_21, %c0_22] : memref<87x3x144xf32, #tpu.memory_space<vmem>>, vector<87x1x144xf32>
    %59 = vector.shape_cast %58 : vector<87x1x144xf32> to vector<87x144xf32>
    %c0_23 = arith.constant 0 : index
    %c1_24 = arith.constant 1 : index
    %60 = memref.load %arg1[%c0_23, %c1_24] : memref<3x3xf32, #tpu.memory_space<smem>>
    %61 = vector.broadcast %60 : f32 to vector<87x144xf32>
    %62 = arith.mulf %59, %61 : vector<87x144xf32>
    %c0_25 = arith.constant 0 : index
    %c1_26 = arith.constant 1 : index
    %c0_27 = arith.constant 0 : index
    %63 = vector.load %arg0[%c0_25, %c1_26, %c0_27] : memref<87x3x144xf32, #tpu.memory_space<vmem>>, vector<87x1x144xf32>
    %64 = vector.shape_cast %63 : vector<87x1x144xf32> to vector<87x144xf32>
    %c1_28 = arith.constant 1 : index
    %c1_29 = arith.constant 1 : index
    %65 = memref.load %arg1[%c1_28, %c1_29] : memref<3x3xf32, #tpu.memory_space<smem>>
    %66 = vector.broadcast %65 : f32 to vector<87x144xf32>
    %67 = arith.mulf %64, %66 : vector<87x144xf32>
    %68 = arith.addf %62, %67 : vector<87x144xf32>
    %c0_30 = arith.constant 0 : index
    %c2_31 = arith.constant 2 : index
    %c0_32 = arith.constant 0 : index
    %69 = vector.load %arg0[%c0_30, %c2_31, %c0_32] : memref<87x3x144xf32, #tpu.memory_space<vmem>>, vector<87x1x144xf32>
    %70 = vector.shape_cast %69 : vector<87x1x144xf32> to vector<87x144xf32>
    %c2_33 = arith.constant 2 : index
    %c1_34 = arith.constant 1 : index
    %71 = memref.load %arg1[%c2_33, %c1_34] : memref<3x3xf32, #tpu.memory_space<smem>>
    %72 = vector.broadcast %71 : f32 to vector<87x144xf32>
    %73 = arith.mulf %70, %72 : vector<87x144xf32>
    %74 = arith.addf %68, %73 : vector<87x144xf32>
    %cst_35 = arith.constant 0.000000e+00 : f32
    %75 = vector.broadcast %cst_35 : f32 to vector<87x144xf32>
    %76 = arith.cmpf ogt, %74, %75 : vector<87x144xf32>
    %cst_36 = arith.constant -1.530000e-01 : f32
    %77 = vector.broadcast %cst_36 : f32 to vector<87x144xf32>
    %78 = arith.mulf %74, %77 : vector<87x144xf32>
    %79 = arith.select %76, %74, %78 : vector<87x144xi1>, vector<87x144xf32>
    %80 = vector.broadcast %30 : vector<1x144xf32> to vector<87x144xf32>
    %81 = arith.mulf %79, %80 : vector<87x144xf32>
    %cst_37 = arith.constant dense<0.000000e+00> : vector<87xf32>
    %82 = vector.multi_reduction <add>, %81, %cst_37 [1] : vector<87x144xf32> to vector<87xf32>
    %83 = vector.shape_cast %82 : vector<87xf32> to vector<87x1xf32>
    %c0_38 = arith.constant 0 : index
    %c1_39 = arith.constant 1 : index
    %84 = vector.load %arg2[%c0_38, %c1_39] : memref<87x3xf32, #tpu.memory_space<vmem>>, vector<87x1xf32>
    tpu.vector_store %arg2[%c0_38, %c1_39], %83 {strides = array<i32>} : memref<87x3xf32, #tpu.memory_space<vmem>>, vector<87x1xf32>,
    %c0_40 = arith.constant 0 : index
    %c0_41 = arith.constant 0 : index
    %c0_42 = arith.constant 0 : index
    %85 = vector.load %arg0[%c0_40, %c0_41, %c0_42] : memref<87x3x144xf32, #tpu.memory_space<vmem>>, vector<87x1x144xf32>
    %86 = vector.shape_cast %85 : vector<87x1x144xf32> to vector<87x144xf32>
    %c0_43 = arith.constant 0 : index
    %c2_44 = arith.constant 2 : index
    %87 = memref.load %arg1[%c0_43, %c2_44] : memref<3x3xf32, #tpu.memory_space<smem>>
    %88 = vector.broadcast %87 : f32 to vector<87x144xf32>
    %89 = arith.mulf %86, %88 : vector<87x144xf32>
    %c0_45 = arith.constant 0 : index
    %c1_46 = arith.constant 1 : index
    %c0_47 = arith.constant 0 : index
    %90 = vector.load %arg0[%c0_45, %c1_46, %c0_47] : memref<87x3x144xf32, #tpu.memory_space<vmem>>, vector<87x1x144xf32>
    %91 = vector.shape_cast %90 : vector<87x1x144xf32> to vector<87x144xf32>
    %c1_48 = arith.constant 1 : index
    %c2_49 = arith.constant 2 : index
    %92 = memref.load %arg1[%c1_48, %c2_49] : memref<3x3xf32, #tpu.memory_space<smem>>
    %93 = vector.broadcast %92 : f32 to vector<87x144xf32>
    %94 = arith.mulf %91, %93 : vector<87x144xf32>
    %95 = arith.addf %89, %94 : vector<87x144xf32>
    %c0_50 = arith.constant 0 : index
    %c2_51 = arith.constant 2 : index
    %c0_52 = arith.constant 0 : index
    %96 = vector.load %arg0[%c0_50, %c2_51, %c0_52] : memref<87x3x144xf32, #tpu.memory_space<vmem>>, vector<87x1x144xf32>
    %97 = vector.shape_cast %96 : vector<87x1x144xf32> to vector<87x144xf32>
    %c2_53 = arith.constant 2 : index
    %c2_54 = arith.constant 2 : index
    %98 = memref.load %arg1[%c2_53, %c2_54] : memref<3x3xf32, #tpu.memory_space<smem>>
    %99 = vector.broadcast %98 : f32 to vector<87x144xf32>
    %100 = arith.mulf %97, %99 : vector<87x144xf32>
    %101 = arith.addf %95, %100 : vector<87x144xf32>
    %cst_55 = arith.constant 0.000000e+00 : f32
    %102 = vector.broadcast %cst_55 : f32 to vector<87x144xf32>
    %103 = arith.cmpf ogt, %101, %102 : vector<87x144xf32>
    %cst_56 = arith.constant -1.530000e-01 : f32
    %104 = vector.broadcast %cst_56 : f32 to vector<87x144xf32>
    %105 = arith.mulf %101, %104 : vector<87x144xf32>
    %106 = arith.select %103, %101, %105 : vector<87x144xi1>, vector<87x144xf32>
    %107 = vector.broadcast %30 : vector<1x144xf32> to vector<87x144xf32>
    %108 = arith.mulf %106, %107 : vector<87x144xf32>
    %cst_57 = arith.constant dense<0.000000e+00> : vector<87xf32>
    %109 = vector.multi_reduction <add>, %108, %cst_57 [1] : vector<87x144xf32> to vector<87xf32>
    %110 = vector.shape_cast %109 : vector<87xf32> to vector<87x1xf32>
    %c0_58 = arith.constant 0 : index
    %c2_59 = arith.constant 2 : index
    %111 = vector.load %arg2[%c0_58, %c2_59] : memref<87x3xf32, #tpu.memory_space<vmem>>, vector<87x1xf32>
    tpu.vector_store %arg2[%c0_58, %c2_59], %110 {strides = array<i32>} : memref<87x3xf32, #tpu.memory_space<vmem>>, vector<87x1xf32>,
    return
  }
}

</mosaic_0001>

<llo_original>
// kernel: model_forward.1
$region0: #{model_forward.1}
  #allocation0 [shape = 'u32[]', space=smem, size = 0x4, offset = 0x4, fixed_abs, tag = 'smem constant byte address 0x4 - core index']
  #allocation1 [shape = 'u32[144,128]{1,0:T(1,128)}', space=vmem, size = 0x12000, scoped, tag = 'internal scratch']
  %s0 = inlined_call_operand.vmem [shape: f32[87,3,144], index: 0, kind: input, shape index: {}]
  %s1 = inlined_call_operand.vmem [shape: f32[3,3], index: 1, kind: input, shape index: {}]
  %s2 = inlined_call_operand.vmem [shape: f32[87,3], index: 2, kind: output, shape index: {}]
  %s3 = sld [smem:[#allocation0]]
  $region22: #{model_forward.1} parent=0
    _
  %s5 = ssub.s32 1, %s3
  %s6 = scalar_select 0, %s5, %s3
  $region1: #{model_forward.1} parent=0
    #allocation2 [shape = 'u8[2048]{0}', space=smem, size = 0x800, scoped, tag = 'input window, operand 1, single buffered']
    #allocation3 [shape = 's32[1]{0}', space=sflag, size = 0x4, scoped, tag = 'scoped memory for model_forward.1']
    %7 = vsyncpa [#allocation3], 0
    // Predicated region
    $region2: #{model_forward.1} parent=1 // pred_check
      _
    $region3: #{model_forward.1} parent=1 // pred_check_branch
      %9 = sbr.rel (0) target = $region5
    $region4: #{model_forward.1} parent=1 // pred_region
      _
    $region5: #{model_forward.1} parent=1 // pred_fallthru
      _
    // Predicated region
    $region6: #{model_forward.1} parent=1 // pred_check
      _
    $region7: #{model_forward.1} parent=1 // pred_check_branch
      %11 = sbr.rel (0) target = $region9
    $region8: #{model_forward.1} parent=1 // pred_region
      %s13 = ssub.s32 64, 64
      %14 = vsyncadd [#allocation3], %s13
      %s16 = sshll.u32 %s1, 4
      %s17 = int_to_ptr.vmem [resolvable:$true] %s16
      %19 = dma.vmem_to_smem %s17, 64, [#allocation2], [#allocation3]
    $region9: #{model_forward.1} parent=1 // pred_fallthru
      _
    // Predicated region
    $region10: #{model_forward.1} parent=1 // pred_check
      _
    $region11: #{model_forward.1} parent=1 // pred_check_branch
      %21 = sbr.rel (0) target = $region13
    $region12: #{model_forward.1} parent=1 // pred_region
      %22 = dma.done [#allocation3], 64
    $region13: #{model_forward.1} parent=1 // pred_fallthru
      _
    %23 = sfence
    %v24 = vlaneseq
    %v25 = vand.u32 %v24, 127
    %v26 = vadd.s32 %v25, 128
    %vm27 = vcmp.ge.s32.totalorder %v25, 36
    %vm28 = vcmp.ge.s32.totalorder %v26, 36
    %v29 = vsel %vm27, 1, 0
    %v30 = vsel %vm28, 1, 0
    %vm31 = vcmp.ge.s32.totalorder %v25, 72
    %vm32 = vcmp.ge.s32.totalorder %v26, 72
    %v33 = vsel %vm31, 1, 0
    %v34 = vsel %vm32, 1, 0
    %v35 = vadd.s32 %v29, %v33
    %v36 = vadd.s32 %v30, %v34
    %vm37 = vcmp.ge.s32.totalorder %v25, 108
    %vm38 = vcmp.ge.s32.totalorder %v26, 108
    %v39 = vsel %vm37, 1, 0
    %v40 = vsel %vm38, 1, 0
    %v41 = vadd.s32 %v35, %v39
    %v42 = vadd.s32 %v36, %v40
    %v43 = vmul.u32 %v41, 36
    %v44 = vmul.u32 %v42, 36
    %v45 = vsub.s32 %v25, %v43
    %v46 = vsub.s32 %v26, %v44
    %vm47 = vcmp.ge.s32.totalorder %v41, 1
    %vm48 = vcmp.ge.s32.totalorder %v42, 1
    %vm49 = vcmp.le.s32.totalorder %v41, 2
    %vm50 = vcmp.le.s32.totalorder %v42, 2
    %vm51 = vmand %vm47, %vm49
    %vm52 = vmand %vm48, %vm50
    %vm53 = vcmp.ge.s32.totalorder %v45, 1
    %vm54 = vcmp.ge.s32.totalorder %v46, 1
    %vm55 = vmand %vm51, %vm53
    %vm56 = vmand %vm52, %vm54
    %vm57 = vcmp.le.s32.totalorder %v45, 34
    %vm58 = vcmp.le.s32.totalorder %v46, 34
    %vm59 = vmand %vm55, %vm57
    %vm60 = vmand %vm56, %vm58
    %v61 = vsel %vm59, 0.014705882, 0.0
    %v62 = vsel %vm60, 0.014705882, 0.0
    %v63 = vld [vmem:[%s0] ss:$4 sm:$0x3]
    %s64 = scalar_lea.vmem %s0, 8
    %v65 = vld [vmem:[%s64] ss:$4 sm:$0x3]
    %s66 = scalar_lea.vmem %s0, 16
    %v67 = vld [vmem:[%s66] ss:$4 sm:$0x3]
    %s68 = scalar_lea.vmem %s0, 24
    %v69 = vld [vmem:[%s68] ss:$4 sm:$0x3]
    %s70 = scalar_lea.vmem %s0, 32
    %v71 = vld [vmem:[%s70] ss:$4 sm:$0x3]
    %s72 = scalar_lea.vmem %s0, 40
    %v73 = vld [vmem:[%s72] ss:$4 sm:$0x3]
    %s74 = scalar_lea.vmem %s0, 48
    %v75 = vld [vmem:[%s74] ss:$4 sm:$0x3]
    %s76 = scalar_lea.vmem %s0, 56
    %v77 = vld [vmem:[%s76] ss:$4 sm:$0x3]
    %s78 = scalar_lea.vmem %s0, 64
    %v79 = vld [vmem:[%s78] ss:$4 sm:$0x3]
    %s80 = scalar_lea.vmem %s0, 72
    %v81 = vld [vmem:[%s80] ss:$4 sm:$0x3]
    %s82 = scalar_lea.vmem %s0, 80
    %v83 = vld [vmem:[%s82] ss:$4 sm:$0x3]
    %s84 = scalar_lea.vmem %s0, 88
    %v85 = vld [vmem:[%s84] ss:$4 sm:$0x3]
    %s86 = scalar_lea.vmem %s0, 96
    %v87 = vld [vmem:[%s86] ss:$4 sm:$0x3]
    %s88 = scalar_lea.vmem %s0, 104
    %v89 = vld [vmem:[%s88] ss:$4 sm:$0x3]
    %s90 = scalar_lea.vmem %s0, 112
    %v91 = vld [vmem:[%s90] ss:$4 sm:$0x3]
    %s92 = scalar_lea.vmem %s0, 120
    %v93 = vld [vmem:[%s92] ss:$4 sm:$0x3]
    %s94 = scalar_lea.vmem %s0, 128
    %v95 = vld [vmem:[%s94] ss:$4 sm:$0x3]
    %s96 = scalar_lea.vmem %s0, 136
    %v97 = vld [vmem:[%s96] ss:$4 sm:$0x3]
    %s98 = scalar_lea.vmem %s0, 144
    %v99 = vld [vmem:[%s98] ss:$4 sm:$0x3]
    %s100 = scalar_lea.vmem %s0, 152
    %v101 = vld [vmem:[%s100] ss:$4 sm:$0x3]
    %s102 = scalar_lea.vmem %s0, 160
    %v103 = vld [vmem:[%s102] ss:$4 sm:$0x3]
    %s104 = scalar_lea.vmem %s0, 168
    %v105 = vld [vmem:[%s104] ss:$4 sm:$0x3]
    %s106 = scalar_lea.vmem %s0, 176
    %v107 = vld [vmem:[%s106] ss:$4 sm:$0x3]
    %s108 = scalar_lea.vmem %s0, 184
    %v109 = vld [vmem:[%s108] ss:$4 sm:$0x3]
    %s110 = scalar_lea.vmem %s0, 192
    %v111 = vld [vmem:[%s110] ss:$4 sm:$0x3]
    %s112 = scalar_lea.vmem %s0, 200
    %v113 = vld [vmem:[%s112] ss:$4 sm:$0x3]
    %s114 = scalar_lea.vmem %s0, 208
    %v115 = vld [vmem:[%s114] ss:$4 sm:$0x3]
    %s116 = scalar_lea.vmem %s0, 216
    %v117 = vld [vmem:[%s116] ss:$4 sm:$0x3]
    %s118 = scalar_lea.vmem %s0, 224
    %v119 = vld [vmem:[%s118] ss:$4 sm:$0x3]
    %s120 = scalar_lea.vmem %s0, 232
    %v121 = vld [vmem:[%s120] ss:$4 sm:$0x3]
    %s122 = scalar_lea.vmem %s0, 240
    %v123 = vld [vmem:[%s122] ss:$4 sm:$0x3]
    %s124 = scalar_lea.vmem %s0, 248
    %v125 = vld [vmem:[%s124] ss:$4 sm:$0x3]
    %s126 = scalar_lea.vmem %s0, 256
    %v127 = vld [vmem:[%s126] ss:$4 sm:$0x3]
    %s128 = scalar_lea.vmem %s0, 264
    %v129 = vld [vmem:[%s128] ss:$4 sm:$0x3]
    %s130 = scalar_lea.vmem %s0, 272
    %v131 = vld [vmem:[%s130] ss:$4 sm:$0x3]
    %s132 = scalar_lea.vmem %s0, 280
    %v133 = vld [vmem:[%s132] ss:$4 sm:$0x3]
    %s134 = scalar_lea.vmem %s0, 288
    %v135 = vld [vmem:[%s134] ss:$4 sm:$0x3]
    %s136 = scalar_lea.vmem %s0, 296
    %v137 = vld [vmem:[%s136] ss:$4 sm:$0x3]
    %s138 = scalar_lea.vmem %s0, 304
    %v139 = vld [vmem:[%s138] ss:$4 sm:$0x3]
    %s140 = scalar_lea.vmem %s0, 312
    %v141 = vld [vmem:[%s140] ss:$4 sm:$0x3]
    %s142 = scalar_lea.vmem %s0, 320
    %v143 = vld [vmem:[%s142] ss:$4 sm:$0x3]
    %s144 = scalar_lea.vmem %s0, 328
    %v145 = vld [vmem:[%s144] ss:$4 sm:$0x3]
    %s146 = scalar_lea.vmem %s0, 336
    %v147 = vld [vmem:[%s146] ss:$4 sm:$0x3]
    %s148 = scalar_lea.vmem %s0, 344
    %v149 = vld [vmem:[%s148] ss:$4 sm:$0x3]
    %s150 = scalar_lea.vmem %s0, 352
    %v151 = vld [vmem:[%s150] ss:$4 sm:$0x3]
    %s152 = scalar_lea.vmem %s0, 360
    %v153 = vld [vmem:[%s152] ss:$4 sm:$0x3]
    %s154 = scalar_lea.vmem %s0, 368
    %v155 = vld [vmem:[%s154] ss:$4 sm:$0x3]
    %s156 = scalar_lea.vmem %s0, 376
    %v157 = vld [vmem:[%s156] ss:$4 sm:$0x3]
    %s158 = scalar_lea.vmem %s0, 384
    %v159 = vld [vmem:[%s158] ss:$4 sm:$0x3]
    %s160 = scalar_lea.vmem %s0, 392
    %v161 = vld [vmem:[%s160] ss:$4 sm:$0x3]
    %s162 = scalar_lea.vmem %s0, 400
    %v163 = vld [vmem:[%s162] ss:$4 sm:$0x3]
    %s164 = scalar_lea.vmem %s0, 408
    %v165 = vld [vmem:[%s164] ss:$4 sm:$0x3]
    %s166 = scalar_lea.vmem %s0, 416
    %v167 = vld [vmem:[%s166] ss:$4 sm:$0x3]
    %s168 = scalar_lea.vmem %s0, 424
    %v169 = vld [vmem:[%s168] ss:$4 sm:$0x3]
    %s170 = scalar_lea.vmem %s0, 432
    %v171 = vld [vmem:[%s170] ss:$4 sm:$0x3]
    %s172 = scalar_lea.vmem %s0, 440
    %v173 = vld [vmem:[%s172] ss:$4 sm:$0x3]
    %s174 = scalar_lea.vmem %s0, 448
    %v175 = vld [vmem:[%s174] ss:$4 sm:$0x3]
    %s176 = scalar_lea.vmem %s0, 456
    %v177 = vld [vmem:[%s176] ss:$4 sm:$0x3]
    %s178 = scalar_lea.vmem %s0, 464
    %v179 = vld [vmem:[%s178] ss:$4 sm:$0x3]
    %s180 = scalar_lea.vmem %s0, 472
    %v181 = vld [vmem:[%s180] ss:$4 sm:$0x3]
    %s182 = scalar_lea.vmem %s0, 480
    %v183 = vld [vmem:[%s182] ss:$4 sm:$0x3]
    %s184 = scalar_lea.vmem %s0, 488
    %v185 = vld [vmem:[%s184] ss:$4 sm:$0x3]
    %s186 = scalar_lea.vmem %s0, 496
    %v187 = vld [vmem:[%s186] ss:$4 sm:$0x3]
    %s188 = scalar_lea.vmem %s0, 504
    %v189 = vld [vmem:[%s188] ss:$4 sm:$0x3]
    %s190 = scalar_lea.vmem %s0, 512
    %v191 = vld [vmem:[%s190] ss:$4 sm:$0x3]
    %s192 = scalar_lea.vmem %s0, 520
    %v193 = vld [vmem:[%s192] ss:$4 sm:$0x3]
    %s194 = scalar_lea.vmem %s0, 528
    %v195 = vld [vmem:[%s194] ss:$4 sm:$0x3]
    %s196 = scalar_lea.vmem %s0, 536
    %v197 = vld [vmem:[%s196] ss:$4 sm:$0x3]
    %s198 = scalar_lea.vmem %s0, 544
    %v199 = vld [vmem:[%s198] ss:$4 sm:$0x3]
    %s200 = scalar_lea.vmem %s0, 552
    %v201 = vld [vmem:[%s200] ss:$4 sm:$0x3]
    %s202 = scalar_lea.vmem %s0, 560
    %v203 = vld [vmem:[%s202] ss:$4 sm:$0x3]
    %s204 = scalar_lea.vmem %s0, 568
    %v205 = vld [vmem:[%s204] ss:$4 sm:$0x3]
    %s206 = scalar_lea.vmem %s0, 576
    %v207 = vld [vmem:[%s206] ss:$4 sm:$0x3]
    %s208 = scalar_lea.vmem %s0, 584
    %v209 = vld [vmem:[%s208] ss:$4 sm:$0x3]
    %s210 = scalar_lea.vmem %s0, 592
    %v211 = vld [vmem:[%s210] ss:$4 sm:$0x3]
    %s212 = scalar_lea.vmem %s0, 600
    %v213 = vld [vmem:[%s212] ss:$4 sm:$0x3]
    %s214 = scalar_lea.vmem %s0, 608
    %v215 = vld [vmem:[%s214] ss:$4 sm:$0x3]
    %s216 = scalar_lea.vmem %s0, 616
    %v217 = vld [vmem:[%s216] ss:$4 sm:$0x3]
    %s218 = scalar_lea.vmem %s0, 624
    %v219 = vld [vmem:[%s218] ss:$4 sm:$0x3]
    %s220 = scalar_lea.vmem %s0, 632
    %v221 = vld [vmem:[%s220] ss:$4 sm:$0x3]
    %s222 = scalar_lea.vmem %s0, 640
    %v223 = vld [vmem:[%s222] ss:$4 sm:$0x3]
    %s224 = scalar_lea.vmem %s0, 648
    %v225 = vld [vmem:[%s224] ss:$4 sm:$0x3]
    %s226 = scalar_lea.vmem %s0, 656
    %v227 = vld [vmem:[%s226] ss:$4 sm:$0x3]
    %s228 = scalar_lea.vmem %s0, 664
    %v229 = vld [vmem:[%s228] ss:$4 sm:$0x3]
    %s230 = scalar_lea.vmem %s0, 672
    %v231 = vld [vmem:[%s230] ss:$4 sm:$0x3]
    %s232 = scalar_lea.vmem %s0, 680
    %v233 = vld [vmem:[%s232] ss:$4 sm:$0x3]
    %s234 = scalar_lea.vmem %s0, 688
    %v235 = vld [vmem:[%s234] ss:$4 sm:$0x3]
    %s236 = sld [smem:[#allocation2]]
    %v237 = vstv %s236
    %v238 = vmul.f32 %v63, %v237
    %v239 = vmul.f32 %v65, %v237
    %v240 = vmul.f32 %v67, %v237
    %v241 = vmul.f32 %v69, %v237
    %v242 = vmul.f32 %v71, %v237
    %v243 = vmul.f32 %v73, %v237
    %v244 = vmul.f32 %v75, %v237
    %v245 = vmul.f32 %v77, %v237
    %v246 = vmul.f32 %v79, %v237
    %v247 = vmul.f32 %v81, %v237
    %v248 = vmul.f32 %v83, %v237
    %v249 = vmul.f32 %v85, %v237
    %v250 = vmul.f32 %v87, %v237
    %v251 = vmul.f32 %v89, %v237
    %v252 = vmul.f32 %v91, %v237
    %v253 = vmul.f32 %v93, %v237
    %v254 = vmul.f32 %v95, %v237
    %v255 = vmul.f32 %v97, %v237
    %v256 = vmul.f32 %v99, %v237
    %v257 = vmul.f32 %v101, %v237
    %v258 = vmul.f32 %v103, %v237
    %v259 = vmul.f32 %v105, %v237
    %v260 = vmul.f32 %v107, %v237
    %v261 = vmul.f32 %v109, %v237
    %v262 = vmul.f32 %v111, %v237
    %v263 = vmul.f32 %v113, %v237
    %v264 = vmul.f32 %v115, %v237
    %v265 = vmul.f32 %v117, %v237
    %v266 = vmul.f32 %v119, %v237
    %v267 = vmul.f32 %v121, %v237
    %v268 = vmul.f32 %v123, %v237
    %v269 = vmul.f32 %v125, %v237
    %v270 = vmul.f32 %v127, %v237
    %v271 = vmul.f32 %v129, %v237
    %v272 = vmul.f32 %v131, %v237
    %v273 = vmul.f32 %v133, %v237
    %v274 = vmul.f32 %v135, %v237
    %v275 = vmul.f32 %v137, %v237
    %v276 = vmul.f32 %v139, %v237
    %v277 = vmul.f32 %v141, %v237
    %v278 = vmul.f32 %v143, %v237
    %v279 = vmul.f32 %v145, %v237
    %v280 = vmul.f32 %v147, %v237
    %v281 = vmul.f32 %v149, %v237
    %v282 = vmul.f32 %v151, %v237
    %v283 = vmul.f32 %v153, %v237
    %v284 = vmul.f32 %v155, %v237
    %v285 = vmul.f32 %v157, %v237
    %v286 = vmul.f32 %v159, %v237
    %v287 = vmul.f32 %v161, %v237
    %v288 = vmul.f32 %v163, %v237
    %v289 = vmul.f32 %v165, %v237
    %v290 = vmul.f32 %v167, %v237
    %v291 = vmul.f32 %v169, %v237
    %v292 = vmul.f32 %v171, %v237
    %v293 = vmul.f32 %v173, %v237
    %v294 = vmul.f32 %v175, %v237
    %v295 = vmul.f32 %v177, %v237
    %v296 = vmul.f32 %v179, %v237
    %v297 = vmul.f32 %v181, %v237
    %v298 = vmul.f32 %v183, %v237
    %v299 = vmul.f32 %v185, %v237
    %v300 = vmul.f32 %v187, %v237
    %v301 = vmul.f32 %v189, %v237
    %v302 = vmul.f32 %v191, %v237
    %v303 = vmul.f32 %v193, %v237
    %v304 = vmul.f32 %v195, %v237
    %v305 = vmul.f32 %v197, %v237
    %v306 = vmul.f32 %v199, %v237
    %v307 = vmul.f32 %v201, %v237
    %v308 = vmul.f32 %v203, %v237
    %v309 = vmul.f32 %v205, %v237
    %v310 = vmul.f32 %v207, %v237
    %v311 = vmul.f32 %v209, %v237
    %v312 = vmul.f32 %v211, %v237
    %v313 = vmul.f32 %v213, %v237
    %v314 = vmul.f32 %v215, %v237
    %v315 = vmul.f32 %v217, %v237
    %v316 = vmul.f32 %v219, %v237
    %v317 = vmul.f32 %v221, %v237
    %v318 = vmul.f32 %v223, %v237
    %v319 = vmul.f32 %v225, %v237
    %v320 = vmul.f32 %v227, %v237
    %v321 = vmul.f32 %v229, %v237
    %v322 = vmul.f32 %v231, %v237
    %v323 = vmul.f32 %v233, %v237
    %v324 = vmul.f32 %v235, %v237
    %s325 = scalar_lea.vmem %s0, 1
    %v326 = vld [vmem:[%s325] ss:$4 sm:$0x3]
    %s327 = scalar_lea.vmem %s0, 9
    %v328 = vld [vmem:[%s327] ss:$4 sm:$0x3]
    %s329 = scalar_lea.vmem %s0, 17
    %v330 = vld [vmem:[%s329] ss:$4 sm:$0x3]
    %s331 = scalar_lea.vmem %s0, 25
    %v332 = vld [vmem:[%s331] ss:$4 sm:$0x3]
    %s333 = scalar_lea.vmem %s0, 33
    %v334 = vld [vmem:[%s333] ss:$4 sm:$0x3]
    %s335 = scalar_lea.vmem %s0, 41
    %v336 = vld [vmem:[%s335] ss:$4 sm:$0x3]
    %s337 = scalar_lea.vmem %s0, 49
    %v338 = vld [vmem:[%s337] ss:$4 sm:$0x3]
    %s339 = scalar_lea.vmem %s0, 57
    %v340 = vld [vmem:[%s339] ss:$4 sm:$0x3]
    %s341 = scalar_lea.vmem %s0, 65
    %v342 = vld [vmem:[%s341] ss:$4 sm:$0x3]
    %s343 = scalar_lea.vmem %s0, 73
    %v344 = vld [vmem:[%s343] ss:$4 sm:$0x3]
    %s345 = scalar_lea.vmem %s0, 81
    %v346 = vld [vmem:[%s345] ss:$4 sm:$0x3]
    %s347 = scalar_lea.vmem %s0, 89
    %v348 = vld [vmem:[%s347] ss:$4 sm:$0x3]
    %s349 = scalar_lea.vmem %s0, 97
    %v350 = vld [vmem:[%s349] ss:$4 sm:$0x3]
    %s351 = scalar_lea.vmem %s0, 105
    %v352 = vld [vmem:[%s351] ss:$4 sm:$0x3]
    %s353 = scalar_lea.vmem %s0, 113
    %v354 = vld [vmem:[%s353] ss:$4 sm:$0x3]
    %s355 = scalar_lea.vmem %s0, 121
    %v356 = vld [vmem:[%s355] ss:$4 sm:$0x3]
    %s357 = scalar_lea.vmem %s0, 129
    %v358 = vld [vmem:[%s357] ss:$4 sm:$0x3]
    %s359 = scalar_lea.vmem %s0, 137
    %v360 = vld [vmem:[%s359] ss:$4 sm:$0x3]
    %s361 = scalar_lea.vmem %s0, 145
    %v362 = vld [vmem:[%s361] ss:$4 sm:$0x3]
    %s363 = scalar_lea.vmem %s0, 153
    %v364 = vld [vmem:[%s363] ss:$4 sm:$0x3]
    %s365 = scalar_lea.vmem %s0, 161
    %v366 = vld [vmem:[%s365] ss:$4 sm:$0x3]
    %s367 = scalar_lea.vmem %s0, 169
    %v368 = vld [vmem:[%s367] ss:$4 sm:$0x3]
    %s369 = scalar_lea.vmem %s0, 177
    %v370 = vld [vmem:[%s369] ss:$4 sm:$0x3]
    %s371 = scalar_lea.vmem %s0, 185
    %v372 = vld [vmem:[%s371] ss:$4 sm:$0x3]
    %s373 = scalar_lea.vmem %s0, 193
    %v374 = vld [vmem:[%s373] ss:$4 sm:$0x3]
    %s375 = scalar_lea.vmem %s0, 201
    %v376 = vld [vmem:[%s375] ss:$4 sm:$0x3]
    %s377 = scalar_lea.vmem %s0, 209
    %v378 = vld [vmem:[%s377] ss:$4 sm:$0x3]
    %s379 = scalar_lea.vmem %s0, 217
    %v380 = vld [vmem:[%s379] ss:$4 sm:$0x3]
    %s381 = scalar_lea.vmem %s0, 225
    %v382 = vld [vmem:[%s381] ss:$4 sm:$0x3]
    %s383 = scalar_lea.vmem %s0, 233
    %v384 = vld [vmem:[%s383] ss:$4 sm:$0x3]
    %s385 = scalar_lea.vmem %s0, 241
    %v386 = vld [vmem:[%s385] ss:$4 sm:$0x3]
    %s387 = scalar_lea.vmem %s0, 249
    %v388 = vld [vmem:[%s387] ss:$4 sm:$0x3]
    %s389 = scalar_lea.vmem %s0, 257
    %v390 = vld [vmem:[%s389] ss:$4 sm:$0x3]
    %s391 = scalar_lea.vmem %s0, 265
    %v392 = vld [vmem:[%s391] ss:$4 sm:$0x3]
    %s393 = scalar_lea.vmem %s0, 273
    %v394 = vld [vmem:[%s393] ss:$4 sm:$0x3]
    %s395 = scalar_lea.vmem %s0, 281
    %v396 = vld [vmem:[%s395] ss:$4 sm:$0x3]
    %s397 = scalar_lea.vmem %s0, 289
    %v398 = vld [vmem:[%s397] ss:$4 sm:$0x3]
    %s399 = scalar_lea.vmem %s0, 297
    %v400 = vld [vmem:[%s399] ss:$4 sm:$0x3]
    %s401 = scalar_lea.vmem %s0, 305
    %v402 = vld [vmem:[%s401] ss:$4 sm:$0x3]
    %s403 = scalar_lea.vmem %s0, 313
    %v404 = vld [vmem:[%s403] ss:$4 sm:$0x3]
    %s405 = scalar_lea.vmem %s0, 321
    %v406 = vld [vmem:[%s405] ss:$4 sm:$0x3]
    %s407 = scalar_lea.vmem %s0, 329
    %v408 = vld [vmem:[%s407] ss:$4 sm:$0x3]
    %s409 = scalar_lea.vmem %s0, 337
    %v410 = vld [vmem:[%s409] ss:$4 sm:$0x3]
    %s411 = scalar_lea.vmem %s0, 345
    %v412 = vld [vmem:[%s411] ss:$4 sm:$0x3]
    %s413 = scalar_lea.vmem %s0, 353
    %v414 = vld [vmem:[%s413] ss:$4 sm:$0x3]
    %s415 = scalar_lea.vmem %s0, 361
    %v416 = vld [vmem:[%s415] ss:$4 sm:$0x3]
    %s417 = scalar_lea.vmem %s0, 369
    %v418 = vld [vmem:[%s417] ss:$4 sm:$0x3]
    %s419 = scalar_lea.vmem %s0, 377
    %v420 = vld [vmem:[%s419] ss:$4 sm:$0x3]
    %s421 = scalar_lea.vmem %s0, 385
    %v422 = vld [vmem:[%s421] ss:$4 sm:$0x3]
    %s423 = scalar_lea.vmem %s0, 393
    %v424 = vld [vmem:[%s423] ss:$4 sm:$0x3]
    %s425 = scalar_lea.vmem %s0, 401
    %v426 = vld [vmem:[%s425] ss:$4 sm:$0x3]
    %s427 = scalar_lea.vmem %s0, 409
    %v428 = vld [vmem:[%s427] ss:$4 sm:$0x3]
    %s429 = scalar_lea.vmem %s0, 417
    %v430 = vld [vmem:[%s429] ss:$4 sm:$0x3]
    %s431 = scalar_lea.vmem %s0, 425
    %v432 = vld [vmem:[%s431] ss:$4 sm:$0x3]
    %s433 = scalar_lea.vmem %s0, 433
    %v434 = vld [vmem:[%s433] ss:$4 sm:$0x3]
    %s435 = scalar_lea.vmem %s0, 441
    %v436 = vld [vmem:[%s435] ss:$4 sm:$0x3]
    %s437 = scalar_lea.vmem %s0, 449
    %v438 = vld [vmem:[%s437] ss:$4 sm:$0x3]
    %s439 = scalar_lea.vmem %s0, 457
    %v440 = vld [vmem:[%s439] ss:$4 sm:$0x3]
    %s441 = scalar_lea.vmem %s0, 465
    %v442 = vld [vmem:[%s441] ss:$4 sm:$0x3]
    %s443 = scalar_lea.vmem %s0, 473
    %v444 = vld [vmem:[%s443] ss:$4 sm:$0x3]
    %s445 = scalar_lea.vmem %s0, 481
    %v446 = vld [vmem:[%s445] ss:$4 sm:$0x3]
    %s447 = scalar_lea.vmem %s0, 489
    %v448 = vld [vmem:[%s447] ss:$4 sm:$0x3]
    %s449 = scalar_lea.vmem %s0, 497
    %v450 = vld [vmem:[%s449] ss:$4 sm:$0x3]
    %s451 = scalar_lea.vmem %s0, 505
    %v452 = vld [vmem:[%s451] ss:$4 sm:$0x3]
    %s453 = scalar_lea.vmem %s0, 513
    %v454 = vld [vmem:[%s453] ss:$4 sm:$0x3]
    %s455 = scalar_lea.vmem %s0, 521
    %v456 = vld [vmem:[%s455] ss:$4 sm:$0x3]
    %s457 = scalar_lea.vmem %s0, 529
    %v458 = vld [vmem:[%s457] ss:$4 sm:$0x3]
    %s459 = scalar_lea.vmem %s0, 537
    %v460 = vld [vmem:[%s459] ss:$4 sm:$0x3]
    %s461 = scalar_lea.vmem %s0, 545
    %v462 = vld [vmem:[%s461] ss:$4 sm:$0x3]
    %s463 = scalar_lea.vmem %s0, 553
    %v464 = vld [vmem:[%s463] ss:$4 sm:$0x3]
    %s465 = scalar_lea.vmem %s0, 561
    %v466 = vld [vmem:[%s465] ss:$4 sm:$0x3]
    %s467 = scalar_lea.vmem %s0, 569
    %v468 = vld [vmem:[%s467] ss:$4 sm:$0x3]
    %s469 = scalar_lea.vmem %s0, 577
    %v470 = vld [vmem:[%s469] ss:$4 sm:$0x3]
    %s471 = scalar_lea.vmem %s0, 585
    %v472 = vld [vmem:[%s471] ss:$4 sm:$0x3]
    %s473 = scalar_lea.vmem %s0, 593
    %v474 = vld [vmem:[%s473] ss:$4 sm:$0x3]
    %s475 = scalar_lea.vmem %s0, 601
    %v476 = vld [vmem:[%s475] ss:$4 sm:$0x3]
    %s477 = scalar_lea.vmem %s0, 609
    %v478 = vld [vmem:[%s477] ss:$4 sm:$0x3]
    %s479 = scalar_lea.vmem %s0, 617
    %v480 = vld [vmem:[%s479] ss:$4 sm:$0x3]
    %s481 = scalar_lea.vmem %s0, 625
    %v482 = vld [vmem:[%s481] ss:$4 sm:$0x3]
    %s483 = scalar_lea.vmem %s0, 633
    %v484 = vld [vmem:[%s483] ss:$4 sm:$0x3]
    %s485 = scalar_lea.vmem %s0, 641
    %v486 = vld [vmem:[%s485] ss:$4 sm:$0x3]
    %s487 = scalar_lea.vmem %s0, 649
    %v488 = vld [vmem:[%s487] ss:$4 sm:$0x3]
    %s489 = scalar_lea.vmem %s0, 657
    %v490 = vld [vmem:[%s489] ss:$4 sm:$0x3]
    %s491 = scalar_lea.vmem %s0, 665
    %v492 = vld [vmem:[%s491] ss:$4 sm:$0x3]
    %s493 = scalar_lea.vmem %s0, 673
    %v494 = vld [vmem:[%s493] ss:$4 sm:$0x3]
    %s495 = scalar_lea.vmem %s0, 681
    %v496 = vld [vmem:[%s495] ss:$4 sm:$0x3]
    %s497 = scalar_lea.vmem %s0, 689
    %v498 = vld [vmem:[%s497] ss:$4 sm:$0x3]
    %s499 = sld [smem:[#allocation2 + $0x80]]
    %v500 = vstv %s499
    %v501 = vmul.f32 %v326, %v500
    %v502 = vmul.f32 %v328, %v500
    %v503 = vmul.f32 %v330, %v500
    %v504 = vmul.f32 %v332, %v500
    %v505 = vmul.f32 %v334, %v500
    %v506 = vmul.f32 %v336, %v500
    %v507 = vmul.f32 %v338, %v500
    %v508 = vmul.f32 %v340, %v500
    %v509 = vmul.f32 %v342, %v500
    %v510 = vmul.f32 %v344, %v500
    %v511 = vmul.f32 %v346, %v500
    %v512 = vmul.f32 %v348, %v500
    %v513 = vmul.f32 %v350, %v500
    %v514 = vmul.f32 %v352, %v500
    %v515 = vmul.f32 %v354, %v500
    %v516 = vmul.f32 %v356, %v500
    %v517 = vmul.f32 %v358, %v500
    %v518 = vmul.f32 %v360, %v500
    %v519 = vmul.f32 %v362, %v500
    %v520 = vmul.f32 %v364, %v500
    %v521 = vmul.f32 %v366, %v500
    %v522 = vmul.f32 %v368, %v500
    %v523 = vmul.f32 %v370, %v500
    %v524 = vmul.f32 %v372, %v500
    %v525 = vmul.f32 %v374, %v500
    %v526 = vmul.f32 %v376, %v500
    %v527 = vmul.f32 %v378, %v500
    %v528 = vmul.f32 %v380, %v500
    %v529 = vmul.f32 %v382, %v500
    %v530 = vmul.f32 %v384, %v500
    %v531 = vmul.f32 %v386, %v500
    %v532 = vmul.f32 %v388, %v500
    %v533 = vmul.f32 %v390, %v500
    %v534 = vmul.f32 %v392, %v500
    %v535 = vmul.f32 %v394, %v500
    %v536 = vmul.f32 %v396, %v500
    %v537 = vmul.f32 %v398, %v500
    %v538 = vmul.f32 %v400, %v500
    %v539 = vmul.f32 %v402, %v500
    %v540 = vmul.f32 %v404, %v500
    %v541 = vmul.f32 %v406, %v500
    %v542 = vmul.f32 %v408, %v500
    %v543 = vmul.f32 %v410, %v500
    %v544 = vmul.f32 %v412, %v500
    %v545 = vmul.f32 %v414, %v500
    %v546 = vmul.f32 %v416, %v500
    %v547 = vmul.f32 %v418, %v500
    %v548 = vmul.f32 %v420, %v500
    %v549 = vmul.f32 %v422, %v500
    %v550 = vmul.f32 %v424, %v500
    %v551 = vmul.f32 %v426, %v500
    %v552 = vmul.f32 %v428, %v500
    %v553 = vmul.f32 %v430, %v500
    %v554 = vmul.f32 %v432, %v500
    %v555 = vmul.f32 %v434, %v500
    %v556 = vmul.f32 %v436, %v500
    %v557 = vmul.f32 %v438, %v500
    %v558 = vmul.f32 %v440, %v500
    %v559 = vmul.f32 %v442, %v500
    %v560 = vmul.f32 %v444, %v500
    %v561 = vmul.f32 %v446, %v500
    %v562 = vmul.f32 %v448, %v500
    %v563 = vmul.f32 %v450, %v500
    %v564 = vmul.f32 %v452, %v500
    %v565 = vmul.f32 %v454, %v500
    %v566 = vmul.f32 %v456, %v500
    %v567 = vmul.f32 %v458, %v500
    %v568 = vmul.f32 %v460, %v500
    %v569 = vmul.f32 %v462, %v500
    %v570 = vmul.f32 %v464, %v500
    %v571 = vmul.f32 %v466, %v500
    %v572 = vmul.f32 %v468, %v500
    %v573 = vmul.f32 %v470, %v500
    %v574 = vmul.f32 %v472, %v500
    %v575 = vmul.f32 %v474, %v500
    %v576 = vmul.f32 %v476, %v500
    %v577 = vmul.f32 %v478, %v500
    %v578 = vmul.f32 %v480, %v500
    %v579 = vmul.f32 %v482, %v500
    %v580 = vmul.f32 %v484, %v500
    %v581 = vmul.f32 %v486, %v500
    %v582 = vmul.f32 %v488, %v500
    %v583 = vmul.f32 %v490, %v500
    %v584 = vmul.f32 %v492, %v500
    %v585 = vmul.f32 %v494, %v500
    %v586 = vmul.f32 %v496, %v500
    %v587 = vmul.f32 %v498, %v500
    %v588 = vadd.f32 %v238, %v501
    %v589 = vadd.f32 %v239, %v502
    %v590 = vadd.f32 %v240, %v503
    %v591 = vadd.f32 %v241, %v504
    %v592 = vadd.f32 %v242, %v505
    %v593 = vadd.f32 %v243, %v506
    %v594 = vadd.f32 %v244, %v507
    %v595 = vadd.f32 %v245, %v508
    %v596 = vadd.f32 %v246, %v509
    %v597 = vadd.f32 %v247, %v510
    %v598 = vadd.f32 %v248, %v511
    %v599 = vadd.f32 %v249, %v512
    %v600 = vadd.f32 %v250, %v513
    %v601 = vadd.f32 %v251, %v514
    %v602 = vadd.f32 %v252, %v515
    %v603 = vadd.f32 %v253, %v516
    %v604 = vadd.f32 %v254, %v517
    %v605 = vadd.f32 %v255, %v518
    %v606 = vadd.f32 %v256, %v519
    %v607 = vadd.f32 %v257, %v520
    %v608 = vadd.f32 %v258, %v521
    %v609 = vadd.f32 %v259, %v522
    %v610 = vadd.f32 %v260, %v523
    %v611 = vadd.f32 %v261, %v524
    %v612 = vadd.f32 %v262, %v525
    %v613 = vadd.f32 %v263, %v526
    %v614 = vadd.f32 %v264, %v527
    %v615 = vadd.f32 %v265, %v528
    %v616 = vadd.f32 %v266, %v529
    %v617 = vadd.f32 %v267, %v530
    %v618 = vadd.f32 %v268, %v531
    %v619 = vadd.f32 %v269, %v532
    %v620 = vadd.f32 %v270, %v533
    %v621 = vadd.f32 %v271, %v534
    %v622 = vadd.f32 %v272, %v535
    %v623 = vadd.f32 %v273, %v536
    %v624 = vadd.f32 %v274, %v537
    %v625 = vadd.f32 %v275, %v538
    %v626 = vadd.f32 %v276, %v539
    %v627 = vadd.f32 %v277, %v540
    %v628 = vadd.f32 %v278, %v541
    %v629 = vadd.f32 %v279, %v542
    %v630 = vadd.f32 %v280, %v543
    %v631 = vadd.f32 %v281, %v544
    %v632 = vadd.f32 %v282, %v545
    %v633 = vadd.f32 %v283, %v546
    %v634 = vadd.f32 %v284, %v547
    %v635 = vadd.f32 %v285, %v548
    %v636 = vadd.f32 %v286, %v549
    %v637 = vadd.f32 %v287, %v550
    %v638 = vadd.f32 %v288, %v551
    %v639 = vadd.f32 %v289, %v552
    %v640 = vadd.f32 %v290, %v553
    %v641 = vadd.f32 %v291, %v554
    %v642 = vadd.f32 %v292, %v555
    %v643 = vadd.f32 %v293, %v556
    %v644 = vadd.f32 %v294, %v557
    %v645 = vadd.f32 %v295, %v558
    %v646 = vadd.f32 %v296, %v559
    %v647 = vadd.f32 %v297, %v560
    %v648 = vadd.f32 %v298, %v561
    %v649 = vadd.f32 %v299, %v562
    %v650 = vadd.f32 %v300, %v563
    %v651 = vadd.f32 %v301, %v564
    %v652 = vadd.f32 %v302, %v565
    %v653 = vadd.f32 %v303, %v566
    %v654 = vadd.f32 %v304, %v567
    %v655 = vadd.f32 %v305, %v568
    %v656 = vadd.f32 %v306, %v569
    %v657 = vadd.f32 %v307, %v570
    %v658 = vadd.f32 %v308, %v571
    %v659 = vadd.f32 %v309, %v572
    %v660 = vadd.f32 %v310, %v573
    %v661 = vadd.f32 %v311, %v574
    %v662 = vadd.f32 %v312, %v575
    %v663 = vadd.f32 %v313, %v576
    %v664 = vadd.f32 %v314, %v577
    %v665 = vadd.f32 %v315, %v578
    %v666 = vadd.f32 %v316, %v579
    %v667 = vadd.f32 %v317, %v580
    %v668 = vadd.f32 %v318, %v581
    %v669 = vadd.f32 %v319, %v582
    %v670 = vadd.f32 %v320, %v583
    %v671 = vadd.f32 %v321, %v584
    %v672 = vadd.f32 %v322, %v585
    %v673 = vadd.f32 %v323, %v586
    %v674 = vadd.f32 %v324, %v587
    %s675 = scalar_lea.vmem %s0, 2
    %v676 = vld [vmem:[%s675] ss:$4 sm:$0x3]
    %s677 = scalar_lea.vmem %s0, 10
    %v678 = vld [vmem:[%s677] ss:$4 sm:$0x3]
    %s679 = scalar_lea.vmem %s0, 18
    %v680 = vld [vmem:[%s679] ss:$4 sm:$0x3]
    %s681 = scalar_lea.vmem %s0, 26
    %v682 = vld [vmem:[%s681] ss:$4 sm:$0x3]
    %s683 = scalar_lea.vmem %s0, 34
    %v684 = vld [vmem:[%s683] ss:$4 sm:$0x3]
    %s685 = scalar_lea.vmem %s0, 42
    %v686 = vld [vmem:[%s685] ss:$4 sm:$0x3]
    %s687 = scalar_lea.vmem %s0, 50
    %v688 = vld [vmem:[%s687] ss:$4 sm:$0x3]
    %s689 = scalar_lea.vmem %s0, 58
    %v690 = vld [vmem:[%s689] ss:$4 sm:$0x3]
    %s691 = scalar_lea.vmem %s0, 66
    %v692 = vld [vmem:[%s691] ss:$4 sm:$0x3]
    %s693 = scalar_lea.vmem %s0, 74
    %v694 = vld [vmem:[%s693] ss:$4 sm:$0x3]
    %s695 = scalar_lea.vmem %s0, 82
    %v696 = vld [vmem:[%s695] ss:$4 sm:$0x3]
    %s697 = scalar_lea.vmem %s0, 90
    %v698 = vld [vmem:[%s697] ss:$4 sm:$0x3]
    %s699 = scalar_lea.vmem %s0, 98
    %v700 = vld [vmem:[%s699] ss:$4 sm:$0x3]
    %s701 = scalar_lea.vmem %s0, 106
    %v702 = vld [vmem:[%s701] ss:$4 sm:$0x3]
    %s703 = scalar_lea.vmem %s0, 114
    %v704 = vld [vmem:[%s703] ss:$4 sm:$0x3]
    %s705 = scalar_lea.vmem %s0, 122
    %v706 = vld [vmem:[%s705] ss:$4 sm:$0x3]
    %s707 = scalar_lea.vmem %s0, 130
    %v708 = vld [vmem:[%s707] ss:$4 sm:$0x3]
    %s709 = scalar_lea.vmem %s0, 138
    %v710 = vld [vmem:[%s709] ss:$4 sm:$0x3]
    %s711 = scalar_lea.vmem %s0, 146
    %v712 = vld [vmem:[%s711] ss:$4 sm:$0x3]
    %s713 = scalar_lea.vmem %s0, 154
    %v714 = vld [vmem:[%s713] ss:$4 sm:$0x3]
    %s715 = scalar_lea.vmem %s0, 162
    %v716 = vld [vmem:[%s715] ss:$4 sm:$0x3]
    %s717 = scalar_lea.vmem %s0, 170
    %v718 = vld [vmem:[%s717] ss:$4 sm:$0x3]
    %s719 = scalar_lea.vmem %s0, 178
    %v720 = vld [vmem:[%s719] ss:$4 sm:$0x3]
    %s721 = scalar_lea.vmem %s0, 186
    %v722 = vld [vmem:[%s721] ss:$4 sm:$0x3]
    %s723 = scalar_lea.vmem %s0, 194
    %v724 = vld [vmem:[%s723] ss:$4 sm:$0x3]
    %s725 = scalar_lea.vmem %s0, 202
    %v726 = vld [vmem:[%s725] ss:$4 sm:$0x3]
    %s727 = scalar_lea.vmem %s0, 210
    %v728 = vld [vmem:[%s727] ss:$4 sm:$0x3]
    %s729 = scalar_lea.vmem %s0, 218
    %v730 = vld [vmem:[%s729] ss:$4 sm:$0x3]
    %s731 = scalar_lea.vmem %s0, 226
    %v732 = vld [vmem:[%s731] ss:$4 sm:$0x3]
    %s733 = scalar_lea.vmem %s0, 234
    %v734 = vld [vmem:[%s733] ss:$4 sm:$0x3]
    %s735 = scalar_lea.vmem %s0, 242
    %v736 = vld [vmem:[%s735] ss:$4 sm:$0x3]
    %s737 = scalar_lea.vmem %s0, 250
    %v738 = vld [vmem:[%s737] ss:$4 sm:$0x3]
    %s739 = scalar_lea.vmem %s0, 258
    %v740 = vld [vmem:[%s739] ss:$4 sm:$0x3]
    %s741 = scalar_lea.vmem %s0, 266
    %v742 = vld [vmem:[%s741] ss:$4 sm:$0x3]
    %s743 = scalar_lea.vmem %s0, 274
    %v744 = vld [vmem:[%s743] ss:$4 sm:$0x3]
    %s745 = scalar_lea.vmem %s0, 282
    %v746 = vld [vmem:[%s745] ss:$4 sm:$0x3]
    %s747 = scalar_lea.vmem %s0, 290
    %v748 = vld [vmem:[%s747] ss:$4 sm:$0x3]
    %s749 = scalar_lea.vmem %s0, 298
    %v750 = vld [vmem:[%s749] ss:$4 sm:$0x3]
    %s751 = scalar_lea.vmem %s0, 306
    %v752 = vld [vmem:[%s751] ss:$4 sm:$0x3]
    %s753 = scalar_lea.vmem %s0, 314
    %v754 = vld [vmem:[%s753] ss:$4 sm:$0x3]
    %s755 = scalar_lea.vmem %s0, 322
    %v756 = vld [vmem:[%s755] ss:$4 sm:$0x3]
    %s757 = scalar_lea.vmem %s0, 330
    %v758 = vld [vmem:[%s757] ss:$4 sm:$0x3]
    %s759 = scalar_lea.vmem %s0, 338
    %v760 = vld [vmem:[%s759] ss:$4 sm:$0x3]
    %s761 = scalar_lea.vmem %s0, 346
    %v762 = vld [vmem:[%s761] ss:$4 sm:$0x3]
    %s763 = scalar_lea.vmem %s0, 354
    %v764 = vld [vmem:[%s763] ss:$4 sm:$0x3]
    %s765 = scalar_lea.vmem %s0, 362
    %v766 = vld [vmem:[%s765] ss:$4 sm:$0x3]
    %s767 = scalar_lea.vmem %s0, 370
    %v768 = vld [vmem:[%s767] ss:$4 sm:$0x3]
    %s769 = scalar_lea.vmem %s0, 378
    %v770 = vld [vmem:[%s769] ss:$4 sm:$0x3]
    %s771 = scalar_lea.vmem %s0, 386
    %v772 = vld [vmem:[%s771] ss:$4 sm:$0x3]
    %s773 = scalar_lea.vmem %s0, 394
    %v774 = vld [vmem:[%s773] ss:$4 sm:$0x3]
    %s775 = scalar_lea.vmem %s0, 402
    %v776 = vld [vmem:[%s775] ss:$4 sm:$0x3]
    %s777 = scalar_lea.vmem %s0, 410
    %v778 = vld [vmem:[%s777] ss:$4 sm:$0x3]
    %s779 = scalar_lea.vmem %s0, 418
    %v780 = vld [vmem:[%s779] ss:$4 sm:$0x3]
    %s781 = scalar_lea.vmem %s0, 426
    %v782 = vld [vmem:[%s781] ss:$4 sm:$0x3]
    %s783 = scalar_lea.vmem %s0, 434
    %v784 = vld [vmem:[%s783] ss:$4 sm:$0x3]
    %s785 = scalar_lea.vmem %s0, 442
    %v786 = vld [vmem:[%s785] ss:$4 sm:$0x3]
    %s787 = scalar_lea.vmem %s0, 450
    %v788 = vld [vmem:[%s787] ss:$4 sm:$0x3]
    %s789 = scalar_lea.vmem %s0, 458
    %v790 = vld [vmem:[%s789] ss:$4 sm:$0x3]
    %s791 = scalar_lea.vmem %s0, 466
    %v792 = vld [vmem:[%s791] ss:$4 sm:$0x3]
    %s793 = scalar_lea.vmem %s0, 474
    %v794 = vld [vmem:[%s793] ss:$4 sm:$0x3]
    %s795 = scalar_lea.vmem %s0, 482
    %v796 = vld [vmem:[%s795] ss:$4 sm:$0x3]
    %s797 = scalar_lea.vmem %s0, 490
    %v798 = vld [vmem:[%s797] ss:$4 sm:$0x3]
    %s799 = scalar_lea.vmem %s0, 498
    %v800 = vld [vmem:[%s799] ss:$4 sm:$0x3]
    %s801 = scalar_lea.vmem %s0, 506
    %v802 = vld [vmem:[%s801] ss:$4 sm:$0x3]
    %s803 = scalar_lea.vmem %s0, 514
    %v804 = vld [vmem:[%s803] ss:$4 sm:$0x3]
    %s805 = scalar_lea.vmem %s0, 522
    %v806 = vld [vmem:[%s805] ss:$4 sm:$0x3]
    %s807 = scalar_lea.vmem %s0, 530
    %v808 = vld [vmem:[%s807] ss:$4 sm:$0x3]
    %s809 = scalar_lea.vmem %s0, 538
    %v810 = vld [vmem:[%s809] ss:$4 sm:$0x3]
    %s811 = scalar_lea.vmem %s0, 546
    %v812 = vld [vmem:[%s811] ss:$4 sm:$0x3]
    %s813 = scalar_lea.vmem %s0, 554
    %v814 = vld [vmem:[%s813] ss:$4 sm:$0x3]
    %s815 = scalar_lea.vmem %s0, 562
    %v816 = vld [vmem:[%s815] ss:$4 sm:$0x3]
    %s817 = scalar_lea.vmem %s0, 570
    %v818 = vld [vmem:[%s817] ss:$4 sm:$0x3]
    %s819 = scalar_lea.vmem %s0, 578
    %v820 = vld [vmem:[%s819] ss:$4 sm:$0x3]
    %s821 = scalar_lea.vmem %s0, 586
    %v822 = vld [vmem:[%s821] ss:$4 sm:$0x3]
    %s823 = scalar_lea.vmem %s0, 594
    %v824 = vld [vmem:[%s823] ss:$4 sm:$0x3]
    %s825 = scalar_lea.vmem %s0, 602
    %v826 = vld [vmem:[%s825] ss:$4 sm:$0x3]
    %s827 = scalar_lea.vmem %s0, 610
    %v828 = vld [vmem:[%s827] ss:$4 sm:$0x3]
    %s829 = scalar_lea.vmem %s0, 618
    %v830 = vld [vmem:[%s829] ss:$4 sm:$0x3]
    %s831 = scalar_lea.vmem %s0, 626
    %v832 = vld [vmem:[%s831] ss:$4 sm:$0x3]
    %s833 = scalar_lea.vmem %s0, 634
    %v834 = vld [vmem:[%s833] ss:$4 sm:$0x3]
    %s835 = scalar_lea.vmem %s0, 642
    %v836 = vld [vmem:[%s835] ss:$4 sm:$0x3]
    %s837 = scalar_lea.vmem %s0, 650
    %v838 = vld [vmem:[%s837] ss:$4 sm:$0x3]
    %s839 = scalar_lea.vmem %s0, 658
    %v840 = vld [vmem:[%s839] ss:$4 sm:$0x3]
    %s841 = scalar_lea.vmem %s0, 666
    %v842 = vld [vmem:[%s841] ss:$4 sm:$0x3]
    %s843 = scalar_lea.vmem %s0, 674
    %v844 = vld [vmem:[%s843] ss:$4 sm:$0x3]
    %s845 = scalar_lea.vmem %s0, 682
    %v846 = vld [vmem:[%s845] ss:$4 sm:$0x3]
    %s847 = scalar_lea.vmem %s0, 690
    %v848 = vld [vmem:[%s847] ss:$4 sm:$0x3]
    %s849 = sld [smem:[#allocation2 + $0x100]]
    %v850 = vstv %s849
    %v851 = vmul.f32 %v676, %v850
    %v852 = vmul.f32 %v678, %v850
    %v853 = vmul.f32 %v680, %v850
    %v854 = vmul.f32 %v682, %v850
    %v855 = vmul.f32 %v684, %v850
    %v856 = vmul.f32 %v686, %v850
    %v857 = vmul.f32 %v688, %v850
    %v858 = vmul.f32 %v690, %v850
    %v859 = vmul.f32 %v692, %v850
    %v860 = vmul.f32 %v694, %v850
    %v861 = vmul.f32 %v696, %v850
    %v862 = vmul.f32 %v698, %v850
    %v863 = vmul.f32 %v700, %v850
    %v864 = vmul.f32 %v702, %v850
    %v865 = vmul.f32 %v704, %v850
    %v866 = vmul.f32 %v706, %v850
    %v867 = vmul.f32 %v708, %v850
    %v868 = vmul.f32 %v710, %v850
    %v869 = vmul.f32 %v712, %v850
    %v870 = vmul.f32 %v714, %v850
    %v871 = vmul.f32 %v716, %v850
    %v872 = vmul.f32 %v718, %v850
    %v873 = vmul.f32 %v720, %v850
    %v874 = vmul.f32 %v722, %v850
    %v875 = vmul.f32 %v724, %v850
    %v876 = vmul.f32 %v726, %v850
    %v877 = vmul.f32 %v728, %v850
    %v878 = vmul.f32 %v730, %v850
    %v879 = vmul.f32 %v732, %v850
    %v880 = vmul.f32 %v734, %v850
    %v881 = vmul.f32 %v736, %v850
    %v882 = vmul.f32 %v738, %v850
    %v883 = vmul.f32 %v740, %v850
    %v884 = vmul.f32 %v742, %v850
    %v885 = vmul.f32 %v744, %v850
    %v886 = vmul.f32 %v746, %v850
    %v887 = vmul.f32 %v748, %v850
    %v888 = vmul.f32 %v750, %v850
    %v889 = vmul.f32 %v752, %v850
    %v890 = vmul.f32 %v754, %v850
    %v891 = vmul.f32 %v756, %v850
    %v892 = vmul.f32 %v758, %v850
    %v893 = vmul.f32 %v760, %v850
    %v894 = vmul.f32 %v762, %v850
    %v895 = vmul.f32 %v764, %v850
    %v896 = vmul.f32 %v766, %v850
    %v897 = vmul.f32 %v768, %v850
    %v898 = vmul.f32 %v770, %v850
    %v899 = vmul.f32 %v772, %v850
    %v900 = vmul.f32 %v774, %v850
    %v901 = vmul.f32 %v776, %v850
    %v902 = vmul.f32 %v778, %v850
    %v903 = vmul.f32 %v780, %v850
    %v904 = vmul.f32 %v782, %v850
    %v905 = vmul.f32 %v784, %v850
    %v906 = vmul.f32 %v786, %v850
    %v907 = vmul.f32 %v788, %v850
    %v908 = vmul.f32 %v790, %v850
    %v909 = vmul.f32 %v792, %v850
    %v910 = vmul.f32 %v794, %v850
    %v911 = vmul.f32 %v796, %v850
    %v912 = vmul.f32 %v798, %v850
    %v913 = vmul.f32 %v800, %v850
    %v914 = vmul.f32 %v802, %v850
    %v915 = vmul.f32 %v804, %v850
    %v916 = vmul.f32 %v806, %v850
    %v917 = vmul.f32 %v808, %v850
    %v918 = vmul.f32 %v810, %v850
    %v919 = vmul.f32 %v812, %v850
    %v920 = vmul.f32 %v814, %v850
    %v921 = vmul.f32 %v816, %v850
    %v922 = vmul.f32 %v818, %v850
    %v923 = vmul.f32 %v820, %v850
    %v924 = vmul.f32 %v822, %v850
    %v925 = vmul.f32 %v824, %v850
    %v926 = vmul.f32 %v826, %v850
    %v927 = vmul.f32 %v828, %v850
    %v928 = vmul.f32 %v830, %v850
    %v929 = vmul.f32 %v832, %v850
    %v930 = vmul.f32 %v834, %v850
    %v931 = vmul.f32 %v836, %v850
    %v932 = vmul.f32 %v838, %v850
    %v933 = vmul.f32 %v840, %v850
    %v934 = vmul.f32 %v842, %v850
    %v935 = vmul.f32 %v844, %v850
    %v936 = vmul.f32 %v846, %v850
    %v937 = vmul.f32 %v848, %v850
    %v938 = vadd.f32 %v588, %v851
    %v939 = vadd.f32 %v589, %v852
    %v940 = vadd.f32 %v590, %v853
    %v941 = vadd.f32 %v591, %v854
    %v942 = vadd.f32 %v592, %v855
    %v943 = vadd.f32 %v593, %v856
    %v944 = vadd.f32 %v594, %v857
    %v945 = vadd.f32 %v595, %v858
    %v946 = vadd.f32 %v596, %v859
    %v947 = vadd.f32 %v597, %v860
    %v948 = vadd.f32 %v598, %v861
    %v949 = vadd.f32 %v599, %v862
    %v950 = vadd.f32 %v600, %v863
    %v951 = vadd.f32 %v601, %v864
    %v952 = vadd.f32 %v602, %v865
    %v953 = vadd.f32 %v603, %v866
    %v954 = vadd.f32 %v604, %v867
    %v955 = vadd.f32 %v605, %v868
    %v956 = vadd.f32 %v606, %v869
    %v957 = vadd.f32 %v607, %v870
    %v958 = vadd.f32 %v608, %v871
    %v959 = vadd.f32 %v609, %v872
    %v960 = vadd.f32 %v610, %v873
    %v961 = vadd.f32 %v611, %v874
    %v962 = vadd.f32 %v612, %v875
    %v963 = vadd.f32 %v613, %v876
    %v964 = vadd.f32 %v614, %v877
    %v965 = vadd.f32 %v615, %v878
    %v966 = vadd.f32 %v616, %v879
    %v967 = vadd.f32 %v617, %v880
    %v968 = vadd.f32 %v618, %v881
    %v969 = vadd.f32 %v619, %v882
    %v970 = vadd.f32 %v620, %v883
    %v971 = vadd.f32 %v621, %v884
    %v972 = vadd.f32 %v622, %v885
    %v973 = vadd.f32 %v623, %v886
    %v974 = vadd.f32 %v624, %v887
    %v975 = vadd.f32 %v625, %v888
    %v976 = vadd.f32 %v626, %v889
    %v977 = vadd.f32 %v627, %v890
    %v978 = vadd.f32 %v628, %v891
    %v979 = vadd.f32 %v629, %v892
    %v980 = vadd.f32 %v630, %v893
    %v981 = vadd.f32 %v631, %v894
    %v982 = vadd.f32 %v632, %v895
    %v983 = vadd.f32 %v633, %v896
    %v984 = vadd.f32 %v634, %v897
    %v985 = vadd.f32 %v635, %v898
    %v986 = vadd.f32 %v636, %v899
    %v987 = vadd.f32 %v637, %v900
    %v988 = vadd.f32 %v638, %v901
    %v989 = vadd.f32 %v639, %v902
    %v990 = vadd.f32 %v640, %v903
    %v991 = vadd.f32 %v641, %v904
    %v992 = vadd.f32 %v642, %v905
    %v993 = vadd.f32 %v643, %v906
    %v994 = vadd.f32 %v644, %v907
    %v995 = vadd.f32 %v645, %v908
    %v996 = vadd.f32 %v646, %v909
    %v997 = vadd.f32 %v647, %v910
    %v998 = vadd.f32 %v648, %v911
    %v999 = vadd.f32 %v649, %v912
    %v1000 = vadd.f32 %v650, %v913
    %v1001 = vadd.f32 %v651, %v914
    %v1002 = vadd.f32 %v652, %v915
    %v1003 = vadd.f32 %v653, %v916
    %v1004 = vadd.f32 %v654, %v917
    %v1005 = vadd.f32 %v655, %v918
    %v1006 = vadd.f32 %v656, %v919
    %v1007 = vadd.f32 %v657, %v920
    %v1008 = vadd.f32 %v658, %v921
    %v1009 = vadd.f32 %v659, %v922
    %v1010 = vadd.f32 %v660, %v923
    %v1011 = vadd.f32 %v661, %v924
    %v1012 = vadd.f32 %v662, %v925
    %v1013 = vadd.f32 %v663, %v926
    %v1014 = vadd.f32 %v664, %v927
    %v1015 = vadd.f32 %v665, %v928
    %v1016 = vadd.f32 %v666, %v929
    %v1017 = vadd.f32 %v667, %v930
    %v1018 = vadd.f32 %v668, %v931
    %v1019 = vadd.f32 %v669, %v932
    %v1020 = vadd.f32 %v670, %v933
    %v1021 = vadd.f32 %v671, %v934
    %v1022 = vadd.f32 %v672, %v935
    %v1023 = vadd.f32 %v673, %v936
    %v1024 = vadd.f32 %v674, %v937
    %vm1025 = vcmp.gt.f32.partialorder %v938, 0.0
    %vm1026 = vcmp.gt.f32.partialorder %v939, 0.0
    %vm1027 = vcmp.gt.f32.partialorder %v940, 0.0
    %vm1028 = vcmp.gt.f32.partialorder %v941, 0.0
    %vm1029 = vcmp.gt.f32.partialorder %v942, 0.0
    %vm1030 = vcmp.gt.f32.partialorder %v943, 0.0
    %vm1031 = vcmp.gt.f32.partialorder %v944, 0.0
    %vm1032 = vcmp.gt.f32.partialorder %v945, 0.0
    %vm1033 = vcmp.gt.f32.partialorder %v946, 0.0
    %vm1034 = vcmp.gt.f32.partialorder %v947, 0.0
    %vm1035 = vcmp.gt.f32.partialorder %v948, 0.0
    %vm1036 = vcmp.gt.f32.partialorder %v949, 0.0
    %vm1037 = vcmp.gt.f32.partialorder %v950, 0.0
    %vm1038 = vcmp.gt.f32.partialorder %v951, 0.0
    %vm1039 = vcmp.gt.f32.partialorder %v952, 0.0
    %vm1040 = vcmp.gt.f32.partialorder %v953, 0.0
    %vm1041 = vcmp.gt.f32.partialorder %v954, 0.0
    %vm1042 = vcmp.gt.f32.partialorder %v955, 0.0
    %vm1043 = vcmp.gt.f32.partialorder %v956, 0.0
    %vm1044 = vcmp.gt.f32.partialorder %v957, 0.0
    %vm1045 = vcmp.gt.f32.partialorder %v958, 0.0
    %vm1046 = vcmp.gt.f32.partialorder %v959, 0.0
    %vm1047 = vcmp.gt.f32.partialorder %v960, 0.0
    %vm1048 = vcmp.gt.f32.partialorder %v961, 0.0
    %vm1049 = vcmp.gt.f32.partialorder %v962, 0.0
    %vm1050 = vcmp.gt.f32.partialorder %v963, 0.0
    %vm1051 = vcmp.gt.f32.partialorder %v964, 0.0
    %vm1052 = vcmp.gt.f32.partialorder %v965, 0.0
    %vm1053 = vcmp.gt.f32.partialorder %v966, 0.0
    %vm1054 = vcmp.gt.f32.partialorder %v967, 0.0
    %vm1055 = vcmp.gt.f32.partialorder %v968, 0.0
    %vm1056 = vcmp.gt.f32.partialorder %v969, 0.0
    %vm1057 = vcmp.gt.f32.partialorder %v970, 0.0
    %vm1058 = vcmp.gt.f32.partialorder %v971, 0.0
    %vm1059 = vcmp.gt.f32.partialorder %v972, 0.0
    %vm1060 = vcmp.gt.f32.partialorder %v973, 0.0
    %vm1061 = vcmp.gt.f32.partialorder %v974, 0.0
    %vm1062 = vcmp.gt.f32.partialorder %v975, 0.0
    %vm1063 = vcmp.gt.f32.partialorder %v976, 0.0
    %vm1064 = vcmp.gt.f32.partialorder %v977, 0.0
    %vm1065 = vcmp.gt.f32.partialorder %v978, 0.0
    %vm1066 = vcmp.gt.f32.partialorder %v979, 0.0
    %vm1067 = vcmp.gt.f32.partialorder %v980, 0.0
    %vm1068 = vcmp.gt.f32.partialorder %v981, 0.0
    %vm1069 = vcmp.gt.f32.partialorder %v982, 0.0
    %vm1070 = vcmp.gt.f32.partialorder %v983, 0.0
    %vm1071 = vcmp.gt.f32.partialorder %v984, 0.0
    %vm1072 = vcmp.gt.f32.partialorder %v985, 0.0
    %vm1073 = vcmp.gt.f32.partialorder %v986, 0.0
    %vm1074 = vcmp.gt.f32.partialorder %v987, 0.0
    %vm1075 = vcmp.gt.f32.partialorder %v988, 0.0
    %vm1076 = vcmp.gt.f32.partialorder %v989, 0.0
    %vm1077 = vcmp.gt.f32.partialorder %v990, 0.0
    %vm1078 = vcmp.gt.f32.partialorder %v991, 0.0
    %vm1079 = vcmp.gt.f32.partialorder %v992, 0.0
    %vm1080 = vcmp.gt.f32.partialorder %v993, 0.0
    %vm1081 = vcmp.gt.f32.partialorder %v994, 0.0
    %vm1082 = vcmp.gt.f32.partialorder %v995, 0.0
    %vm1083 = vcmp.gt.f32.partialorder %v996, 0.0
    %vm1084 = vcmp.gt.f32.partialorder %v997, 0.0
    %vm1085 = vcmp.gt.f32.partialorder %v998, 0.0
    %vm1086 = vcmp.gt.f32.partialorder %v999, 0.0
    %vm1087 = vcmp.gt.f32.partialorder %v1000, 0.0
    %vm1088 = vcmp.gt.f32.partialorder %v1001, 0.0
    %vm1089 = vcmp.gt.f32.partialorder %v1002, 0.0
    %vm1090 = vcmp.gt.f32.partialorder %v1003, 0.0
    %vm1091 = vcmp.gt.f32.partialorder %v1004, 0.0
    %vm1092 = vcmp.gt.f32.partialorder %v1005, 0.0
    %vm1093 = vcmp.gt.f32.partialorder %v1006, 0.0
    %vm1094 = vcmp.gt.f32.partialorder %v1007, 0.0
    %vm1095 = vcmp.gt.f32.partialorder %v1008, 0.0
    %vm1096 = vcmp.gt.f32.partialorder %v1009, 0.0
    %vm1097 = vcmp.gt.f32.partialorder %v1010, 0.0
    %vm1098 = vcmp.gt.f32.partialorder %v1011, 0.0
    %vm1099 = vcmp.gt.f32.partialorder %v1012, 0.0
    %vm1100 = vcmp.gt.f32.partialorder %v1013, 0.0
    %vm1101 = vcmp.gt.f32.partialorder %v1014, 0.0
    %vm1102 = vcmp.gt.f32.partialorder %v1015, 0.0
    %vm1103 = vcmp.gt.f32.partialorder %v1016, 0.0
    %vm1104 = vcmp.gt.f32.partialorder %v1017, 0.0
    %vm1105 = vcmp.gt.f32.partialorder %v1018, 0.0
    %vm1106 = vcmp.gt.f32.partialorder %v1019, 0.0
    %vm1107 = vcmp.gt.f32.partialorder %v1020, 0.0
    %vm1108 = vcmp.gt.f32.partialorder %v1021, 0.0
    %vm1109 = vcmp.gt.f32.partialorder %v1022, 0.0
    %vm1110 = vcmp.gt.f32.partialorder %v1023, 0.0
    %vm1111 = vcmp.gt.f32.partialorder %v1024, 0.0
    %v1112 = vmul.f32 %v938, -0.153
    %v1113 = vmul.f32 %v939, -0.153
    %v1114 = vmul.f32 %v940, -0.153
    %v1115 = vmul.f32 %v941, -0.153
    %v1116 = vmul.f32 %v942, -0.153
    %v1117 = vmul.f32 %v943, -0.153
    %v1118 = vmul.f32 %v944, -0.153
    %v1119 = vmul.f32 %v945, -0.153
    %v1120 = vmul.f32 %v946, -0.153
    %v1121 = vmul.f32 %v947, -0.153
    %v1122 = vmul.f32 %v948, -0.153
    %v1123 = vmul.f32 %v949, -0.153
    %v1124 = vmul.f32 %v950, -0.153
    %v1125 = vmul.f32 %v951, -0.153
    %v1126 = vmul.f32 %v952, -0.153
    %v1127 = vmul.f32 %v953, -0.153
    %v1128 = vmul.f32 %v954, -0.153
    %v1129 = vmul.f32 %v955, -0.153
    %v1130 = vmul.f32 %v956, -0.153
    %v1131 = vmul.f32 %v957, -0.153
    %v1132 = vmul.f32 %v958, -0.153
    %v1133 = vmul.f32 %v959, -0.153
    %v1134 = vmul.f32 %v960, -0.153
    %v1135 = vmul.f32 %v961, -0.153
    %v1136 = vmul.f32 %v962, -0.153
    %v1137 = vmul.f32 %v963, -0.153
    %v1138 = vmul.f32 %v964, -0.153
    %v1139 = vmul.f32 %v965, -0.153
    %v1140 = vmul.f32 %v966, -0.153
    %v1141 = vmul.f32 %v967, -0.153
    %v1142 = vmul.f32 %v968, -0.153
    %v1143 = vmul.f32 %v969, -0.153
    %v1144 = vmul.f32 %v970, -0.153
    %v1145 = vmul.f32 %v971, -0.153
    %v1146 = vmul.f32 %v972, -0.153
    %v1147 = vmul.f32 %v973, -0.153
    %v1148 = vmul.f32 %v974, -0.153
    %v1149 = vmul.f32 %v975, -0.153
    %v1150 = vmul.f32 %v976, -0.153
    %v1151 = vmul.f32 %v977, -0.153
    %v1152 = vmul.f32 %v978, -0.153
    %v1153 = vmul.f32 %v979, -0.153
    %v1154 = vmul.f32 %v980, -0.153
    %v1155 = vmul.f32 %v981, -0.153
    %v1156 = vmul.f32 %v982, -0.153
    %v1157 = vmul.f32 %v983, -0.153
    %v1158 = vmul.f32 %v984, -0.153
    %v1159 = vmul.f32 %v985, -0.153
    %v1160 = vmul.f32 %v986, -0.153
    %v1161 = vmul.f32 %v987, -0.153
    %v1162 = vmul.f32 %v988, -0.153
    %v1163 = vmul.f32 %v989, -0.153
    %v1164 = vmul.f32 %v990, -0.153
    %v1165 = vmul.f32 %v991, -0.153
    %v1166 = vmul.f32 %v992, -0.153
    %v1167 = vmul.f32 %v993, -0.153
    %v1168 = vmul.f32 %v994, -0.153
    %v1169 = vmul.f32 %v995, -0.153
    %v1170 = vmul.f32 %v996, -0.153
    %v1171 = vmul.f32 %v997, -0.153
    %v1172 = vmul.f32 %v998, -0.153
    %v1173 = vmul.f32 %v999, -0.153
    %v1174 = vmul.f32 %v1000, -0.153
    %v1175 = vmul.f32 %v1001, -0.153
    %v1176 = vmul.f32 %v1002, -0.153
    %v1177 = vmul.f32 %v1003, -0.153
    %v1178 = vmul.f32 %v1004, -0.153
    %v1179 = vmul.f32 %v1005, -0.153
    %v1180 = vmul.f32 %v1006, -0.153
    %v1181 = vmul.f32 %v1007, -0.153
    %v1182 = vmul.f32 %v1008, -0.153
    %v1183 = vmul.f32 %v1009, -0.153
    %v1184 = vmul.f32 %v1010, -0.153
    %v1185 = vmul.f32 %v1011, -0.153
    %v1186 = vmul.f32 %v1012, -0.153
    %v1187 = vmul.f32 %v1013, -0.153
    %v1188 = vmul.f32 %v1014, -0.153
    %v1189 = vmul.f32 %v1015, -0.153
    %v1190 = vmul.f32 %v1016, -0.153
    %v1191 = vmul.f32 %v1017, -0.153
    %v1192 = vmul.f32 %v1018, -0.153
    %v1193 = vmul.f32 %v1019, -0.153
    %v1194 = vmul.f32 %v1020, -0.153
    %v1195 = vmul.f32 %v1021, -0.153
    %v1196 = vmul.f32 %v1022, -0.153
    %v1197 = vmul.f32 %v1023, -0.153
    %v1198 = vmul.f32 %v1024, -0.153
    %v1199 = vsel %vm1025, %v938, %v1112
    %v1200 = vsel %vm1026, %v939, %v1113
    %v1201 = vsel %vm1027, %v940, %v1114
    %v1202 = vsel %vm1028, %v941, %v1115
    %v1203 = vsel %vm1029, %v942, %v1116
    %v1204 = vsel %vm1030, %v943, %v1117
    %v1205 = vsel %vm1031, %v944, %v1118
    %v1206 = vsel %vm1032, %v945, %v1119
    %v1207 = vsel %vm1033, %v946, %v1120
    %v1208 = vsel %vm1034, %v947, %v1121
    %v1209 = vsel %vm1035, %v948, %v1122
    %v1210 = vsel %vm1036, %v949, %v1123
    %v1211 = vsel %vm1037, %v950, %v1124
    %v1212 = vsel %vm1038, %v951, %v1125
    %v1213 = vsel %vm1039, %v952, %v1126
    %v1214 = vsel %vm1040, %v953, %v1127
    %v1215 = vsel %vm1041, %v954, %v1128
    %v1216 = vsel %vm1042, %v955, %v1129
    %v1217 = vsel %vm1043, %v956, %v1130
    %v1218 = vsel %vm1044, %v957, %v1131
    %v1219 = vsel %vm1045, %v958, %v1132
    %v1220 = vsel %vm1046, %v959, %v1133
    %v1221 = vsel %vm1047, %v960, %v1134
    %v1222 = vsel %vm1048, %v961, %v1135
    %v1223 = vsel %vm1049, %v962, %v1136
    %v1224 = vsel %vm1050, %v963, %v1137
    %v1225 = vsel %vm1051, %v964, %v1138
    %v1226 = vsel %vm1052, %v965, %v1139
    %v1227 = vsel %vm1053, %v966, %v1140
    %v1228 = vsel %vm1054, %v967, %v1141
    %v1229 = vsel %vm1055, %v968, %v1142
    %v1230 = vsel %vm1056, %v969, %v1143
    %v1231 = vsel %vm1057, %v970, %v1144
    %v1232 = vsel %vm1058, %v971, %v1145
    %v1233 = vsel %vm1059, %v972, %v1146
    %v1234 = vsel %vm1060, %v973, %v1147
    %v1235 = vsel %vm1061, %v974, %v1148
    %v1236 = vsel %vm1062, %v975, %v1149
    %v1237 = vsel %vm1063, %v976, %v1150
    %v1238 = vsel %vm1064, %v977, %v1151
    %v1239 = vsel %vm1065, %v978, %v1152
    %v1240 = vsel %vm1066, %v979, %v1153
    %v1241 = vsel %vm1067, %v980, %v1154
    %v1242 = vsel %vm1068, %v981, %v1155
    %v1243 = vsel %vm1069, %v982, %v1156
    %v1244 = vsel %vm1070, %v983, %v1157
    %v1245 = vsel %vm1071, %v984, %v1158
    %v1246 = vsel %vm1072, %v985, %v1159
    %v1247 = vsel %vm1073, %v986, %v1160
    %v1248 = vsel %vm1074, %v987, %v1161
    %v1249 = vsel %vm1075, %v988, %v1162
    %v1250 = vsel %vm1076, %v989, %v1163
    %v1251 = vsel %vm1077, %v990, %v1164
    %v1252 = vsel %vm1078, %v991, %v1165
    %v1253 = vsel %vm1079, %v992, %v1166
    %v1254 = vsel %vm1080, %v993, %v1167
    %v1255 = vsel %vm1081, %v994, %v1168
    %v1256 = vsel %vm1082, %v995, %v1169
    %v1257 = vsel %vm1083, %v996, %v1170
    %v1258 = vsel %vm1084, %v997, %v1171
    %v1259 = vsel %vm1085, %v998, %v1172
    %v1260 = vsel %vm1086, %v999, %v1173
    %v1261 = vsel %vm1087, %v1000, %v1174
    %v1262 = vsel %vm1088, %v1001, %v1175
    %v1263 = vsel %vm1089, %v1002, %v1176
    %v1264 = vsel %vm1090, %v1003, %v1177
    %v1265 = vsel %vm1091, %v1004, %v1178
    %v1266 = vsel %vm1092, %v1005, %v1179
    %v1267 = vsel %vm1093, %v1006, %v1180
    %v1268 = vsel %vm1094, %v1007, %v1181
    %v1269 = vsel %vm1095, %v1008, %v1182
    %v1270 = vsel %vm1096, %v1009, %v1183
    %v1271 = vsel %vm1097, %v1010, %v1184
    %v1272 = vsel %vm1098, %v1011, %v1185
    %v1273 = vsel %vm1099, %v1012, %v1186
    %v1274 = vsel %vm1100, %v1013, %v1187
    %v1275 = vsel %vm1101, %v1014, %v1188
    %v1276 = vsel %vm1102, %v1015, %v1189
    %v1277 = vsel %vm1103, %v1016, %v1190
    %v1278 = vsel %vm1104, %v1017, %v1191
    %v1279 = vsel %vm1105, %v1018, %v1192
    %v1280 = vsel %vm1106, %v1019, %v1193
    %v1281 = vsel %vm1107, %v1020, %v1194
    %v1282 = vsel %vm1108, %v1021, %v1195
    %v1283 = vsel %vm1109, %v1022, %v1196
    %v1284 = vsel %vm1110, %v1023, %v1197
    %v1285 = vsel %vm1111, %v1024, %v1198
    %v1288 = vcombine.low %v61, %v62
    %v1289 = vcombine.high %v61, %v62
    %v1291 = vunpack.c.l.s4 1966171168
    %v1292 = vunpack.c.0.s8 %v1291
    %v1293 = vlaneseq
    %v1294 = vshrl.u32 %v1293, 7
    %v1295 = vsub.s32 %v1292, %v1294
    %v1296 = vrot.slane %v1288, %v1295
    %v1298 = vunpack.c.l.s4 1966171168
    %v1299 = vunpack.c.0.s8 %v1298
    %v1300 = vlaneseq
    %v1301 = vshrl.u32 %v1300, 7
    %v1302 = vsub.s32 %v1299, %v1301
    %v1303 = vrot.slane %v1289, %v1302
    %v1304 = vcombine.high %v1296, %v1296
    %v1305 = vcombine.high %v1303, %v1303
    %v1307 = vunpack.c.l.s4 1966171168
    %v1308 = vunpack.c.0.s8 %v1307
    %v1309 = vlaneseq
    %v1310 = vshrl.u32 %v1309, 7
    %v1311 = vsub.s32 %v1308, %v1310
    %v1312 = vrot.slane %v1296, %v1311
    %v1314 = vunpack.c.l.s4 1966171168
    %v1315 = vunpack.c.0.s8 %v1314
    %v1316 = vlaneseq
    %v1317 = vshrl.u32 %v1316, 7
    %v1318 = vsub.s32 %v1315, %v1317
    %v1319 = vrot.slane %v1303, %v1318
    %v1321 = vunpack.c.l.s4 1966171168
    %v1322 = vunpack.c.0.s8 %v1321
    %v1323 = vlaneseq
    %v1324 = vshrl.u32 %v1323, 7
    %v1325 = vsub.s32 %v1322, %v1324
    %v1326 = vrot.slane %v1304, %v1325
    %v1328 = vunpack.c.l.s4 1966171168
    %v1329 = vunpack.c.0.s8 %v1328
    %v1330 = vlaneseq
    %v1331 = vshrl.u32 %v1330, 7
    %v1332 = vsub.s32 %v1329, %v1331
    %v1333 = vrot.slane %v1305, %v1332
    %v1334 = vcombine.high %v1312, %v1312
    %v1335 = vcombine.high %v1319, %v1319
    %v1336 = vcombine.high %v1326, %v1326
    %v1337 = vcombine.high %v1333, %v1333
    %v1346 = vmul.f32 %v1199, %v1312
    %v1347 = vmul.f32 %v1200, %v1326
    %v1348 = vmul.f32 %v1201, %v1334
    %v1349 = vmul.f32 %v1202, %v1336
    %v1350 = vmul.f32 %v1203, %v1319
    %v1351 = vmul.f32 %v1204, %v1333
    %v1352 = vmul.f32 %v1205, %v1335
    %v1353 = vmul.f32 %v1206, %v1337
    %v1354 = vmul.f32 %v1207, %v1312
    %v1355 = vmul.f32 %v1208, %v1326
    %v1356 = vmul.f32 %v1209, %v1334
    %v1357 = vmul.f32 %v1210, %v1336
    %v1358 = vmul.f32 %v1211, %v1319
    %v1359 = vmul.f32 %v1212, %v1333
    %v1360 = vmul.f32 %v1213, %v1335
    %v1361 = vmul.f32 %v1214, %v1337
    %v1362 = vmul.f32 %v1215, %v1312
    %v1363 = vmul.f32 %v1216, %v1326
    %v1364 = vmul.f32 %v1217, %v1334
    %v1365 = vmul.f32 %v1218, %v1336
    %v1366 = vmul.f32 %v1219, %v1319
    %v1367 = vmul.f32 %v1220, %v1333
    %v1368 = vmul.f32 %v1221, %v1335
    %v1369 = vmul.f32 %v1222, %v1337
    %v1370 = vmul.f32 %v1223, %v1312
    %v1371 = vmul.f32 %v1224, %v1326
    %v1372 = vmul.f32 %v1225, %v1334
    %v1373 = vmul.f32 %v1226, %v1336
    %v1374 = vmul.f32 %v1227, %v1319
    %v1375 = vmul.f32 %v1228, %v1333
    %v1376 = vmul.f32 %v1229, %v1335
    %v1377 = vmul.f32 %v1230, %v1337
    %v1378 = vmul.f32 %v1231, %v1312
    %v1379 = vmul.f32 %v1232, %v1326
    %v1380 = vmul.f32 %v1233, %v1334
    %v1381 = vmul.f32 %v1234, %v1336
    %v1382 = vmul.f32 %v1235, %v1319
    %v1383 = vmul.f32 %v1236, %v1333
    %v1384 = vmul.f32 %v1237, %v1335
    %v1385 = vmul.f32 %v1238, %v1337
    %v1386 = vmul.f32 %v1239, %v1312
    %v1387 = vmul.f32 %v1240, %v1326
    %v1388 = vmul.f32 %v1241, %v1334
    %v1389 = vmul.f32 %v1242, %v1336
    %v1390 = vmul.f32 %v1243, %v1319
    %v1391 = vmul.f32 %v1244, %v1333
    %v1392 = vmul.f32 %v1245, %v1335
    %v1393 = vmul.f32 %v1246, %v1337
    %v1394 = vmul.f32 %v1247, %v1312
    %v1395 = vmul.f32 %v1248, %v1326
    %v1396 = vmul.f32 %v1249, %v1334
    %v1397 = vmul.f32 %v1250, %v1336
    %v1398 = vmul.f32 %v1251, %v1319
    %v1399 = vmul.f32 %v1252, %v1333
    %v1400 = vmul.f32 %v1253, %v1335
    %v1401 = vmul.f32 %v1254, %v1337
    %v1402 = vmul.f32 %v1255, %v1312
    %v1403 = vmul.f32 %v1256, %v1326
    %v1404 = vmul.f32 %v1257, %v1334
    %v1405 = vmul.f32 %v1258, %v1336
    %v1406 = vmul.f32 %v1259, %v1319
    %v1407 = vmul.f32 %v1260, %v1333
    %v1408 = vmul.f32 %v1261, %v1335
    %v1409 = vmul.f32 %v1262, %v1337
    %v1410 = vmul.f32 %v1263, %v1312
    %v1411 = vmul.f32 %v1264, %v1326
    %v1412 = vmul.f32 %v1265, %v1334
    %v1413 = vmul.f32 %v1266, %v1336
    %v1414 = vmul.f32 %v1267, %v1319
    %v1415 = vmul.f32 %v1268, %v1333
    %v1416 = vmul.f32 %v1269, %v1335
    %v1417 = vmul.f32 %v1270, %v1337
    %v1418 = vmul.f32 %v1271, %v1312
    %v1419 = vmul.f32 %v1272, %v1326
    %v1420 = vmul.f32 %v1273, %v1334
    %v1421 = vmul.f32 %v1274, %v1336
    %v1422 = vmul.f32 %v1275, %v1319
    %v1423 = vmul.f32 %v1276, %v1333
    %v1424 = vmul.f32 %v1277, %v1335
    %v1425 = vmul.f32 %v1278, %v1337
    %v1426 = vmul.f32 %v1279, %v1312
    %v1427 = vmul.f32 %v1280, %v1326
    %v1428 = vmul.f32 %v1281, %v1334
    %v1429 = vmul.f32 %v1282, %v1336
    %v1430 = vmul.f32 %v1283, %v1319
    %v1431 = vmul.f32 %v1284, %v1333
    %v1432 = vmul.f32 %v1285, %v1335
    %v1520 = vcombine.low %v1346, %v1347
    %v1521 = vcombine.low %v1348, %v1349
    %v1522 = vcombine.low %v1350, %v1351
    %v1523 = vcombine.low %v1352, %v1353
    %v1525 = vunpack.c.l.s4 1966171168
    %v1526 = vunpack.c.0.s8 %v1525
    %v1527 = vlaneseq
    %v1528 = vshrl.u32 %v1527, 7
    %v1529 = vsub.s32 %v1526, %v1528
    %v1530 = vrot.slane %v1520, %v1529
    %v1532 = vunpack.c.l.s4 1966171168
    %v1533 = vunpack.c.0.s8 %v1532
    %v1534 = vlaneseq
    %v1535 = vshrl.u32 %v1534, 7
    %v1536 = vsub.s32 %v1533, %v1535
    %v1537 = vrot.slane %v1521, %v1536
    %v1539 = vunpack.c.l.s4 1966171168
    %v1540 = vunpack.c.0.s8 %v1539
    %v1541 = vlaneseq
    %v1542 = vshrl.u32 %v1541, 7
    %v1543 = vsub.s32 %v1540, %v1542
    %v1544 = vrot.slane %v1522, %v1543
    %v1546 = vunpack.c.l.s4 1966171168
    %v1547 = vunpack.c.0.s8 %v1546
    %v1548 = vlaneseq
    %v1549 = vshrl.u32 %v1548, 7
    %v1550 = vsub.s32 %v1547, %v1549
    %v1551 = vrot.slane %v1523, %v1550
    %v1552 = vcombine.low %v1530, %v1537
    %v1553 = vcombine.high %v1530, %v1537
    %v1554 = vcombine.low %v1544, %v1551
    %v1555 = vcombine.high %v1544, %v1551
    %v1557 = vunpack.c.l.s4 1966171168
    %v1558 = vunpack.c.0.s8 %v1557
    %v1559 = vlaneseq
    %v1560 = vshrl.u32 %v1559, 7
    %v1561 = vsub.s32 %v1558, %v1560
    %v1562 = vrot.slane %v1552, %v1561
    %v1564 = vunpack.c.l.s4 1966171168
    %v1565 = vunpack.c.0.s8 %v1564
    %v1566 = vlaneseq
    %v1567 = vshrl.u32 %v1566, 7
    %v1568 = vsub.s32 %v1565, %v1567
    %v1569 = vrot.slane %v1553, %v1568
    %v1571 = vunpack.c.l.s4 1966171168
    %v1572 = vunpack.c.0.s8 %v1571
    %v1573 = vlaneseq
    %v1574 = vshrl.u32 %v1573, 7
    %v1575 = vsub.s32 %v1572, %v1574
    %v1576 = vrot.slane %v1554, %v1575
    %v1578 = vunpack.c.l.s4 1966171168
    %v1579 = vunpack.c.0.s8 %v1578
    %v1580 = vlaneseq
    %v1581 = vshrl.u32 %v1580, 7
    %v1582 = vsub.s32 %v1579, %v1581
    %v1583 = vrot.slane %v1555, %v1582
    %v1584 = vcombine.low %v1562, %v1576
    %v1585 = vcombine.low %v1569, %v1583
    %v1586 = vcombine.low %v1354, %v1355
    %v1587 = vcombine.low %v1356, %v1357
    %v1588 = vcombine.low %v1358, %v1359
    %v1589 = vcombine.low %v1360, %v1361
    %v1591 = vunpack.c.l.s4 1966171168
    %v1592 = vunpack.c.0.s8 %v1591
    %v1593 = vlaneseq
    %v1594 = vshrl.u32 %v1593, 7
    %v1595 = vsub.s32 %v1592, %v1594
    %v1596 = vrot.slane %v1586, %v1595
    %v1598 = vunpack.c.l.s4 1966171168
    %v1599 = vunpack.c.0.s8 %v1598
    %v1600 = vlaneseq
    %v1601 = vshrl.u32 %v1600, 7
    %v1602 = vsub.s32 %v1599, %v1601
    %v1603 = vrot.slane %v1587, %v1602
    %v1605 = vunpack.c.l.s4 1966171168
    %v1606 = vunpack.c.0.s8 %v1605
    %v1607 = vlaneseq
    %v1608 = vshrl.u32 %v1607, 7
    %v1609 = vsub.s32 %v1606, %v1608
    %v1610 = vrot.slane %v1588, %v1609
    %v1612 = vunpack.c.l.s4 1966171168
    %v1613 = vunpack.c.0.s8 %v1612
    %v1614 = vlaneseq
    %v1615 = vshrl.u32 %v1614, 7
    %v1616 = vsub.s32 %v1613, %v1615
    %v1617 = vrot.slane %v1589, %v1616
    %v1618 = vcombine.low %v1596, %v1603
    %v1619 = vcombine.high %v1596, %v1603
    %v1620 = vcombine.low %v1610, %v1617
    %v1621 = vcombine.high %v1610, %v1617
    %v1623 = vunpack.c.l.s4 1966171168
    %v1624 = vunpack.c.0.s8 %v1623
    %v1625 = vlaneseq
    %v1626 = vshrl.u32 %v1625, 7
    %v1627 = vsub.s32 %v1624, %v1626
    %v1628 = vrot.slane %v1618, %v1627
    %v1630 = vunpack.c.l.s4 1966171168
    %v1631 = vunpack.c.0.s8 %v1630
    %v1632 = vlaneseq
    %v1633 = vshrl.u32 %v1632, 7
    %v1634 = vsub.s32 %v1631, %v1633
    %v1635 = vrot.slane %v1619, %v1634
    %v1637 = vunpack.c.l.s4 1966171168
    %v1638 = vunpack.c.0.s8 %v1637
    %v1639 = vlaneseq
    %v1640 = vshrl.u32 %v1639, 7
    %v1641 = vsub.s32 %v1638, %v1640
    %v1642 = vrot.slane %v1620, %v1641
    %v1644 = vunpack.c.l.s4 1966171168
    %v1645 = vunpack.c.0.s8 %v1644
    %v1646 = vlaneseq
    %v1647 = vshrl.u32 %v1646, 7
    %v1648 = vsub.s32 %v1645, %v1647
    %v1649 = vrot.slane %v1621, %v1648
    %v1650 = vcombine.low %v1628, %v1642
    %v1651 = vcombine.low %v1635, %v1649
    %v1652 = vcombine.low %v1362, %v1363
    %v1653 = vcombine.low %v1364, %v1365
    %v1654 = vcombine.low %v1366, %v1367
    %v1655 = vcombine.low %v1368, %v1369
    %v1657 = vunpack.c.l.s4 1966171168
    %v1658 = vunpack.c.0.s8 %v1657
    %v1659 = vlaneseq
    %v1660 = vshrl.u32 %v1659, 7
    %v1661 = vsub.s32 %v1658, %v1660
    %v1662 = vrot.slane %v1652, %v1661
    %v1664 = vunpack.c.l.s4 1966171168
    %v1665 = vunpack.c.0.s8 %v1664
    %v1666 = vlaneseq
    %v1667 = vshrl.u32 %v1666, 7
    %v1668 = vsub.s32 %v1665, %v1667
    %v1669 = vrot.slane %v1653, %v1668
    %v1671 = vunpack.c.l.s4 1966171168
    %v1672 = vunpack.c.0.s8 %v1671
    %v1673 = vlaneseq
    %v1674 = vshrl.u32 %v1673, 7
    %v1675 = vsub.s32 %v1672, %v1674
    %v1676 = vrot.slane %v1654, %v1675
    %v1678 = vunpack.c.l.s4 1966171168
    %v1679 = vunpack.c.0.s8 %v1678
    %v1680 = vlaneseq
    %v1681 = vshrl.u32 %v1680, 7
    %v1682 = vsub.s32 %v1679, %v1681
    %v1683 = vrot.slane %v1655, %v1682
    %v1684 = vcombine.low %v1662, %v1669
    %v1685 = vcombine.high %v1662, %v1669
    %v1686 = vcombine.low %v1676, %v1683
    %v1687 = vcombine.high %v1676, %v1683
    %v1689 = vunpack.c.l.s4 1966171168
    %v1690 = vunpack.c.0.s8 %v1689
    %v1691 = vlaneseq
    %v1692 = vshrl.u32 %v1691, 7
    %v1693 = vsub.s32 %v1690, %v1692
    %v1694 = vrot.slane %v1684, %v1693
    %v1696 = vunpack.c.l.s4 1966171168
    %v1697 = vunpack.c.0.s8 %v1696
    %v1698 = vlaneseq
    %v1699 = vshrl.u32 %v1698, 7
    %v1700 = vsub.s32 %v1697, %v1699
    %v1701 = vrot.slane %v1685, %v1700
    %v1703 = vunpack.c.l.s4 1966171168
    %v1704 = vunpack.c.0.s8 %v1703
    %v1705 = vlaneseq
    %v1706 = vshrl.u32 %v1705, 7
    %v1707 = vsub.s32 %v1704, %v1706
    %v1708 = vrot.slane %v1686, %v1707
    %v1710 = vunpack.c.l.s4 1966171168
    %v1711 = vunpack.c.0.s8 %v1710
    %v1712 = vlaneseq
    %v1713 = vshrl.u32 %v1712, 7
    %v1714 = vsub.s32 %v1711, %v1713
    %v1715 = vrot.slane %v1687, %v1714
    %v1716 = vcombine.low %v1694, %v1708
    %v1717 = vcombine.low %v1701, %v1715
    %v1718 = vcombine.low %v1370, %v1371
    %v1719 = vcombine.low %v1372, %v1373
    %v1720 = vcombine.low %v1374, %v1375
    %v1721 = vcombine.low %v1376, %v1377
    %v1723 = vunpack.c.l.s4 1966171168
    %v1724 = vunpack.c.0.s8 %v1723
    %v1725 = vlaneseq
    %v1726 = vshrl.u32 %v1725, 7
    %v1727 = vsub.s32 %v1724, %v1726
    %v1728 = vrot.slane %v1718, %v1727
    %v1730 = vunpack.c.l.s4 1966171168
    %v1731 = vunpack.c.0.s8 %v1730
    %v1732 = vlaneseq
    %v1733 = vshrl.u32 %v1732, 7
    %v1734 = vsub.s32 %v1731, %v1733
    %v1735 = vrot.slane %v1719, %v1734
    %v1737 = vunpack.c.l.s4 1966171168
    %v1738 = vunpack.c.0.s8 %v1737
    %v1739 = vlaneseq
    %v1740 = vshrl.u32 %v1739, 7
    %v1741 = vsub.s32 %v1738, %v1740
    %v1742 = vrot.slane %v1720, %v1741
    %v1744 = vunpack.c.l.s4 1966171168
    %v1745 = vunpack.c.0.s8 %v1744
    %v1746 = vlaneseq
    %v1747 = vshrl.u32 %v1746, 7
    %v1748 = vsub.s32 %v1745, %v1747
    %v1749 = vrot.slane %v1721, %v1748
    %v1750 = vcombine.low %v1728, %v1735
    %v1751 = vcombine.high %v1728, %v1735
    %v1752 = vcombine.low %v1742, %v1749
    %v1753 = vcombine.high %v1742, %v1749
    %v1755 = vunpack.c.l.s4 1966171168
    %v1756 = vunpack.c.0.s8 %v1755
    %v1757 = vlaneseq
    %v1758 = vshrl.u32 %v1757, 7
    %v1759 = vsub.s32 %v1756, %v1758
    %v1760 = vrot.slane %v1750, %v1759
    %v1762 = vunpack.c.l.s4 1966171168
    %v1763 = vunpack.c.0.s8 %v1762
    %v1764 = vlaneseq
    %v1765 = vshrl.u32 %v1764, 7
    %v1766 = vsub.s32 %v1763, %v1765
    %v1767 = vrot.slane %v1751, %v1766
    %v1769 = vunpack.c.l.s4 1966171168
    %v1770 = vunpack.c.0.s8 %v1769
    %v1771 = vlaneseq
    %v1772 = vshrl.u32 %v1771, 7
    %v1773 = vsub.s32 %v1770, %v1772
    %v1774 = vrot.slane %v1752, %v1773
    %v1776 = vunpack.c.l.s4 1966171168
    %v1777 = vunpack.c.0.s8 %v1776
    %v1778 = vlaneseq
    %v1779 = vshrl.u32 %v1778, 7
    %v1780 = vsub.s32 %v1777, %v1779
    %v1781 = vrot.slane %v1753, %v1780
    %v1782 = vcombine.low %v1760, %v1774
    %v1783 = vcombine.low %v1767, %v1781
    %v1784 = vcombine.low %v1378, %v1379
    %v1785 = vcombine.low %v1380, %v1381
    %v1786 = vcombine.low %v1382, %v1383
    %v1787 = vcombine.low %v1384, %v1385
    %v1789 = vunpack.c.l.s4 1966171168
    %v1790 = vunpack.c.0.s8 %v1789
    %v1791 = vlaneseq
    %v1792 = vshrl.u32 %v1791, 7
    %v1793 = vsub.s32 %v1790, %v1792
    %v1794 = vrot.slane %v1784, %v1793
    %v1796 = vunpack.c.l.s4 1966171168
    %v1797 = vunpack.c.0.s8 %v1796
    %v1798 = vlaneseq
    %v1799 = vshrl.u32 %v1798, 7
    %v1800 = vsub.s32 %v1797, %v1799
    %v1801 = vrot.slane %v1785, %v1800
    %v1803 = vunpack.c.l.s4 1966171168
    %v1804 = vunpack.c.0.s8 %v1803
    %v1805 = vlaneseq
    %v1806 = vshrl.u32 %v1805, 7
    %v1807 = vsub.s32 %v1804, %v1806
    %v1808 = vrot.slane %v1786, %v1807
    %v1810 = vunpack.c.l.s4 1966171168
    %v1811 = vunpack.c.0.s8 %v1810
    %v1812 = vlaneseq
    %v1813 = vshrl.u32 %v1812, 7
    %v1814 = vsub.s32 %v1811, %v1813
    %v1815 = vrot.slane %v1787, %v1814
    %v1816 = vcombine.low %v1794, %v1801
    %v1817 = vcombine.high %v1794, %v1801
    %v1818 = vcombine.low %v1808, %v1815
    %v1819 = vcombine.high %v1808, %v1815
    %v1821 = vunpack.c.l.s4 1966171168
    %v1822 = vunpack.c.0.s8 %v1821
    %v1823 = vlaneseq
    %v1824 = vshrl.u32 %v1823, 7
    %v1825 = vsub.s32 %v1822, %v1824
    %v1826 = vrot.slane %v1816, %v1825
    %v1828 = vunpack.c.l.s4 1966171168
    %v1829 = vunpack.c.0.s8 %v1828
    %v1830 = vlaneseq
    %v1831 = vshrl.u32 %v1830, 7
    %v1832 = vsub.s32 %v1829, %v1831
    %v1833 = vrot.slane %v1817, %v1832
    %v1835 = vunpack.c.l.s4 1966171168
    %v1836 = vunpack.c.0.s8 %v1835
    %v1837 = vlaneseq
    %v1838 = vshrl.u32 %v1837, 7
    %v1839 = vsub.s32 %v1836, %v1838
    %v1840 = vrot.slane %v1818, %v1839
    %v1842 = vunpack.c.l.s4 1966171168
    %v1843 = vunpack.c.0.s8 %v1842
    %v1844 = vlaneseq
    %v1845 = vshrl.u32 %v1844, 7
    %v1846 = vsub.s32 %v1843, %v1845
    %v1847 = vrot.slane %v1819, %v1846
    %v1848 = vcombine.low %v1826, %v1840
    %v1849 = vcombine.low %v1833, %v1847
    %v1850 = vcombine.low %v1386, %v1387
    %v1851 = vcombine.low %v1388, %v1389
    %v1852 = vcombine.low %v1390, %v1391
    %v1853 = vcombine.low %v1392, %v1393
    %v1855 = vunpack.c.l.s4 1966171168
    %v1856 = vunpack.c.0.s8 %v1855
    %v1857 = vlaneseq
    %v1858 = vshrl.u32 %v1857, 7
    %v1859 = vsub.s32 %v1856, %v1858
    %v1860 = vrot.slane %v1850, %v1859
    %v1862 = vunpack.c.l.s4 1966171168
    %v1863 = vunpack.c.0.s8 %v1862
    %v1864 = vlaneseq
    %v1865 = vshrl.u32 %v1864, 7
    %v1866 = vsub.s32 %v1863, %v1865
    %v1867 = vrot.slane %v1851, %v1866
    %v1869 = vunpack.c.l.s4 1966171168
    %v1870 = vunpack.c.0.s8 %v1869
    %v1871 = vlaneseq
    %v1872 = vshrl.u32 %v1871, 7
    %v1873 = vsub.s32 %v1870, %v1872
    %v1874 = vrot.slane %v1852, %v1873
    %v1876 = vunpack.c.l.s4 1966171168
    %v1877 = vunpack.c.0.s8 %v1876
    %v1878 = vlaneseq
    %v1879 = vshrl.u32 %v1878, 7
    %v1880 = vsub.s32 %v1877, %v1879
    %v1881 = vrot.slane %v1853, %v1880
    %v1882 = vcombine.low %v1860, %v1867
    %v1883 = vcombine.high %v1860, %v1867
    %v1884 = vcombine.low %v1874, %v1881
    %v1885 = vcombine.high %v1874, %v1881
    %v1887 = vunpack.c.l.s4 1966171168
    %v1888 = vunpack.c.0.s8 %v1887
    %v1889 = vlaneseq
    %v1890 = vshrl.u32 %v1889, 7
    %v1891 = vsub.s32 %v1888, %v1890
    %v1892 = vrot.slane %v1882, %v1891
    %v1894 = vunpack.c.l.s4 1966171168
    %v1895 = vunpack.c.0.s8 %v1894
    %v1896 = vlaneseq
    %v1897 = vshrl.u32 %v1896, 7
    %v1898 = vsub.s32 %v1895, %v1897
    %v1899 = vrot.slane %v1883, %v1898
    %v1901 = vunpack.c.l.s4 1966171168
    %v1902 = vunpack.c.0.s8 %v1901
    %v1903 = vlaneseq
    %v1904 = vshrl.u32 %v1903, 7
    %v1905 = vsub.s32 %v1902, %v1904
    %v1906 = vrot.slane %v1884, %v1905
    %v1908 = vunpack.c.l.s4 1966171168
    %v1909 = vunpack.c.0.s8 %v1908
    %v1910 = vlaneseq
    %v1911 = vshrl.u32 %v1910, 7
    %v1912 = vsub.s32 %v1909, %v1911
    %v1913 = vrot.slane %v1885, %v1912
    %v1914 = vcombine.low %v1892, %v1906
    %v1915 = vcombine.low %v1899, %v1913
    %v1916 = vcombine.low %v1394, %v1395
    %v1917 = vcombine.low %v1396, %v1397
    %v1918 = vcombine.low %v1398, %v1399
    %v1919 = vcombine.low %v1400, %v1401
    %v1921 = vunpack.c.l.s4 1966171168
    %v1922 = vunpack.c.0.s8 %v1921
    %v1923 = vlaneseq
    %v1924 = vshrl.u32 %v1923, 7
    %v1925 = vsub.s32 %v1922, %v1924
    %v1926 = vrot.slane %v1916, %v1925
    %v1928 = vunpack.c.l.s4 1966171168
    %v1929 = vunpack.c.0.s8 %v1928
    %v1930 = vlaneseq
    %v1931 = vshrl.u32 %v1930, 7
    %v1932 = vsub.s32 %v1929, %v1931
    %v1933 = vrot.slane %v1917, %v1932
    %v1935 = vunpack.c.l.s4 1966171168
    %v1936 = vunpack.c.0.s8 %v1935
    %v1937 = vlaneseq
    %v1938 = vshrl.u32 %v1937, 7
    %v1939 = vsub.s32 %v1936, %v1938
    %v1940 = vrot.slane %v1918, %v1939
    %v1942 = vunpack.c.l.s4 1966171168
    %v1943 = vunpack.c.0.s8 %v1942
    %v1944 = vlaneseq
    %v1945 = vshrl.u32 %v1944, 7
    %v1946 = vsub.s32 %v1943, %v1945
    %v1947 = vrot.slane %v1919, %v1946
    %v1948 = vcombine.low %v1926, %v1933
    %v1949 = vcombine.high %v1926, %v1933
    %v1950 = vcombine.low %v1940, %v1947
    %v1951 = vcombine.high %v1940, %v1947
    %v1953 = vunpack.c.l.s4 1966171168
    %v1954 = vunpack.c.0.s8 %v1953
    %v1955 = vlaneseq
    %v1956 = vshrl.u32 %v1955, 7
    %v1957 = vsub.s32 %v1954, %v1956
    %v1958 = vrot.slane %v1948, %v1957
    %v1960 = vunpack.c.l.s4 1966171168
    %v1961 = vunpack.c.0.s8 %v1960
    %v1962 = vlaneseq
    %v1963 = vshrl.u32 %v1962, 7
    %v1964 = vsub.s32 %v1961, %v1963
    %v1965 = vrot.slane %v1949, %v1964
    %v1967 = vunpack.c.l.s4 1966171168
    %v1968 = vunpack.c.0.s8 %v1967
    %v1969 = vlaneseq
    %v1970 = vshrl.u32 %v1969, 7
    %v1971 = vsub.s32 %v1968, %v1970
    %v1972 = vrot.slane %v1950, %v1971
    %v1974 = vunpack.c.l.s4 1966171168
    %v1975 = vunpack.c.0.s8 %v1974
    %v1976 = vlaneseq
    %v1977 = vshrl.u32 %v1976, 7
    %v1978 = vsub.s32 %v1975, %v1977
    %v1979 = vrot.slane %v1951, %v1978
    %v1980 = vcombine.low %v1958, %v1972
    %v1981 = vcombine.low %v1965, %v1979
    %v1982 = vcombine.low %v1402, %v1403
    %v1983 = vcombine.low %v1404, %v1405
    %v1984 = vcombine.low %v1406, %v1407
    %v1985 = vcombine.low %v1408, %v1409
    %v1987 = vunpack.c.l.s4 1966171168
    %v1988 = vunpack.c.0.s8 %v1987
    %v1989 = vlaneseq
    %v1990 = vshrl.u32 %v1989, 7
    %v1991 = vsub.s32 %v1988, %v1990
    %v1992 = vrot.slane %v1982, %v1991
    %v1994 = vunpack.c.l.s4 1966171168
    %v1995 = vunpack.c.0.s8 %v1994
    %v1996 = vlaneseq
    %v1997 = vshrl.u32 %v1996, 7
    %v1998 = vsub.s32 %v1995, %v1997
    %v1999 = vrot.slane %v1983, %v1998
    %v2001 = vunpack.c.l.s4 1966171168
    %v2002 = vunpack.c.0.s8 %v2001
    %v2003 = vlaneseq
    %v2004 = vshrl.u32 %v2003, 7
    %v2005 = vsub.s32 %v2002, %v2004
    %v2006 = vrot.slane %v1984, %v2005
    %v2008 = vunpack.c.l.s4 1966171168
    %v2009 = vunpack.c.0.s8 %v2008
    %v2010 = vlaneseq
    %v2011 = vshrl.u32 %v2010, 7
    %v2012 = vsub.s32 %v2009, %v2011
    %v2013 = vrot.slane %v1985, %v2012
    %v2014 = vcombine.low %v1992, %v1999
    %v2015 = vcombine.high %v1992, %v1999
    %v2016 = vcombine.low %v2006, %v2013
    %v2017 = vcombine.high %v2006, %v2013
    %v2019 = vunpack.c.l.s4 1966171168
    %v2020 = vunpack.c.0.s8 %v2019
    %v2021 = vlaneseq
    %v2022 = vshrl.u32 %v2021, 7
    %v2023 = vsub.s32 %v2020, %v2022
    %v2024 = vrot.slane %v2014, %v2023
    %v2026 = vunpack.c.l.s4 1966171168
    %v2027 = vunpack.c.0.s8 %v2026
    %v2028 = vlaneseq
    %v2029 = vshrl.u32 %v2028, 7
    %v2030 = vsub.s32 %v2027, %v2029
    %v2031 = vrot.slane %v2015, %v2030
    %v2033 = vunpack.c.l.s4 1966171168
    %v2034 = vunpack.c.0.s8 %v2033
    %v2035 = vlaneseq
    %v2036 = vshrl.u32 %v2035, 7
    %v2037 = vsub.s32 %v2034, %v2036
    %v2038 = vrot.slane %v2016, %v2037
    %v2040 = vunpack.c.l.s4 1966171168
    %v2041 = vunpack.c.0.s8 %v2040
    %v2042 = vlaneseq
    %v2043 = vshrl.u32 %v2042, 7
    %v2044 = vsub.s32 %v2041, %v2043
    %v2045 = vrot.slane %v2017, %v2044
    %v2046 = vcombine.low %v2024, %v2038
    %v2047 = vcombine.low %v2031, %v2045
    %v2048 = vcombine.low %v1410, %v1411
    %v2049 = vcombine.low %v1412, %v1413
    %v2050 = vcombine.low %v1414, %v1415
    %v2051 = vcombine.low %v1416, %v1417
    %v2053 = vunpack.c.l.s4 1966171168
    %v2054 = vunpack.c.0.s8 %v2053
    %v2055 = vlaneseq
    %v2056 = vshrl.u32 %v2055, 7
    %v2057 = vsub.s32 %v2054, %v2056
    %v2058 = vrot.slane %v2048, %v2057
    %v2060 = vunpack.c.l.s4 1966171168
    %v2061 = vunpack.c.0.s8 %v2060
    %v2062 = vlaneseq
    %v2063 = vshrl.u32 %v2062, 7
    %v2064 = vsub.s32 %v2061, %v2063
    %v2065 = vrot.slane %v2049, %v2064
    %v2067 = vunpack.c.l.s4 1966171168
    %v2068 = vunpack.c.0.s8 %v2067
    %v2069 = vlaneseq
    %v2070 = vshrl.u32 %v2069, 7
    %v2071 = vsub.s32 %v2068, %v2070
    %v2072 = vrot.slane %v2050, %v2071
    %v2074 = vunpack.c.l.s4 1966171168
    %v2075 = vunpack.c.0.s8 %v2074
    %v2076 = vlaneseq
    %v2077 = vshrl.u32 %v2076, 7
    %v2078 = vsub.s32 %v2075, %v2077
    %v2079 = vrot.slane %v2051, %v2078
    %v2080 = vcombine.low %v2058, %v2065
    %v2081 = vcombine.high %v2058, %v2065
    %v2082 = vcombine.low %v2072, %v2079
    %v2083 = vcombine.high %v2072, %v2079
    %v2085 = vunpack.c.l.s4 1966171168
    %v2086 = vunpack.c.0.s8 %v2085
    %v2087 = vlaneseq
    %v2088 = vshrl.u32 %v2087, 7
    %v2089 = vsub.s32 %v2086, %v2088
    %v2090 = vrot.slane %v2080, %v2089
    %v2092 = vunpack.c.l.s4 1966171168
    %v2093 = vunpack.c.0.s8 %v2092
    %v2094 = vlaneseq
    %v2095 = vshrl.u32 %v2094, 7
    %v2096 = vsub.s32 %v2093, %v2095
    %v2097 = vrot.slane %v2081, %v2096
    %v2099 = vunpack.c.l.s4 1966171168
    %v2100 = vunpack.c.0.s8 %v2099
    %v2101 = vlaneseq
    %v2102 = vshrl.u32 %v2101, 7
    %v2103 = vsub.s32 %v2100, %v2102
    %v2104 = vrot.slane %v2082, %v2103
    %v2106 = vunpack.c.l.s4 1966171168
    %v2107 = vunpack.c.0.s8 %v2106
    %v2108 = vlaneseq
    %v2109 = vshrl.u32 %v2108, 7
    %v2110 = vsub.s32 %v2107, %v2109
    %v2111 = vrot.slane %v2083, %v2110
    %v2112 = vcombine.low %v2090, %v2104
    %v2113 = vcombine.low %v2097, %v2111
    %v2114 = vcombine.low %v1418, %v1419
    %v2115 = vcombine.low %v1420, %v1421
    %v2116 = vcombine.low %v1422, %v1423
    %v2117 = vcombine.low %v1424, %v1425
    %v2119 = vunpack.c.l.s4 1966171168
    %v2120 = vunpack.c.0.s8 %v2119
    %v2121 = vlaneseq
    %v2122 = vshrl.u32 %v2121, 7
    %v2123 = vsub.s32 %v2120, %v2122
    %v2124 = vrot.slane %v2114, %v2123
    %v2126 = vunpack.c.l.s4 1966171168
    %v2127 = vunpack.c.0.s8 %v2126
    %v2128 = vlaneseq
    %v2129 = vshrl.u32 %v2128, 7
    %v2130 = vsub.s32 %v2127, %v2129
    %v2131 = vrot.slane %v2115, %v2130
    %v2133 = vunpack.c.l.s4 1966171168
    %v2134 = vunpack.c.0.s8 %v2133
    %v2135 = vlaneseq
    %v2136 = vshrl.u32 %v2135, 7
    %v2137 = vsub.s32 %v2134, %v2136
    %v2138 = vrot.slane %v2116, %v2137
    %v2140 = vunpack.c.l.s4 1966171168
    %v2141 = vunpack.c.0.s8 %v2140
    %v2142 = vlaneseq
    %v2143 = vshrl.u32 %v2142, 7
    %v2144 = vsub.s32 %v2141, %v2143
    %v2145 = vrot.slane %v2117, %v2144
    %v2146 = vcombine.low %v2124, %v2131
    %v2147 = vcombine.high %v2124, %v2131
    %v2148 = vcombine.low %v2138, %v2145
    %v2149 = vcombine.high %v2138, %v2145
    %v2151 = vunpack.c.l.s4 1966171168
    %v2152 = vunpack.c.0.s8 %v2151
    %v2153 = vlaneseq
    %v2154 = vshrl.u32 %v2153, 7
    %v2155 = vsub.s32 %v2152, %v2154
    %v2156 = vrot.slane %v2146, %v2155
    %v2158 = vunpack.c.l.s4 1966171168
    %v2159 = vunpack.c.0.s8 %v2158
    %v2160 = vlaneseq
    %v2161 = vshrl.u32 %v2160, 7
    %v2162 = vsub.s32 %v2159, %v2161
    %v2163 = vrot.slane %v2147, %v2162
    %v2165 = vunpack.c.l.s4 1966171168
    %v2166 = vunpack.c.0.s8 %v2165
    %v2167 = vlaneseq
    %v2168 = vshrl.u32 %v2167, 7
    %v2169 = vsub.s32 %v2166, %v2168
    %v2170 = vrot.slane %v2148, %v2169
    %v2172 = vunpack.c.l.s4 1966171168
    %v2173 = vunpack.c.0.s8 %v2172
    %v2174 = vlaneseq
    %v2175 = vshrl.u32 %v2174, 7
    %v2176 = vsub.s32 %v2173, %v2175
    %v2177 = vrot.slane %v2149, %v2176
    %v2178 = vcombine.low %v2156, %v2170
    %v2179 = vcombine.low %v2163, %v2177
    %v2180 = vcombine.low %v1426, %v1427
    %v2181 = vcombine.low %v1428, %v1429
    %v2182 = vcombine.low %v1430, %v1431
    %v2184 = vunpack.c.l.s4 1966171168
    %v2185 = vunpack.c.0.s8 %v2184
    %v2186 = vlaneseq
    %v2187 = vshrl.u32 %v2186, 7
    %v2188 = vsub.s32 %v2185, %v2187
    %v2189 = vrot.slane %v2180, %v2188
    %v2191 = vunpack.c.l.s4 1966171168
    %v2192 = vunpack.c.0.s8 %v2191
    %v2193 = vlaneseq
    %v2194 = vshrl.u32 %v2193, 7
    %v2195 = vsub.s32 %v2192, %v2194
    %v2196 = vrot.slane %v2181, %v2195
    %v2198 = vunpack.c.l.s4 1966171168
    %v2199 = vunpack.c.0.s8 %v2198
    %v2200 = vlaneseq
    %v2201 = vshrl.u32 %v2200, 7
    %v2202 = vsub.s32 %v2199, %v2201
    %v2203 = vrot.slane %v2182, %v2202
    %v2205 = vunpack.c.l.s4 1966171168
    %v2206 = vunpack.c.0.s8 %v2205
    %v2207 = vlaneseq
    %v2208 = vshrl.u32 %v2207, 7
    %v2209 = vsub.s32 %v2206, %v2208
    %v2210 = vrot.slane %v1432, %v2209
    %v2211 = vcombine.low %v2189, %v2196
    %v2212 = vcombine.high %v2189, %v2196
    %v2213 = vcombine.low %v2203, %v2210
    %v2214 = vcombine.high %v2203, %v2210
    %v2216 = vunpack.c.l.s4 1966171168
    %v2217 = vunpack.c.0.s8 %v2216
    %v2218 = vlaneseq
    %v2219 = vshrl.u32 %v2218, 7
    %v2220 = vsub.s32 %v2217, %v2219
    %v2221 = vrot.slane %v2211, %v2220
    %v2223 = vunpack.c.l.s4 1966171168
    %v2224 = vunpack.c.0.s8 %v2223
    %v2225 = vlaneseq
    %v2226 = vshrl.u32 %v2225, 7
    %v2227 = vsub.s32 %v2224, %v2226
    %v2228 = vrot.slane %v2212, %v2227
    %v2230 = vunpack.c.l.s4 1966171168
    %v2231 = vunpack.c.0.s8 %v2230
    %v2232 = vlaneseq
    %v2233 = vshrl.u32 %v2232, 7
    %v2234 = vsub.s32 %v2231, %v2233
    %v2235 = vrot.slane %v2213, %v2234
    %v2237 = vunpack.c.l.s4 1966171168
    %v2238 = vunpack.c.0.s8 %v2237
    %v2239 = vlaneseq
    %v2240 = vshrl.u32 %v2239, 7
    %v2241 = vsub.s32 %v2238, %v2240
    %v2242 = vrot.slane %v2214, %v2241
    %v2243 = vcombine.low %v2221, %v2235
    %v2244 = vcombine.low %v2228, %v2242
    %vm2267 = vcmask 130048
    %v2268 = vsel %vm2267, %v1585, 0.0
    %v2269 = vadd.f32 %v1584, %v2268
    %2270 = vadd.xlane.f32.xlu0 %v2269
    %v2271 = vpop.xlane.xlu0 %2270
    %v2272 = vsel %vm2267, %v1651, 0.0
    %v2273 = vadd.f32 %v1650, %v2272
    %2274 = vadd.xlane.f32.xlu0 %v2273
    %v2275 = vpop.xlane.xlu0 %2274
    %v2276 = vsel %vm2267, %v1717, 0.0
    %v2277 = vadd.f32 %v1716, %v2276
    %2278 = vadd.xlane.f32.xlu0 %v2277
    %v2279 = vpop.xlane.xlu0 %2278
    %v2280 = vsel %vm2267, %v1783, 0.0
    %v2281 = vadd.f32 %v1782, %v2280
    %2282 = vadd.xlane.f32.xlu0 %v2281
    %v2283 = vpop.xlane.xlu0 %2282
    %v2284 = vsel %vm2267, %v1849, 0.0
    %v2285 = vadd.f32 %v1848, %v2284
    %2286 = vadd.xlane.f32.xlu0 %v2285
    %v2287 = vpop.xlane.xlu0 %2286
    %v2288 = vsel %vm2267, %v1915, 0.0
    %v2289 = vadd.f32 %v1914, %v2288
    %2290 = vadd.xlane.f32.xlu0 %v2289
    %v2291 = vpop.xlane.xlu0 %2290
    %v2292 = vsel %vm2267, %v1981, 0.0
    %v2293 = vadd.f32 %v1980, %v2292
    %2294 = vadd.xlane.f32.xlu0 %v2293
    %v2295 = vpop.xlane.xlu0 %2294
    %v2296 = vsel %vm2267, %v2047, 0.0
    %v2297 = vadd.f32 %v2046, %v2296
    %2298 = vadd.xlane.f32.xlu0 %v2297
    %v2299 = vpop.xlane.xlu0 %2298
    %v2300 = vsel %vm2267, %v2113, 0.0
    %v2301 = vadd.f32 %v2112, %v2300
    %2302 = vadd.xlane.f32.xlu0 %v2301
    %v2303 = vpop.xlane.xlu0 %2302
    %v2304 = vsel %vm2267, %v2179, 0.0
    %v2305 = vadd.f32 %v2178, %v2304
    %2306 = vadd.xlane.f32.xlu0 %v2305
    %v2307 = vpop.xlane.xlu0 %2306
    %vm2308 = vcmask 1046528
    %v2309 = vsel %vm2308, %v2243, 0.0
    %vm2310 = vcmask 129024
    %v2311 = vsel %vm2310, %v2244, 0.0
    %v2312 = vadd.f32 %v2309, %v2311
    %2313 = vadd.xlane.f32.xlu0 %v2312
    %v2314 = vpop.xlane.xlu0 %2313
    %vm2315 = vcmask 7168
    %2316 = vst.msk [vmem:[%s2] sm:$0xff] %vm2315, %v2271
    %2317 = vst.msk [vmem:[%s2 + $0x8] sm:$0xff] %vm2315, %v2275
    %2318 = vst.msk [vmem:[%s2 + $0x10] sm:$0xff] %vm2315, %v2279
    %2319 = vst.msk [vmem:[%s2 + $0x18] sm:$0xff] %vm2315, %v2283
    %2320 = vst.msk [vmem:[%s2 + $0x20] sm:$0xff] %vm2315, %v2287
    %2321 = vst.msk [vmem:[%s2 + $0x28] sm:$0xff] %vm2315, %v2291
    %2322 = vst.msk [vmem:[%s2 + $0x30] sm:$0xff] %vm2315, %v2295
    %2323 = vst.msk [vmem:[%s2 + $0x38] sm:$0xff] %vm2315, %v2299
    %2324 = vst.msk [vmem:[%s2 + $0x40] sm:$0xff] %vm2315, %v2303
    %2325 = vst.msk [vmem:[%s2 + $0x48] sm:$0xff] %vm2315, %v2307
    %vm2326 = vcmask 6144
    %2327 = vst.msk [vmem:[%s2 + $0x50] sm:$0x7f] %vm2326, %v2314
    %v2328 = vld [vmem:[%s0] ss:$4 sm:$0x3]
    %v2329 = vld [vmem:[%s64] ss:$4 sm:$0x3]
    %v2330 = vld [vmem:[%s66] ss:$4 sm:$0x3]
    %v2331 = vld [vmem:[%s68] ss:$4 sm:$0x3]
    %v2332 = vld [vmem:[%s70] ss:$4 sm:$0x3]
    %v2333 = vld [vmem:[%s72] ss:$4 sm:$0x3]
    %v2334 = vld [vmem:[%s74] ss:$4 sm:$0x3]
    %v2335 = vld [vmem:[%s76] ss:$4 sm:$0x3]
    %v2336 = vld [vmem:[%s78] ss:$4 sm:$0x3]
    %v2337 = vld [vmem:[%s80] ss:$4 sm:$0x3]
    %v2338 = vld [vmem:[%s82] ss:$4 sm:$0x3]
    %v2339 = vld [vmem:[%s84] ss:$4 sm:$0x3]
    %v2340 = vld [vmem:[%s86] ss:$4 sm:$0x3]
    %v2341 = vld [vmem:[%s88] ss:$4 sm:$0x3]
    %v2342 = vld [vmem:[%s90] ss:$4 sm:$0x3]
    %v2343 = vld [vmem:[%s92] ss:$4 sm:$0x3]
    %v2344 = vld [vmem:[%s94] ss:$4 sm:$0x3]
    %v2345 = vld [vmem:[%s96] ss:$4 sm:$0x3]
    %v2346 = vld [vmem:[%s98] ss:$4 sm:$0x3]
    %v2347 = vld [vmem:[%s100] ss:$4 sm:$0x3]
    %v2348 = vld [vmem:[%s102] ss:$4 sm:$0x3]
    %v2349 = vld [vmem:[%s104] ss:$4 sm:$0x3]
    %v2350 = vld [vmem:[%s106] ss:$4 sm:$0x3]
    %v2351 = vld [vmem:[%s108] ss:$4 sm:$0x3]
    %v2352 = vld [vmem:[%s110] ss:$4 sm:$0x3]
    %v2353 = vld [vmem:[%s112] ss:$4 sm:$0x3]
    %v2354 = vld [vmem:[%s114] ss:$4 sm:$0x3]
    %v2355 = vld [vmem:[%s116] ss:$4 sm:$0x3]
    %v2356 = vld [vmem:[%s118] ss:$4 sm:$0x3]
    %v2357 = vld [vmem:[%s120] ss:$4 sm:$0x3]
    %v2358 = vld [vmem:[%s122] ss:$4 sm:$0x3]
    %v2359 = vld [vmem:[%s124] ss:$4 sm:$0x3]
    %v2360 = vld [vmem:[%s126] ss:$4 sm:$0x3]
    %v2361 = vld [vmem:[%s128] ss:$4 sm:$0x3]
    %v2362 = vld [vmem:[%s130] ss:$4 sm:$0x3]
    %v2363 = vld [vmem:[%s132] ss:$4 sm:$0x3]
    %v2364 = vld [vmem:[%s134] ss:$4 sm:$0x3]
    %v2365 = vld [vmem:[%s136] ss:$4 sm:$0x3]
    %v2366 = vld [vmem:[%s138] ss:$4 sm:$0x3]
    %v2367 = vld [vmem:[%s140] ss:$4 sm:$0x3]
    %v2368 = vld [vmem:[%s142] ss:$4 sm:$0x3]
    %v2369 = vld [vmem:[%s144] ss:$4 sm:$0x3]
    %v2370 = vld [vmem:[%s146] ss:$4 sm:$0x3]
    %v2371 = vld [vmem:[%s148] ss:$4 sm:$0x3]
    %v2372 = vld [vmem:[%s150] ss:$4 sm:$0x3]
    %v2373 = vld [vmem:[%s152] ss:$4 sm:$0x3]
    %v2374 = vld [vmem:[%s154] ss:$4 sm:$0x3]
    %v2375 = vld [vmem:[%s156] ss:$4 sm:$0x3]
    %v2376 = vld [vmem:[%s158] ss:$4 sm:$0x3]
    %v2377 = vld [vmem:[%s160] ss:$4 sm:$0x3]
    %v2378 = vld [vmem:[%s162] ss:$4 sm:$0x3]
    %v2379 = vld [vmem:[%s164] ss:$4 sm:$0x3]
    %v2380 = vld [vmem:[%s166] ss:$4 sm:$0x3]
    %v2381 = vld [vmem:[%s168] ss:$4 sm:$0x3]
    %v2382 = vld [vmem:[%s170] ss:$4 sm:$0x3]
    %v2383 = vld [vmem:[%s172] ss:$4 sm:$0x3]
    %v2384 = vld [vmem:[%s174] ss:$4 sm:$0x3]
    %v2385 = vld [vmem:[%s176] ss:$4 sm:$0x3]
    %v2386 = vld [vmem:[%s178] ss:$4 sm:$0x3]
    %v2387 = vld [vmem:[%s180] ss:$4 sm:$0x3]
    %v2388 = vld [vmem:[%s182] ss:$4 sm:$0x3]
    %v2389 = vld [vmem:[%s184] ss:$4 sm:$0x3]
    %v2390 = vld [vmem:[%s186] ss:$4 sm:$0x3]
    %v2391 = vld [vmem:[%s188] ss:$4 sm:$0x3]
    %v2392 = vld [vmem:[%s190] ss:$4 sm:$0x3]
    %v2393 = vld [vmem:[%s192] ss:$4 sm:$0x3]
    %v2394 = vld [vmem:[%s194] ss:$4 sm:$0x3]
    %v2395 = vld [vmem:[%s196] ss:$4 sm:$0x3]
    %v2396 = vld [vmem:[%s198] ss:$4 sm:$0x3]
    %v2397 = vld [vmem:[%s200] ss:$4 sm:$0x3]
    %v2398 = vld [vmem:[%s202] ss:$4 sm:$0x3]
    %v2399 = vld [vmem:[%s204] ss:$4 sm:$0x3]
    %v2400 = vld [vmem:[%s206] ss:$4 sm:$0x3]
    %v2401 = vld [vmem:[%s208] ss:$4 sm:$0x3]
    %v2402 = vld [vmem:[%s210] ss:$4 sm:$0x3]
    %v2403 = vld [vmem:[%s212] ss:$4 sm:$0x3]
    %v2404 = vld [vmem:[%s214] ss:$4 sm:$0x3]
    %v2405 = vld [vmem:[%s216] ss:$4 sm:$0x3]
    %v2406 = vld [vmem:[%s218] ss:$4 sm:$0x3]
    %v2407 = vld [vmem:[%s220] ss:$4 sm:$0x3]
    %v2408 = vld [vmem:[%s222] ss:$4 sm:$0x3]
    %v2409 = vld [vmem:[%s224] ss:$4 sm:$0x3]
    %v2410 = vld [vmem:[%s226] ss:$4 sm:$0x3]
    %v2411 = vld [vmem:[%s228] ss:$4 sm:$0x3]
    %v2412 = vld [vmem:[%s230] ss:$4 sm:$0x3]
    %v2413 = vld [vmem:[%s232] ss:$4 sm:$0x3]
    %v2414 = vld [vmem:[%s234] ss:$4 sm:$0x3]
    %s2415 = sld [smem:[#allocation2 + $0x1]]
    %v2416 = vstv %s2415
    %v2417 = vmul.f32 %v2328, %v2416
    %v2418 = vmul.f32 %v2329, %v2416
    %v2419 = vmul.f32 %v2330, %v2416
    %v2420 = vmul.f32 %v2331, %v2416
    %v2421 = vmul.f32 %v2332, %v2416
    %v2422 = vmul.f32 %v2333, %v2416
    %v2423 = vmul.f32 %v2334, %v2416
    %v2424 = vmul.f32 %v2335, %v2416
    %v2425 = vmul.f32 %v2336, %v2416
    %v2426 = vmul.f32 %v2337, %v2416
    %v2427 = vmul.f32 %v2338, %v2416
    %v2428 = vmul.f32 %v2339, %v2416
    %v2429 = vmul.f32 %v2340, %v2416
    %v2430 = vmul.f32 %v2341, %v2416
    %v2431 = vmul.f32 %v2342, %v2416
    %v2432 = vmul.f32 %v2343, %v2416
    %v2433 = vmul.f32 %v2344, %v2416
    %v2434 = vmul.f32 %v2345, %v2416
    %v2435 = vmul.f32 %v2346, %v2416
    %v2436 = vmul.f32 %v2347, %v2416
    %v2437 = vmul.f32 %v2348, %v2416
    %v2438 = vmul.f32 %v2349, %v2416
    %v2439 = vmul.f32 %v2350, %v2416
    %v2440 = vmul.f32 %v2351, %v2416
    %v2441 = vmul.f32 %v2352, %v2416
    %v2442 = vmul.f32 %v2353, %v2416
    %v2443 = vmul.f32 %v2354, %v2416
    %v2444 = vmul.f32 %v2355, %v2416
    %v2445 = vmul.f32 %v2356, %v2416
    %v2446 = vmul.f32 %v2357, %v2416
    %v2447 = vmul.f32 %v2358, %v2416
    %v2448 = vmul.f32 %v2359, %v2416
    %v2449 = vmul.f32 %v2360, %v2416
    %v2450 = vmul.f32 %v2361, %v2416
    %v2451 = vmul.f32 %v2362, %v2416
    %v2452 = vmul.f32 %v2363, %v2416
    %v2453 = vmul.f32 %v2364, %v2416
    %v2454 = vmul.f32 %v2365, %v2416
    %v2455 = vmul.f32 %v2366, %v2416
    %v2456 = vmul.f32 %v2367, %v2416
    %v2457 = vmul.f32 %v2368, %v2416
    %v2458 = vmul.f32 %v2369, %v2416
    %v2459 = vmul.f32 %v2370, %v2416
    %v2460 = vmul.f32 %v2371, %v2416
    %v2461 = vmul.f32 %v2372, %v2416
    %v2462 = vmul.f32 %v2373, %v2416
    %v2463 = vmul.f32 %v2374, %v2416
    %v2464 = vmul.f32 %v2375, %v2416
    %v2465 = vmul.f32 %v2376, %v2416
    %v2466 = vmul.f32 %v2377, %v2416
    %v2467 = vmul.f32 %v2378, %v2416
    %v2468 = vmul.f32 %v2379, %v2416
    %v2469 = vmul.f32 %v2380, %v2416
    %v2470 = vmul.f32 %v2381, %v2416
    %v2471 = vmul.f32 %v2382, %v2416
    %v2472 = vmul.f32 %v2383, %v2416
    %v2473 = vmul.f32 %v2384, %v2416
    %v2474 = vmul.f32 %v2385, %v2416
    %v2475 = vmul.f32 %v2386, %v2416
    %v2476 = vmul.f32 %v2387, %v2416
    %v2477 = vmul.f32 %v2388, %v2416
    %v2478 = vmul.f32 %v2389, %v2416
    %v2479 = vmul.f32 %v2390, %v2416
    %v2480 = vmul.f32 %v2391, %v2416
    %v2481 = vmul.f32 %v2392, %v2416
    %v2482 = vmul.f32 %v2393, %v2416
    %v2483 = vmul.f32 %v2394, %v2416
    %v2484 = vmul.f32 %v2395, %v2416
    %v2485 = vmul.f32 %v2396, %v2416
    %v2486 = vmul.f32 %v2397, %v2416
    %v2487 = vmul.f32 %v2398, %v2416
    %v2488 = vmul.f32 %v2399, %v2416
    %v2489 = vmul.f32 %v2400, %v2416
    %v2490 = vmul.f32 %v2401, %v2416
    %v2491 = vmul.f32 %v2402, %v2416
    %v2492 = vmul.f32 %v2403, %v2416
    %v2493 = vmul.f32 %v2404, %v2416
    %v2494 = vmul.f32 %v2405, %v2416
    %v2495 = vmul.f32 %v2406, %v2416
    %v2496 = vmul.f32 %v2407, %v2416
    %v2497 = vmul.f32 %v2408, %v2416
    %v2498 = vmul.f32 %v2409, %v2416
    %v2499 = vmul.f32 %v2410, %v2416
    %v2500 = vmul.f32 %v2411, %v2416
    %v2501 = vmul.f32 %v2412, %v2416
    %v2502 = vmul.f32 %v2413, %v2416
    %v2503 = vmul.f32 %v2414, %v2416
    %v2504 = vld [vmem:[%s325] ss:$4 sm:$0x3]
    %v2505 = vld [vmem:[%s327] ss:$4 sm:$0x3]
    %v2506 = vld [vmem:[%s329] ss:$4 sm:$0x3]
    %v2507 = vld [vmem:[%s331] ss:$4 sm:$0x3]
    %v2508 = vld [vmem:[%s333] ss:$4 sm:$0x3]
    %v2509 = vld [vmem:[%s335] ss:$4 sm:$0x3]
    %v2510 = vld [vmem:[%s337] ss:$4 sm:$0x3]
    %v2511 = vld [vmem:[%s339] ss:$4 sm:$0x3]
    %v2512 = vld [vmem:[%s341] ss:$4 sm:$0x3]
    %v2513 = vld [vmem:[%s343] ss:$4 sm:$0x3]
    %v2514 = vld [vmem:[%s345] ss:$4 sm:$0x3]
    %v2515 = vld [vmem:[%s347] ss:$4 sm:$0x3]
    %v2516 = vld [vmem:[%s349] ss:$4 sm:$0x3]
    %v2517 = vld [vmem:[%s351] ss:$4 sm:$0x3]
    %v2518 = vld [vmem:[%s353] ss:$4 sm:$0x3]
    %v2519 = vld [vmem:[%s355] ss:$4 sm:$0x3]
    %v2520 = vld [vmem:[%s357] ss:$4 sm:$0x3]
    %v2521 = vld [vmem:[%s359] ss:$4 sm:$0x3]
    %v2522 = vld [vmem:[%s361] ss:$4 sm:$0x3]
    %v2523 = vld [vmem:[%s363] ss:$4 sm:$0x3]
    %v2524 = vld [vmem:[%s365] ss:$4 sm:$0x3]
    %v2525 = vld [vmem:[%s367] ss:$4 sm:$0x3]
    %v2526 = vld [vmem:[%s369] ss:$4 sm:$0x3]
    %v2527 = vld [vmem:[%s371] ss:$4 sm:$0x3]
    %v2528 = vld [vmem:[%s373] ss:$4 sm:$0x3]
    %v2529 = vld [vmem:[%s375] ss:$4 sm:$0x3]
    %v2530 = vld [vmem:[%s377] ss:$4 sm:$0x3]
    %v2531 = vld [vmem:[%s379] ss:$4 sm:$0x3]
    %v2532 = vld [vmem:[%s381] ss:$4 sm:$0x3]
    %v2533 = vld [vmem:[%s383] ss:$4 sm:$0x3]
    %v2534 = vld [vmem:[%s385] ss:$4 sm:$0x3]
    %v2535 = vld [vmem:[%s387] ss:$4 sm:$0x3]
    %v2536 = vld [vmem:[%s389] ss:$4 sm:$0x3]
    %v2537 = vld [vmem:[%s391] ss:$4 sm:$0x3]
    %v2538 = vld [vmem:[%s393] ss:$4 sm:$0x3]
    %v2539 = vld [vmem:[%s395] ss:$4 sm:$0x3]
    %v2540 = vld [vmem:[%s397] ss:$4 sm:$0x3]
    %v2541 = vld [vmem:[%s399] ss:$4 sm:$0x3]
    %v2542 = vld [vmem:[%s401] ss:$4 sm:$0x3]
    %v2543 = vld [vmem:[%s403] ss:$4 sm:$0x3]
    %v2544 = vld [vmem:[%s405] ss:$4 sm:$0x3]
    %v2545 = vld [vmem:[%s407] ss:$4 sm:$0x3]
    %v2546 = vld [vmem:[%s409] ss:$4 sm:$0x3]
    %v2547 = vld [vmem:[%s411] ss:$4 sm:$0x3]
    %v2548 = vld [vmem:[%s413] ss:$4 sm:$0x3]
    %v2549 = vld [vmem:[%s415] ss:$4 sm:$0x3]
    %v2550 = vld [vmem:[%s417] ss:$4 sm:$0x3]
    %v2551 = vld [vmem:[%s419] ss:$4 sm:$0x3]
    %v2552 = vld [vmem:[%s421] ss:$4 sm:$0x3]
    %v2553 = vld [vmem:[%s423] ss:$4 sm:$0x3]
    %v2554 = vld [vmem:[%s425] ss:$4 sm:$0x3]
    %v2555 = vld [vmem:[%s427] ss:$4 sm:$0x3]
    %v2556 = vld [vmem:[%s429] ss:$4 sm:$0x3]
    %v2557 = vld [vmem:[%s431] ss:$4 sm:$0x3]
    %v2558 = vld [vmem:[%s433] ss:$4 sm:$0x3]
    %v2559 = vld [vmem:[%s435] ss:$4 sm:$0x3]
    %v2560 = vld [vmem:[%s437] ss:$4 sm:$0x3]
    %v2561 = vld [vmem:[%s439] ss:$4 sm:$0x3]
    %v2562 = vld [vmem:[%s441] ss:$4 sm:$0x3]
    %v2563 = vld [vmem:[%s443] ss:$4 sm:$0x3]
    %v2564 = vld [vmem:[%s445] ss:$4 sm:$0x3]
    %v2565 = vld [vmem:[%s447] ss:$4 sm:$0x3]
    %v2566 = vld [vmem:[%s449] ss:$4 sm:$0x3]
    %v2567 = vld [vmem:[%s451] ss:$4 sm:$0x3]
    %v2568 = vld [vmem:[%s453] ss:$4 sm:$0x3]
    %v2569 = vld [vmem:[%s455] ss:$4 sm:$0x3]
    %v2570 = vld [vmem:[%s457] ss:$4 sm:$0x3]
    %v2571 = vld [vmem:[%s459] ss:$4 sm:$0x3]
    %v2572 = vld [vmem:[%s461] ss:$4 sm:$0x3]
    %v2573 = vld [vmem:[%s463] ss:$4 sm:$0x3]
    %v2574 = vld [vmem:[%s465] ss:$4 sm:$0x3]
    %v2575 = vld [vmem:[%s467] ss:$4 sm:$0x3]
    %v2576 = vld [vmem:[%s469] ss:$4 sm:$0x3]
    %v2577 = vld [vmem:[%s471] ss:$4 sm:$0x3]
    %v2578 = vld [vmem:[%s473] ss:$4 sm:$0x3]
    %v2579 = vld [vmem:[%s475] ss:$4 sm:$0x3]
    %v2580 = vld [vmem:[%s477] ss:$4 sm:$0x3]
    %v2581 = vld [vmem:[%s479] ss:$4 sm:$0x3]
    %v2582 = vld [vmem:[%s481] ss:$4 sm:$0x3]
    %v2583 = vld [vmem:[%s483] ss:$4 sm:$0x3]
    %v2584 = vld [vmem:[%s485] ss:$4 sm:$0x3]
    %v2585 = vld [vmem:[%s487] ss:$4 sm:$0x3]
    %v2586 = vld [vmem:[%s489] ss:$4 sm:$0x3]
    %v2587 = vld [vmem:[%s491] ss:$4 sm:$0x3]
    %v2588 = vld [vmem:[%s493] ss:$4 sm:$0x3]
    %v2589 = vld [vmem:[%s495] ss:$4 sm:$0x3]
    %v2590 = vld [vmem:[%s497] ss:$4 sm:$0x3]
    %s2591 = sld [smem:[#allocation2 + $0x81]]
    %v2592 = vstv %s2591
    %v2593 = vmul.f32 %v2504, %v2592
    %v2594 = vmul.f32 %v2505, %v2592
    %v2595 = vmul.f32 %v2506, %v2592
    %v2596 = vmul.f32 %v2507, %v2592
    %v2597 = vmul.f32 %v2508, %v2592
    %v2598 = vmul.f32 %v2509, %v2592
    %v2599 = vmul.f32 %v2510, %v2592
    %v2600 = vmul.f32 %v2511, %v2592
    %v2601 = vmul.f32 %v2512, %v2592
    %v2602 = vmul.f32 %v2513, %v2592
    %v2603 = vmul.f32 %v2514, %v2592
    %v2604 = vmul.f32 %v2515, %v2592
    %v2605 = vmul.f32 %v2516, %v2592
    %v2606 = vmul.f32 %v2517, %v2592
    %v2607 = vmul.f32 %v2518, %v2592
    %v2608 = vmul.f32 %v2519, %v2592
    %v2609 = vmul.f32 %v2520, %v2592
    %v2610 = vmul.f32 %v2521, %v2592
    %v2611 = vmul.f32 %v2522, %v2592
    %v2612 = vmul.f32 %v2523, %v2592
    %v2613 = vmul.f32 %v2524, %v2592
    %v2614 = vmul.f32 %v2525, %v2592
    %v2615 = vmul.f32 %v2526, %v2592
    %v2616 = vmul.f32 %v2527, %v2592
    %v2617 = vmul.f32 %v2528, %v2592
    %v2618 = vmul.f32 %v2529, %v2592
    %v2619 = vmul.f32 %v2530, %v2592
    %v2620 = vmul.f32 %v2531, %v2592
    %v2621 = vmul.f32 %v2532, %v2592
    %v2622 = vmul.f32 %v2533, %v2592
    %v2623 = vmul.f32 %v2534, %v2592
    %v2624 = vmul.f32 %v2535, %v2592
    %v2625 = vmul.f32 %v2536, %v2592
    %v2626 = vmul.f32 %v2537, %v2592
    %v2627 = vmul.f32 %v2538, %v2592
    %v2628 = vmul.f32 %v2539, %v2592
    %v2629 = vmul.f32 %v2540, %v2592
    %v2630 = vmul.f32 %v2541, %v2592
    %v2631 = vmul.f32 %v2542, %v2592
    %v2632 = vmul.f32 %v2543, %v2592
    %v2633 = vmul.f32 %v2544, %v2592
    %v2634 = vmul.f32 %v2545, %v2592
    %v2635 = vmul.f32 %v2546, %v2592
    %v2636 = vmul.f32 %v2547, %v2592
    %v2637 = vmul.f32 %v2548, %v2592
    %v2638 = vmul.f32 %v2549, %v2592
    %v2639 = vmul.f32 %v2550, %v2592
    %v2640 = vmul.f32 %v2551, %v2592
    %v2641 = vmul.f32 %v2552, %v2592
    %v2642 = vmul.f32 %v2553, %v2592
    %v2643 = vmul.f32 %v2554, %v2592
    %v2644 = vmul.f32 %v2555, %v2592
    %v2645 = vmul.f32 %v2556, %v2592
    %v2646 = vmul.f32 %v2557, %v2592
    %v2647 = vmul.f32 %v2558, %v2592
    %v2648 = vmul.f32 %v2559, %v2592
    %v2649 = vmul.f32 %v2560, %v2592
    %v2650 = vmul.f32 %v2561, %v2592
    %v2651 = vmul.f32 %v2562, %v2592
    %v2652 = vmul.f32 %v2563, %v2592
    %v2653 = vmul.f32 %v2564, %v2592
    %v2654 = vmul.f32 %v2565, %v2592
    %v2655 = vmul.f32 %v2566, %v2592
    %v2656 = vmul.f32 %v2567, %v2592
    %v2657 = vmul.f32 %v2568, %v2592
    %v2658 = vmul.f32 %v2569, %v2592
    %v2659 = vmul.f32 %v2570, %v2592
    %v2660 = vmul.f32 %v2571, %v2592
    %v2661 = vmul.f32 %v2572, %v2592
    %v2662 = vmul.f32 %v2573, %v2592
    %v2663 = vmul.f32 %v2574, %v2592
    %v2664 = vmul.f32 %v2575, %v2592
    %v2665 = vmul.f32 %v2576, %v2592
    %v2666 = vmul.f32 %v2577, %v2592
    %v2667 = vmul.f32 %v2578, %v2592
    %v2668 = vmul.f32 %v2579, %v2592
    %v2669 = vmul.f32 %v2580, %v2592
    %v2670 = vmul.f32 %v2581, %v2592
    %v2671 = vmul.f32 %v2582, %v2592
    %v2672 = vmul.f32 %v2583, %v2592
    %v2673 = vmul.f32 %v2584, %v2592
    %v2674 = vmul.f32 %v2585, %v2592
    %v2675 = vmul.f32 %v2586, %v2592
    %v2676 = vmul.f32 %v2587, %v2592
    %v2677 = vmul.f32 %v2588, %v2592
    %v2678 = vmul.f32 %v2589, %v2592
    %v2679 = vmul.f32 %v2590, %v2592
    %v2680 = vadd.f32 %v2417, %v2593
    %v2681 = vadd.f32 %v2418, %v2594
    %v2682 = vadd.f32 %v2419, %v2595
    %v2683 = vadd.f32 %v2420, %v2596
    %v2684 = vadd.f32 %v2421, %v2597
    %v2685 = vadd.f32 %v2422, %v2598
    %v2686 = vadd.f32 %v2423, %v2599
    %v2687 = vadd.f32 %v2424, %v2600
    %v2688 = vadd.f32 %v2425, %v2601
    %v2689 = vadd.f32 %v2426, %v2602
    %v2690 = vadd.f32 %v2427, %v2603
    %v2691 = vadd.f32 %v2428, %v2604
    %v2692 = vadd.f32 %v2429, %v2605
    %v2693 = vadd.f32 %v2430, %v2606
    %v2694 = vadd.f32 %v2431, %v2607
    %v2695 = vadd.f32 %v2432, %v2608
    %v2696 = vadd.f32 %v2433, %v2609
    %v2697 = vadd.f32 %v2434, %v2610
    %v2698 = vadd.f32 %v2435, %v2611
    %v2699 = vadd.f32 %v2436, %v2612
    %v2700 = vadd.f32 %v2437, %v2613
    %v2701 = vadd.f32 %v2438, %v2614
    %v2702 = vadd.f32 %v2439, %v2615
    %v2703 = vadd.f32 %v2440, %v2616
    %v2704 = vadd.f32 %v2441, %v2617
    %v2705 = vadd.f32 %v2442, %v2618
    %v2706 = vadd.f32 %v2443, %v2619
    %v2707 = vadd.f32 %v2444, %v2620
    %v2708 = vadd.f32 %v2445, %v2621
    %v2709 = vadd.f32 %v2446, %v2622
    %v2710 = vadd.f32 %v2447, %v2623
    %v2711 = vadd.f32 %v2448, %v2624
    %v2712 = vadd.f32 %v2449, %v2625
    %v2713 = vadd.f32 %v2450, %v2626
    %v2714 = vadd.f32 %v2451, %v2627
    %v2715 = vadd.f32 %v2452, %v2628
    %v2716 = vadd.f32 %v2453, %v2629
    %v2717 = vadd.f32 %v2454, %v2630
    %v2718 = vadd.f32 %v2455, %v2631
    %v2719 = vadd.f32 %v2456, %v2632
    %v2720 = vadd.f32 %v2457, %v2633
    %v2721 = vadd.f32 %v2458, %v2634
    %v2722 = vadd.f32 %v2459, %v2635
    %v2723 = vadd.f32 %v2460, %v2636
    %v2724 = vadd.f32 %v2461, %v2637
    %v2725 = vadd.f32 %v2462, %v2638
    %v2726 = vadd.f32 %v2463, %v2639
    %v2727 = vadd.f32 %v2464, %v2640
    %v2728 = vadd.f32 %v2465, %v2641
    %v2729 = vadd.f32 %v2466, %v2642
    %v2730 = vadd.f32 %v2467, %v2643
    %v2731 = vadd.f32 %v2468, %v2644
    %v2732 = vadd.f32 %v2469, %v2645
    %v2733 = vadd.f32 %v2470, %v2646
    %v2734 = vadd.f32 %v2471, %v2647
    %v2735 = vadd.f32 %v2472, %v2648
    %v2736 = vadd.f32 %v2473, %v2649
    %v2737 = vadd.f32 %v2474, %v2650
    %v2738 = vadd.f32 %v2475, %v2651
    %v2739 = vadd.f32 %v2476, %v2652
    %v2740 = vadd.f32 %v2477, %v2653
    %v2741 = vadd.f32 %v2478, %v2654
    %v2742 = vadd.f32 %v2479, %v2655
    %v2743 = vadd.f32 %v2480, %v2656
    %v2744 = vadd.f32 %v2481, %v2657
    %v2745 = vadd.f32 %v2482, %v2658
    %v2746 = vadd.f32 %v2483, %v2659
    %v2747 = vadd.f32 %v2484, %v2660
    %v2748 = vadd.f32 %v2485, %v2661
    %v2749 = vadd.f32 %v2486, %v2662
    %v2750 = vadd.f32 %v2487, %v2663
    %v2751 = vadd.f32 %v2488, %v2664
    %v2752 = vadd.f32 %v2489, %v2665
    %v2753 = vadd.f32 %v2490, %v2666
    %v2754 = vadd.f32 %v2491, %v2667
    %v2755 = vadd.f32 %v2492, %v2668
    %v2756 = vadd.f32 %v2493, %v2669
    %v2757 = vadd.f32 %v2494, %v2670
    %v2758 = vadd.f32 %v2495, %v2671
    %v2759 = vadd.f32 %v2496, %v2672
    %v2760 = vadd.f32 %v2497, %v2673
    %v2761 = vadd.f32 %v2498, %v2674
    %v2762 = vadd.f32 %v2499, %v2675
    %v2763 = vadd.f32 %v2500, %v2676
    %v2764 = vadd.f32 %v2501, %v2677
    %v2765 = vadd.f32 %v2502, %v2678
    %v2766 = vadd.f32 %v2503, %v2679
    %v2767 = vld [vmem:[%s675] ss:$4 sm:$0x3]
    %v2768 = vld [vmem:[%s677] ss:$4 sm:$0x3]
    %v2769 = vld [vmem:[%s679] ss:$4 sm:$0x3]
    %v2770 = vld [vmem:[%s681] ss:$4 sm:$0x3]
    %v2771 = vld [vmem:[%s683] ss:$4 sm:$0x3]
    %v2772 = vld [vmem:[%s685] ss:$4 sm:$0x3]
    %v2773 = vld [vmem:[%s687] ss:$4 sm:$0x3]
    %v2774 = vld [vmem:[%s689] ss:$4 sm:$0x3]
    %v2775 = vld [vmem:[%s691] ss:$4 sm:$0x3]
    %v2776 = vld [vmem:[%s693] ss:$4 sm:$0x3]
    %v2777 = vld [vmem:[%s695] ss:$4 sm:$0x3]
    %v2778 = vld [vmem:[%s697] ss:$4 sm:$0x3]
    %v2779 = vld [vmem:[%s699] ss:$4 sm:$0x3]
    %v2780 = vld [vmem:[%s701] ss:$4 sm:$0x3]
    %v2781 = vld [vmem:[%s703] ss:$4 sm:$0x3]
    %v2782 = vld [vmem:[%s705] ss:$4 sm:$0x3]
    %v2783 = vld [vmem:[%s707] ss:$4 sm:$0x3]
    %v2784 = vld [vmem:[%s709] ss:$4 sm:$0x3]
    %v2785 = vld [vmem:[%s711] ss:$4 sm:$0x3]
    %v2786 = vld [vmem:[%s713] ss:$4 sm:$0x3]
    %v2787 = vld [vmem:[%s715] ss:$4 sm:$0x3]
    %v2788 = vld [vmem:[%s717] ss:$4 sm:$0x3]
    %v2789 = vld [vmem:[%s719] ss:$4 sm:$0x3]
    %v2790 = vld [vmem:[%s721] ss:$4 sm:$0x3]
    %v2791 = vld [vmem:[%s723] ss:$4 sm:$0x3]
    %v2792 = vld [vmem:[%s725] ss:$4 sm:$0x3]
    %v2793 = vld [vmem:[%s727] ss:$4 sm:$0x3]
    %v2794 = vld [vmem:[%s729] ss:$4 sm:$0x3]
    %v2795 = vld [vmem:[%s731] ss:$4 sm:$0x3]
    %v2796 = vld [vmem:[%s733] ss:$4 sm:$0x3]
    %v2797 = vld [vmem:[%s735] ss:$4 sm:$0x3]
    %v2798 = vld [vmem:[%s737] ss:$4 sm:$0x3]
    %v2799 = vld [vmem:[%s739] ss:$4 sm:$0x3]
    %v2800 = vld [vmem:[%s741] ss:$4 sm:$0x3]
    %v2801 = vld [vmem:[%s743] ss:$4 sm:$0x3]
    %v2802 = vld [vmem:[%s745] ss:$4 sm:$0x3]
    %v2803 = vld [vmem:[%s747] ss:$4 sm:$0x3]
    %v2804 = vld [vmem:[%s749] ss:$4 sm:$0x3]
    %v2805 = vld [vmem:[%s751] ss:$4 sm:$0x3]
    %v2806 = vld [vmem:[%s753] ss:$4 sm:$0x3]
    %v2807 = vld [vmem:[%s755] ss:$4 sm:$0x3]
    %v2808 = vld [vmem:[%s757] ss:$4 sm:$0x3]
    %v2809 = vld [vmem:[%s759] ss:$4 sm:$0x3]
    %v2810 = vld [vmem:[%s761] ss:$4 sm:$0x3]
    %v2811 = vld [vmem:[%s763] ss:$4 sm:$0x3]
    %v2812 = vld [vmem:[%s765] ss:$4 sm:$0x3]
    %v2813 = vld [vmem:[%s767] ss:$4 sm:$0x3]
    %v2814 = vld [vmem:[%s769] ss:$4 sm:$0x3]
    %v2815 = vld [vmem:[%s771] ss:$4 sm:$0x3]
    %v2816 = vld [vmem:[%s773] ss:$4 sm:$0x3]
    %v2817 = vld [vmem:[%s775] ss:$4 sm:$0x3]
    %v2818 = vld [vmem:[%s777] ss:$4 sm:$0x3]
    %v2819 = vld [vmem:[%s779] ss:$4 sm:$0x3]
    %v2820 = vld [vmem:[%s781] ss:$4 sm:$0x3]
    %v2821 = vld [vmem:[%s783] ss:$4 sm:$0x3]
    %v2822 = vld [vmem:[%s785] ss:$4 sm:$0x3]
    %v2823 = vld [vmem:[%s787] ss:$4 sm:$0x3]
    %v2824 = vld [vmem:[%s789] ss:$4 sm:$0x3]
    %v2825 = vld [vmem:[%s791] ss:$4 sm:$0x3]
    %v2826 = vld [vmem:[%s793] ss:$4 sm:$0x3]
    %v2827 = vld [vmem:[%s795] ss:$4 sm:$0x3]
    %v2828 = vld [vmem:[%s797] ss:$4 sm:$0x3]
    %v2829 = vld [vmem:[%s799] ss:$4 sm:$0x3]
    %v2830 = vld [vmem:[%s801] ss:$4 sm:$0x3]
    %v2831 = vld [vmem:[%s803] ss:$4 sm:$0x3]
    %v2832 = vld [vmem:[%s805] ss:$4 sm:$0x3]
    %v2833 = vld [vmem:[%s807] ss:$4 sm:$0x3]
    %v2834 = vld [vmem:[%s809] ss:$4 sm:$0x3]
    %v2835 = vld [vmem:[%s811] ss:$4 sm:$0x3]
    %v2836 = vld [vmem:[%s813] ss:$4 sm:$0x3]
    %v2837 = vld [vmem:[%s815] ss:$4 sm:$0x3]
    %v2838 = vld [vmem:[%s817] ss:$4 sm:$0x3]
    %v2839 = vld [vmem:[%s819] ss:$4 sm:$0x3]
    %v2840 = vld [vmem:[%s821] ss:$4 sm:$0x3]
    %v2841 = vld [vmem:[%s823] ss:$4 sm:$0x3]
    %v2842 = vld [vmem:[%s825] ss:$4 sm:$0x3]
    %v2843 = vld [vmem:[%s827] ss:$4 sm:$0x3]
    %v2844 = vld [vmem:[%s829] ss:$4 sm:$0x3]
    %v2845 = vld [vmem:[%s831] ss:$4 sm:$0x3]
    %v2846 = vld [vmem:[%s833] ss:$4 sm:$0x3]
    %v2847 = vld [vmem:[%s835] ss:$4 sm:$0x3]
    %v2848 = vld [vmem:[%s837] ss:$4 sm:$0x3]
    %v2849 = vld [vmem:[%s839] ss:$4 sm:$0x3]
    %v2850 = vld [vmem:[%s841] ss:$4 sm:$0x3]
    %v2851 = vld [vmem:[%s843] ss:$4 sm:$0x3]
    %v2852 = vld [vmem:[%s845] ss:$4 sm:$0x3]
    %v2853 = vld [vmem:[%s847] ss:$4 sm:$0x3]
    %s2854 = sld [smem:[#allocation2 + $0x101]]
    %v2855 = vstv %s2854
    %v2856 = vmul.f32 %v2767, %v2855
    %v2857 = vmul.f32 %v2768, %v2855
    %v2858 = vmul.f32 %v2769, %v2855
    %v2859 = vmul.f32 %v2770, %v2855
    %v2860 = vmul.f32 %v2771, %v2855
    %v2861 = vmul.f32 %v2772, %v2855
    %v2862 = vmul.f32 %v2773, %v2855
    %v2863 = vmul.f32 %v2774, %v2855
    %v2864 = vmul.f32 %v2775, %v2855
    %v2865 = vmul.f32 %v2776, %v2855
    %v2866 = vmul.f32 %v2777, %v2855
    %v2867 = vmul.f32 %v2778, %v2855
    %v2868 = vmul.f32 %v2779, %v2855
    %v2869 = vmul.f32 %v2780, %v2855
    %v2870 = vmul.f32 %v2781, %v2855
    %v2871 = vmul.f32 %v2782, %v2855
    %v2872 = vmul.f32 %v2783, %v2855
    %v2873 = vmul.f32 %v2784, %v2855
    %v2874 = vmul.f32 %v2785, %v2855
    %v2875 = vmul.f32 %v2786, %v2855
    %v2876 = vmul.f32 %v2787, %v2855
    %v2877 = vmul.f32 %v2788, %v2855
    %v2878 = vmul.f32 %v2789, %v2855
    %v2879 = vmul.f32 %v2790, %v2855
    %v2880 = vmul.f32 %v2791, %v2855
    %v2881 = vmul.f32 %v2792, %v2855
    %v2882 = vmul.f32 %v2793, %v2855
    %v2883 = vmul.f32 %v2794, %v2855
    %v2884 = vmul.f32 %v2795, %v2855
    %v2885 = vmul.f32 %v2796, %v2855
    %v2886 = vmul.f32 %v2797, %v2855
    %v2887 = vmul.f32 %v2798, %v2855
    %v2888 = vmul.f32 %v2799, %v2855
    %v2889 = vmul.f32 %v2800, %v2855
    %v2890 = vmul.f32 %v2801, %v2855
    %v2891 = vmul.f32 %v2802, %v2855
    %v2892 = vmul.f32 %v2803, %v2855
    %v2893 = vmul.f32 %v2804, %v2855
    %v2894 = vmul.f32 %v2805, %v2855
    %v2895 = vmul.f32 %v2806, %v2855
    %v2896 = vmul.f32 %v2807, %v2855
    %v2897 = vmul.f32 %v2808, %v2855
    %v2898 = vmul.f32 %v2809, %v2855
    %v2899 = vmul.f32 %v2810, %v2855
    %v2900 = vmul.f32 %v2811, %v2855
    %v2901 = vmul.f32 %v2812, %v2855
    %v2902 = vmul.f32 %v2813, %v2855
    %v2903 = vmul.f32 %v2814, %v2855
    %v2904 = vmul.f32 %v2815, %v2855
    %v2905 = vmul.f32 %v2816, %v2855
    %v2906 = vmul.f32 %v2817, %v2855
    %v2907 = vmul.f32 %v2818, %v2855
    %v2908 = vmul.f32 %v2819, %v2855
    %v2909 = vmul.f32 %v2820, %v2855
    %v2910 = vmul.f32 %v2821, %v2855
    %v2911 = vmul.f32 %v2822, %v2855
    %v2912 = vmul.f32 %v2823, %v2855
    %v2913 = vmul.f32 %v2824, %v2855
    %v2914 = vmul.f32 %v2825, %v2855
    %v2915 = vmul.f32 %v2826, %v2855
    %v2916 = vmul.f32 %v2827, %v2855
    %v2917 = vmul.f32 %v2828, %v2855
    %v2918 = vmul.f32 %v2829, %v2855
    %v2919 = vmul.f32 %v2830, %v2855
    %v2920 = vmul.f32 %v2831, %v2855
    %v2921 = vmul.f32 %v2832, %v2855
    %v2922 = vmul.f32 %v2833, %v2855
    %v2923 = vmul.f32 %v2834, %v2855
    %v2924 = vmul.f32 %v2835, %v2855
    %v2925 = vmul.f32 %v2836, %v2855
    %v2926 = vmul.f32 %v2837, %v2855
    %v2927 = vmul.f32 %v2838, %v2855
    %v2928 = vmul.f32 %v2839, %v2855
    %v2929 = vmul.f32 %v2840, %v2855
    %v2930 = vmul.f32 %v2841, %v2855
    %v2931 = vmul.f32 %v2842, %v2855
    %v2932 = vmul.f32 %v2843, %v2855
    %v2933 = vmul.f32 %v2844, %v2855
    %v2934 = vmul.f32 %v2845, %v2855
    %v2935 = vmul.f32 %v2846, %v2855
    %v2936 = vmul.f32 %v2847, %v2855
    %v2937 = vmul.f32 %v2848, %v2855
    %v2938 = vmul.f32 %v2849, %v2855
    %v2939 = vmul.f32 %v2850, %v2855
    %v2940 = vmul.f32 %v2851, %v2855
    %v2941 = vmul.f32 %v2852, %v2855
    %v2942 = vmul.f32 %v2853, %v2855
    %v2943 = vadd.f32 %v2680, %v2856
    %v2944 = vadd.f32 %v2681, %v2857
    %v2945 = vadd.f32 %v2682, %v2858
    %v2946 = vadd.f32 %v2683, %v2859
    %v2947 = vadd.f32 %v2684, %v2860
    %v2948 = vadd.f32 %v2685, %v2861
    %v2949 = vadd.f32 %v2686, %v2862
    %v2950 = vadd.f32 %v2687, %v2863
    %v2951 = vadd.f32 %v2688, %v2864
    %v2952 = vadd.f32 %v2689, %v2865
    %v2953 = vadd.f32 %v2690, %v2866
    %v2954 = vadd.f32 %v2691, %v2867
    %v2955 = vadd.f32 %v2692, %v2868
    %v2956 = vadd.f32 %v2693, %v2869
    %v2957 = vadd.f32 %v2694, %v2870
    %v2958 = vadd.f32 %v2695, %v2871
    %v2959 = vadd.f32 %v2696, %v2872
    %v2960 = vadd.f32 %v2697, %v2873
    %v2961 = vadd.f32 %v2698, %v2874
    %v2962 = vadd.f32 %v2699, %v2875
    %v2963 = vadd.f32 %v2700, %v2876
    %v2964 = vadd.f32 %v2701, %v2877
    %v2965 = vadd.f32 %v2702, %v2878
    %v2966 = vadd.f32 %v2703, %v2879
    %v2967 = vadd.f32 %v2704, %v2880
    %v2968 = vadd.f32 %v2705, %v2881
    %v2969 = vadd.f32 %v2706, %v2882
    %v2970 = vadd.f32 %v2707, %v2883
    %v2971 = vadd.f32 %v2708, %v2884
    %v2972 = vadd.f32 %v2709, %v2885
    %v2973 = vadd.f32 %v2710, %v2886
    %v2974 = vadd.f32 %v2711, %v2887
    %v2975 = vadd.f32 %v2712, %v2888
    %v2976 = vadd.f32 %v2713, %v2889
    %v2977 = vadd.f32 %v2714, %v2890
    %v2978 = vadd.f32 %v2715, %v2891
    %v2979 = vadd.f32 %v2716, %v2892
    %v2980 = vadd.f32 %v2717, %v2893
    %v2981 = vadd.f32 %v2718, %v2894
    %v2982 = vadd.f32 %v2719, %v2895
    %v2983 = vadd.f32 %v2720, %v2896
    %v2984 = vadd.f32 %v2721, %v2897
    %v2985 = vadd.f32 %v2722, %v2898
    %v2986 = vadd.f32 %v2723, %v2899
    %v2987 = vadd.f32 %v2724, %v2900
    %v2988 = vadd.f32 %v2725, %v2901
    %v2989 = vadd.f32 %v2726, %v2902
    %v2990 = vadd.f32 %v2727, %v2903
    %v2991 = vadd.f32 %v2728, %v2904
    %v2992 = vadd.f32 %v2729, %v2905
    %v2993 = vadd.f32 %v2730, %v2906
    %v2994 = vadd.f32 %v2731, %v2907
    %v2995 = vadd.f32 %v2732, %v2908
    %v2996 = vadd.f32 %v2733, %v2909
    %v2997 = vadd.f32 %v2734, %v2910
    %v2998 = vadd.f32 %v2735, %v2911
    %v2999 = vadd.f32 %v2736, %v2912
    %v3000 = vadd.f32 %v2737, %v2913
    %v3001 = vadd.f32 %v2738, %v2914
    %v3002 = vadd.f32 %v2739, %v2915
    %v3003 = vadd.f32 %v2740, %v2916
    %v3004 = vadd.f32 %v2741, %v2917
    %v3005 = vadd.f32 %v2742, %v2918
    %v3006 = vadd.f32 %v2743, %v2919
    %v3007 = vadd.f32 %v2744, %v2920
    %v3008 = vadd.f32 %v2745, %v2921
    %v3009 = vadd.f32 %v2746, %v2922
    %v3010 = vadd.f32 %v2747, %v2923
    %v3011 = vadd.f32 %v2748, %v2924
    %v3012 = vadd.f32 %v2749, %v2925
    %v3013 = vadd.f32 %v2750, %v2926
    %v3014 = vadd.f32 %v2751, %v2927
    %v3015 = vadd.f32 %v2752, %v2928
    %v3016 = vadd.f32 %v2753, %v2929
    %v3017 = vadd.f32 %v2754, %v2930
    %v3018 = vadd.f32 %v2755, %v2931
    %v3019 = vadd.f32 %v2756, %v2932
    %v3020 = vadd.f32 %v2757, %v2933
    %v3021 = vadd.f32 %v2758, %v2934
    %v3022 = vadd.f32 %v2759, %v2935
    %v3023 = vadd.f32 %v2760, %v2936
    %v3024 = vadd.f32 %v2761, %v2937
    %v3025 = vadd.f32 %v2762, %v2938
    %v3026 = vadd.f32 %v2763, %v2939
    %v3027 = vadd.f32 %v2764, %v2940
    %v3028 = vadd.f32 %v2765, %v2941
    %v3029 = vadd.f32 %v2766, %v2942
    %vm3030 = vcmp.gt.f32.partialorder %v2943, 0.0
    %vm3031 = vcmp.gt.f32.partialorder %v2944, 0.0
    %vm3032 = vcmp.gt.f32.partialorder %v2945, 0.0
    %vm3033 = vcmp.gt.f32.partialorder %v2946, 0.0
    %vm3034 = vcmp.gt.f32.partialorder %v2947, 0.0
    %vm3035 = vcmp.gt.f32.partialorder %v2948, 0.0
    %vm3036 = vcmp.gt.f32.partialorder %v2949, 0.0
    %vm3037 = vcmp.gt.f32.partialorder %v2950, 0.0
    %vm3038 = vcmp.gt.f32.partialorder %v2951, 0.0
    %vm3039 = vcmp.gt.f32.partialorder %v2952, 0.0
    %vm3040 = vcmp.gt.f32.partialorder %v2953, 0.0
    %vm3041 = vcmp.gt.f32.partialorder %v2954, 0.0
    %vm3042 = vcmp.gt.f32.partialorder %v2955, 0.0
    %vm3043 = vcmp.gt.f32.partialorder %v2956, 0.0
    %vm3044 = vcmp.gt.f32.partialorder %v2957, 0.0
    %vm3045 = vcmp.gt.f32.partialorder %v2958, 0.0
    %vm3046 = vcmp.gt.f32.partialorder %v2959, 0.0
    %vm3047 = vcmp.gt.f32.partialorder %v2960, 0.0
    %vm3048 = vcmp.gt.f32.partialorder %v2961, 0.0
    %vm3049 = vcmp.gt.f32.partialorder %v2962, 0.0
    %vm3050 = vcmp.gt.f32.partialorder %v2963, 0.0
    %vm3051 = vcmp.gt.f32.partialorder %v2964, 0.0
    %vm3052 = vcmp.gt.f32.partialorder %v2965, 0.0
    %vm3053 = vcmp.gt.f32.partialorder %v2966, 0.0
    %vm3054 = vcmp.gt.f32.partialorder %v2967, 0.0
    %vm3055 = vcmp.gt.f32.partialorder %v2968, 0.0
    %vm3056 = vcmp.gt.f32.partialorder %v2969, 0.0
    %vm3057 = vcmp.gt.f32.partialorder %v2970, 0.0
    %vm3058 = vcmp.gt.f32.partialorder %v2971, 0.0
    %vm3059 = vcmp.gt.f32.partialorder %v2972, 0.0
    %vm3060 = vcmp.gt.f32.partialorder %v2973, 0.0
    %vm3061 = vcmp.gt.f32.partialorder %v2974, 0.0
    %vm3062 = vcmp.gt.f32.partialorder %v2975, 0.0
    %vm3063 = vcmp.gt.f32.partialorder %v2976, 0.0
    %vm3064 = vcmp.gt.f32.partialorder %v2977, 0.0
    %vm3065 = vcmp.gt.f32.partialorder %v2978, 0.0
    %vm3066 = vcmp.gt.f32.partialorder %v2979, 0.0
    %vm3067 = vcmp.gt.f32.partialorder %v2980, 0.0
    %vm3068 = vcmp.gt.f32.partialorder %v2981, 0.0
    %vm3069 = vcmp.gt.f32.partialorder %v2982, 0.0
    %vm3070 = vcmp.gt.f32.partialorder %v2983, 0.0
    %vm3071 = vcmp.gt.f32.partialorder %v2984, 0.0
    %vm3072 = vcmp.gt.f32.partialorder %v2985, 0.0
    %vm3073 = vcmp.gt.f32.partialorder %v2986, 0.0
    %vm3074 = vcmp.gt.f32.partialorder %v2987, 0.0
    %vm3075 = vcmp.gt.f32.partialorder %v2988, 0.0
    %vm3076 = vcmp.gt.f32.partialorder %v2989, 0.0
    %vm3077 = vcmp.gt.f32.partialorder %v2990, 0.0
    %vm3078 = vcmp.gt.f32.partialorder %v2991, 0.0
    %vm3079 = vcmp.gt.f32.partialorder %v2992, 0.0
    %vm3080 = vcmp.gt.f32.partialorder %v2993, 0.0
    %vm3081 = vcmp.gt.f32.partialorder %v2994, 0.0
    %vm3082 = vcmp.gt.f32.partialorder %v2995, 0.0
    %vm3083 = vcmp.gt.f32.partialorder %v2996, 0.0
    %vm3084 = vcmp.gt.f32.partialorder %v2997, 0.0
    %vm3085 = vcmp.gt.f32.partialorder %v2998, 0.0
    %vm3086 = vcmp.gt.f32.partialorder %v2999, 0.0
    %vm3087 = vcmp.gt.f32.partialorder %v3000, 0.0
    %vm3088 = vcmp.gt.f32.partialorder %v3001, 0.0
    %vm3089 = vcmp.gt.f32.partialorder %v3002, 0.0
    %vm3090 = vcmp.gt.f32.partialorder %v3003, 0.0
    %vm3091 = vcmp.gt.f32.partialorder %v3004, 0.0
    %vm3092 = vcmp.gt.f32.partialorder %v3005, 0.0
    %vm3093 = vcmp.gt.f32.partialorder %v3006, 0.0
    %vm3094 = vcmp.gt.f32.partialorder %v3007, 0.0
    %vm3095 = vcmp.gt.f32.partialorder %v3008, 0.0
    %vm3096 = vcmp.gt.f32.partialorder %v3009, 0.0
    %vm3097 = vcmp.gt.f32.partialorder %v3010, 0.0
    %vm3098 = vcmp.gt.f32.partialorder %v3011, 0.0
    %vm3099 = vcmp.gt.f32.partialorder %v3012, 0.0
    %vm3100 = vcmp.gt.f32.partialorder %v3013, 0.0
    %vm3101 = vcmp.gt.f32.partialorder %v3014, 0.0
    %vm3102 = vcmp.gt.f32.partialorder %v3015, 0.0
    %vm3103 = vcmp.gt.f32.partialorder %v3016, 0.0
    %vm3104 = vcmp.gt.f32.partialorder %v3017, 0.0
    %vm3105 = vcmp.gt.f32.partialorder %v3018, 0.0
    %vm3106 = vcmp.gt.f32.partialorder %v3019, 0.0
    %vm3107 = vcmp.gt.f32.partialorder %v3020, 0.0
    %vm3108 = vcmp.gt.f32.partialorder %v3021, 0.0
    %vm3109 = vcmp.gt.f32.partialorder %v3022, 0.0
    %vm3110 = vcmp.gt.f32.partialorder %v3023, 0.0
    %vm3111 = vcmp.gt.f32.partialorder %v3024, 0.0
    %vm3112 = vcmp.gt.f32.partialorder %v3025, 0.0
    %vm3113 = vcmp.gt.f32.partialorder %v3026, 0.0
    %vm3114 = vcmp.gt.f32.partialorder %v3027, 0.0
    %vm3115 = vcmp.gt.f32.partialorder %v3028, 0.0
    %vm3116 = vcmp.gt.f32.partialorder %v3029, 0.0
    %v3117 = vmul.f32 %v2943, -0.153
    %v3118 = vmul.f32 %v2944, -0.153
    %v3119 = vmul.f32 %v2945, -0.153
    %v3120 = vmul.f32 %v2946, -0.153
    %v3121 = vmul.f32 %v2947, -0.153
    %v3122 = vmul.f32 %v2948, -0.153
    %v3123 = vmul.f32 %v2949, -0.153
    %v3124 = vmul.f32 %v2950, -0.153
    %v3125 = vmul.f32 %v2951, -0.153
    %v3126 = vmul.f32 %v2952, -0.153
    %v3127 = vmul.f32 %v2953, -0.153
    %v3128 = vmul.f32 %v2954, -0.153
    %v3129 = vmul.f32 %v2955, -0.153
    %v3130 = vmul.f32 %v2956, -0.153
    %v3131 = vmul.f32 %v2957, -0.153
    %v3132 = vmul.f32 %v2958, -0.153
    %v3133 = vmul.f32 %v2959, -0.153
    %v3134 = vmul.f32 %v2960, -0.153
    %v3135 = vmul.f32 %v2961, -0.153
    %v3136 = vmul.f32 %v2962, -0.153
    %v3137 = vmul.f32 %v2963, -0.153
    %v3138 = vmul.f32 %v2964, -0.153
    %v3139 = vmul.f32 %v2965, -0.153
    %v3140 = vmul.f32 %v2966, -0.153
    %v3141 = vmul.f32 %v2967, -0.153
    %v3142 = vmul.f32 %v2968, -0.153
    %v3143 = vmul.f32 %v2969, -0.153
    %v3144 = vmul.f32 %v2970, -0.153
    %v3145 = vmul.f32 %v2971, -0.153
    %v3146 = vmul.f32 %v2972, -0.153
    %v3147 = vmul.f32 %v2973, -0.153
    %v3148 = vmul.f32 %v2974, -0.153
    %v3149 = vmul.f32 %v2975, -0.153
    %v3150 = vmul.f32 %v2976, -0.153
    %v3151 = vmul.f32 %v2977, -0.153
    %v3152 = vmul.f32 %v2978, -0.153
    %v3153 = vmul.f32 %v2979, -0.153
    %v3154 = vmul.f32 %v2980, -0.153
    %v3155 = vmul.f32 %v2981, -0.153
    %v3156 = vmul.f32 %v2982, -0.153
    %v3157 = vmul.f32 %v2983, -0.153
    %v3158 = vmul.f32 %v2984, -0.153
    %v3159 = vmul.f32 %v2985, -0.153
    %v3160 = vmul.f32 %v2986, -0.153
    %v3161 = vmul.f32 %v2987, -0.153
    %v3162 = vmul.f32 %v2988, -0.153
    %v3163 = vmul.f32 %v2989, -0.153
    %v3164 = vmul.f32 %v2990, -0.153
    %v3165 = vmul.f32 %v2991, -0.153
    %v3166 = vmul.f32 %v2992, -0.153
    %v3167 = vmul.f32 %v2993, -0.153
    %v3168 = vmul.f32 %v2994, -0.153
    %v3169 = vmul.f32 %v2995, -0.153
    %v3170 = vmul.f32 %v2996, -0.153
    %v3171 = vmul.f32 %v2997, -0.153
    %v3172 = vmul.f32 %v2998, -0.153
    %v3173 = vmul.f32 %v2999, -0.153
    %v3174 = vmul.f32 %v3000, -0.153
    %v3175 = vmul.f32 %v3001, -0.153
    %v3176 = vmul.f32 %v3002, -0.153
    %v3177 = vmul.f32 %v3003, -0.153
    %v3178 = vmul.f32 %v3004, -0.153
    %v3179 = vmul.f32 %v3005, -0.153
    %v3180 = vmul.f32 %v3006, -0.153
    %v3181 = vmul.f32 %v3007, -0.153
    %v3182 = vmul.f32 %v3008, -0.153
    %v3183 = vmul.f32 %v3009, -0.153
    %v3184 = vmul.f32 %v3010, -0.153
    %v3185 = vmul.f32 %v3011, -0.153
    %v3186 = vmul.f32 %v3012, -0.153
    %v3187 = vmul.f32 %v3013, -0.153
    %v3188 = vmul.f32 %v3014, -0.153
    %v3189 = vmul.f32 %v3015, -0.153
    %v3190 = vmul.f32 %v3016, -0.153
    %v3191 = vmul.f32 %v3017, -0.153
    %v3192 = vmul.f32 %v3018, -0.153
    %v3193 = vmul.f32 %v3019, -0.153
    %v3194 = vmul.f32 %v3020, -0.153
    %v3195 = vmul.f32 %v3021, -0.153
    %v3196 = vmul.f32 %v3022, -0.153
    %v3197 = vmul.f32 %v3023, -0.153
    %v3198 = vmul.f32 %v3024, -0.153
    %v3199 = vmul.f32 %v3025, -0.153
    %v3200 = vmul.f32 %v3026, -0.153
    %v3201 = vmul.f32 %v3027, -0.153
    %v3202 = vmul.f32 %v3028, -0.153
    %v3203 = vmul.f32 %v3029, -0.153
    %v3204 = vsel %vm3030, %v2943, %v3117
    %v3205 = vsel %vm3031, %v2944, %v3118
    %v3206 = vsel %vm3032, %v2945, %v3119
    %v3207 = vsel %vm3033, %v2946, %v3120
    %v3208 = vsel %vm3034, %v2947, %v3121
    %v3209 = vsel %vm3035, %v2948, %v3122
    %v3210 = vsel %vm3036, %v2949, %v3123
    %v3211 = vsel %vm3037, %v2950, %v3124
    %v3212 = vsel %vm3038, %v2951, %v3125
    %v3213 = vsel %vm3039, %v2952, %v3126
    %v3214 = vsel %vm3040, %v2953, %v3127
    %v3215 = vsel %vm3041, %v2954, %v3128
    %v3216 = vsel %vm3042, %v2955, %v3129
    %v3217 = vsel %vm3043, %v2956, %v3130
    %v3218 = vsel %vm3044, %v2957, %v3131
    %v3219 = vsel %vm3045, %v2958, %v3132
    %v3220 = vsel %vm3046, %v2959, %v3133
    %v3221 = vsel %vm3047, %v2960, %v3134
    %v3222 = vsel %vm3048, %v2961, %v3135
    %v3223 = vsel %vm3049, %v2962, %v3136
    %v3224 = vsel %vm3050, %v2963, %v3137
    %v3225 = vsel %vm3051, %v2964, %v3138
    %v3226 = vsel %vm3052, %v2965, %v3139
    %v3227 = vsel %vm3053, %v2966, %v3140
    %v3228 = vsel %vm3054, %v2967, %v3141
    %v3229 = vsel %vm3055, %v2968, %v3142
    %v3230 = vsel %vm3056, %v2969, %v3143
    %v3231 = vsel %vm3057, %v2970, %v3144
    %v3232 = vsel %vm3058, %v2971, %v3145
    %v3233 = vsel %vm3059, %v2972, %v3146
    %v3234 = vsel %vm3060, %v2973, %v3147
    %v3235 = vsel %vm3061, %v2974, %v3148
    %v3236 = vsel %vm3062, %v2975, %v3149
    %v3237 = vsel %vm3063, %v2976, %v3150
    %v3238 = vsel %vm3064, %v2977, %v3151
    %v3239 = vsel %vm3065, %v2978, %v3152
    %v3240 = vsel %vm3066, %v2979, %v3153
    %v3241 = vsel %vm3067, %v2980, %v3154
    %v3242 = vsel %vm3068, %v2981, %v3155
    %v3243 = vsel %vm3069, %v2982, %v3156
    %v3244 = vsel %vm3070, %v2983, %v3157
    %v3245 = vsel %vm3071, %v2984, %v3158
    %v3246 = vsel %vm3072, %v2985, %v3159
    %v3247 = vsel %vm3073, %v2986, %v3160
    %v3248 = vsel %vm3074, %v2987, %v3161
    %v3249 = vsel %vm3075, %v2988, %v3162
    %v3250 = vsel %vm3076, %v2989, %v3163
    %v3251 = vsel %vm3077, %v2990, %v3164
    %v3252 = vsel %vm3078, %v2991, %v3165
    %v3253 = vsel %vm3079, %v2992, %v3166
    %v3254 = vsel %vm3080, %v2993, %v3167
    %v3255 = vsel %vm3081, %v2994, %v3168
    %v3256 = vsel %vm3082, %v2995, %v3169
    %v3257 = vsel %vm3083, %v2996, %v3170
    %v3258 = vsel %vm3084, %v2997, %v3171
    %v3259 = vsel %vm3085, %v2998, %v3172
    %v3260 = vsel %vm3086, %v2999, %v3173
    %v3261 = vsel %vm3087, %v3000, %v3174
    %v3262 = vsel %vm3088, %v3001, %v3175
    %v3263 = vsel %vm3089, %v3002, %v3176
    %v3264 = vsel %vm3090, %v3003, %v3177
    %v3265 = vsel %vm3091, %v3004, %v3178
    %v3266 = vsel %vm3092, %v3005, %v3179
    %v3267 = vsel %vm3093, %v3006, %v3180
    %v3268 = vsel %vm3094, %v3007, %v3181
    %v3269 = vsel %vm3095, %v3008, %v3182
    %v3270 = vsel %vm3096, %v3009, %v3183
    %v3271 = vsel %vm3097, %v3010, %v3184
    %v3272 = vsel %vm3098, %v3011, %v3185
    %v3273 = vsel %vm3099, %v3012, %v3186
    %v3274 = vsel %vm3100, %v3013, %v3187
    %v3275 = vsel %vm3101, %v3014, %v3188
    %v3276 = vsel %vm3102, %v3015, %v3189
    %v3277 = vsel %vm3103, %v3016, %v3190
    %v3278 = vsel %vm3104, %v3017, %v3191
    %v3279 = vsel %vm3105, %v3018, %v3192
    %v3280 = vsel %vm3106, %v3019, %v3193
    %v3281 = vsel %vm3107, %v3020, %v3194
    %v3282 = vsel %vm3108, %v3021, %v3195
    %v3283 = vsel %vm3109, %v3022, %v3196
    %v3284 = vsel %vm3110, %v3023, %v3197
    %v3285 = vsel %vm3111, %v3024, %v3198
    %v3286 = vsel %vm3112, %v3025, %v3199
    %v3287 = vsel %vm3113, %v3026, %v3200
    %v3288 = vsel %vm3114, %v3027, %v3201
    %v3289 = vsel %vm3115, %v3028, %v3202
    %v3290 = vsel %vm3116, %v3029, %v3203
    %v3291 = vmul.f32 %v3204, %v1312
    %v3292 = vmul.f32 %v3205, %v1326
    %v3293 = vmul.f32 %v3206, %v1334
    %v3294 = vmul.f32 %v3207, %v1336
    %v3295 = vmul.f32 %v3208, %v1319
    %v3296 = vmul.f32 %v3209, %v1333
    %v3297 = vmul.f32 %v3210, %v1335
    %v3298 = vmul.f32 %v3211, %v1337
    %v3299 = vmul.f32 %v3212, %v1312
    %v3300 = vmul.f32 %v3213, %v1326
    %v3301 = vmul.f32 %v3214, %v1334
    %v3302 = vmul.f32 %v3215, %v1336
    %v3303 = vmul.f32 %v3216, %v1319
    %v3304 = vmul.f32 %v3217, %v1333
    %v3305 = vmul.f32 %v3218, %v1335
    %v3306 = vmul.f32 %v3219, %v1337
    %v3307 = vmul.f32 %v3220, %v1312
    %v3308 = vmul.f32 %v3221, %v1326
    %v3309 = vmul.f32 %v3222, %v1334
    %v3310 = vmul.f32 %v3223, %v1336
    %v3311 = vmul.f32 %v3224, %v1319
    %v3312 = vmul.f32 %v3225, %v1333
    %v3313 = vmul.f32 %v3226, %v1335
    %v3314 = vmul.f32 %v3227, %v1337
    %v3315 = vmul.f32 %v3228, %v1312
    %v3316 = vmul.f32 %v3229, %v1326
    %v3317 = vmul.f32 %v3230, %v1334
    %v3318 = vmul.f32 %v3231, %v1336
    %v3319 = vmul.f32 %v3232, %v1319
    %v3320 = vmul.f32 %v3233, %v1333
    %v3321 = vmul.f32 %v3234, %v1335
    %v3322 = vmul.f32 %v3235, %v1337
    %v3323 = vmul.f32 %v3236, %v1312
    %v3324 = vmul.f32 %v3237, %v1326
    %v3325 = vmul.f32 %v3238, %v1334
    %v3326 = vmul.f32 %v3239, %v1336
    %v3327 = vmul.f32 %v3240, %v1319
    %v3328 = vmul.f32 %v3241, %v1333
    %v3329 = vmul.f32 %v3242, %v1335
    %v3330 = vmul.f32 %v3243, %v1337
    %v3331 = vmul.f32 %v3244, %v1312
    %v3332 = vmul.f32 %v3245, %v1326
    %v3333 = vmul.f32 %v3246, %v1334
    %v3334 = vmul.f32 %v3247, %v1336
    %v3335 = vmul.f32 %v3248, %v1319
    %v3336 = vmul.f32 %v3249, %v1333
    %v3337 = vmul.f32 %v3250, %v1335
    %v3338 = vmul.f32 %v3251, %v1337
    %v3339 = vmul.f32 %v3252, %v1312
    %v3340 = vmul.f32 %v3253, %v1326
    %v3341 = vmul.f32 %v3254, %v1334
    %v3342 = vmul.f32 %v3255, %v1336
    %v3343 = vmul.f32 %v3256, %v1319
    %v3344 = vmul.f32 %v3257, %v1333
    %v3345 = vmul.f32 %v3258, %v1335
    %v3346 = vmul.f32 %v3259, %v1337
    %v3347 = vmul.f32 %v3260, %v1312
    %v3348 = vmul.f32 %v3261, %v1326
    %v3349 = vmul.f32 %v3262, %v1334
    %v3350 = vmul.f32 %v3263, %v1336
    %v3351 = vmul.f32 %v3264, %v1319
    %v3352 = vmul.f32 %v3265, %v1333
    %v3353 = vmul.f32 %v3266, %v1335
    %v3354 = vmul.f32 %v3267, %v1337
    %v3355 = vmul.f32 %v3268, %v1312
    %v3356 = vmul.f32 %v3269, %v1326
    %v3357 = vmul.f32 %v3270, %v1334
    %v3358 = vmul.f32 %v3271, %v1336
    %v3359 = vmul.f32 %v3272, %v1319
    %v3360 = vmul.f32 %v3273, %v1333
    %v3361 = vmul.f32 %v3274, %v1335
    %v3362 = vmul.f32 %v3275, %v1337
    %v3363 = vmul.f32 %v3276, %v1312
    %v3364 = vmul.f32 %v3277, %v1326
    %v3365 = vmul.f32 %v3278, %v1334
    %v3366 = vmul.f32 %v3279, %v1336
    %v3367 = vmul.f32 %v3280, %v1319
    %v3368 = vmul.f32 %v3281, %v1333
    %v3369 = vmul.f32 %v3282, %v1335
    %v3370 = vmul.f32 %v3283, %v1337
    %v3371 = vmul.f32 %v3284, %v1312
    %v3372 = vmul.f32 %v3285, %v1326
    %v3373 = vmul.f32 %v3286, %v1334
    %v3374 = vmul.f32 %v3287, %v1336
    %v3375 = vmul.f32 %v3288, %v1319
    %v3376 = vmul.f32 %v3289, %v1333
    %v3377 = vmul.f32 %v3290, %v1335
    %v3465 = vcombine.low %v3291, %v3292
    %v3466 = vcombine.low %v3293, %v3294
    %v3467 = vcombine.low %v3295, %v3296
    %v3468 = vcombine.low %v3297, %v3298
    %v3470 = vunpack.c.l.s4 1966171168
    %v3471 = vunpack.c.0.s8 %v3470
    %v3472 = vlaneseq
    %v3473 = vshrl.u32 %v3472, 7
    %v3474 = vsub.s32 %v3471, %v3473
    %v3475 = vrot.slane %v3465, %v3474
    %v3477 = vunpack.c.l.s4 1966171168
    %v3478 = vunpack.c.0.s8 %v3477
    %v3479 = vlaneseq
    %v3480 = vshrl.u32 %v3479, 7
    %v3481 = vsub.s32 %v3478, %v3480
    %v3482 = vrot.slane %v3466, %v3481
    %v3484 = vunpack.c.l.s4 1966171168
    %v3485 = vunpack.c.0.s8 %v3484
    %v3486 = vlaneseq
    %v3487 = vshrl.u32 %v3486, 7
    %v3488 = vsub.s32 %v3485, %v3487
    %v3489 = vrot.slane %v3467, %v3488
    %v3491 = vunpack.c.l.s4 1966171168
    %v3492 = vunpack.c.0.s8 %v3491
    %v3493 = vlaneseq
    %v3494 = vshrl.u32 %v3493, 7
    %v3495 = vsub.s32 %v3492, %v3494
    %v3496 = vrot.slane %v3468, %v3495
    %v3497 = vcombine.low %v3475, %v3482
    %v3498 = vcombine.high %v3475, %v3482
    %v3499 = vcombine.low %v3489, %v3496
    %v3500 = vcombine.high %v3489, %v3496
    %v3502 = vunpack.c.l.s4 1966171168
    %v3503 = vunpack.c.0.s8 %v3502
    %v3504 = vlaneseq
    %v3505 = vshrl.u32 %v3504, 7
    %v3506 = vsub.s32 %v3503, %v3505
    %v3507 = vrot.slane %v3497, %v3506
    %v3509 = vunpack.c.l.s4 1966171168
    %v3510 = vunpack.c.0.s8 %v3509
    %v3511 = vlaneseq
    %v3512 = vshrl.u32 %v3511, 7
    %v3513 = vsub.s32 %v3510, %v3512
    %v3514 = vrot.slane %v3498, %v3513
    %v3516 = vunpack.c.l.s4 1966171168
    %v3517 = vunpack.c.0.s8 %v3516
    %v3518 = vlaneseq
    %v3519 = vshrl.u32 %v3518, 7
    %v3520 = vsub.s32 %v3517, %v3519
    %v3521 = vrot.slane %v3499, %v3520
    %v3523 = vunpack.c.l.s4 1966171168
    %v3524 = vunpack.c.0.s8 %v3523
    %v3525 = vlaneseq
    %v3526 = vshrl.u32 %v3525, 7
    %v3527 = vsub.s32 %v3524, %v3526
    %v3528 = vrot.slane %v3500, %v3527
    %v3529 = vcombine.low %v3507, %v3521
    %v3530 = vcombine.low %v3514, %v3528
    %v3531 = vcombine.low %v3299, %v3300
    %v3532 = vcombine.low %v3301, %v3302
    %v3533 = vcombine.low %v3303, %v3304
    %v3534 = vcombine.low %v3305, %v3306
    %v3536 = vunpack.c.l.s4 1966171168
    %v3537 = vunpack.c.0.s8 %v3536
    %v3538 = vlaneseq
    %v3539 = vshrl.u32 %v3538, 7
    %v3540 = vsub.s32 %v3537, %v3539
    %v3541 = vrot.slane %v3531, %v3540
    %v3543 = vunpack.c.l.s4 1966171168
    %v3544 = vunpack.c.0.s8 %v3543
    %v3545 = vlaneseq
    %v3546 = vshrl.u32 %v3545, 7
    %v3547 = vsub.s32 %v3544, %v3546
    %v3548 = vrot.slane %v3532, %v3547
    %v3550 = vunpack.c.l.s4 1966171168
    %v3551 = vunpack.c.0.s8 %v3550
    %v3552 = vlaneseq
    %v3553 = vshrl.u32 %v3552, 7
    %v3554 = vsub.s32 %v3551, %v3553
    %v3555 = vrot.slane %v3533, %v3554
    %v3557 = vunpack.c.l.s4 1966171168
    %v3558 = vunpack.c.0.s8 %v3557
    %v3559 = vlaneseq
    %v3560 = vshrl.u32 %v3559, 7
    %v3561 = vsub.s32 %v3558, %v3560
    %v3562 = vrot.slane %v3534, %v3561
    %v3563 = vcombine.low %v3541, %v3548
    %v3564 = vcombine.high %v3541, %v3548
    %v3565 = vcombine.low %v3555, %v3562
    %v3566 = vcombine.high %v3555, %v3562
    %v3568 = vunpack.c.l.s4 1966171168
    %v3569 = vunpack.c.0.s8 %v3568
    %v3570 = vlaneseq
    %v3571 = vshrl.u32 %v3570, 7
    %v3572 = vsub.s32 %v3569, %v3571
    %v3573 = vrot.slane %v3563, %v3572
    %v3575 = vunpack.c.l.s4 1966171168
    %v3576 = vunpack.c.0.s8 %v3575
    %v3577 = vlaneseq
    %v3578 = vshrl.u32 %v3577, 7
    %v3579 = vsub.s32 %v3576, %v3578
    %v3580 = vrot.slane %v3564, %v3579
    %v3582 = vunpack.c.l.s4 1966171168
    %v3583 = vunpack.c.0.s8 %v3582
    %v3584 = vlaneseq
    %v3585 = vshrl.u32 %v3584, 7
    %v3586 = vsub.s32 %v3583, %v3585
    %v3587 = vrot.slane %v3565, %v3586
    %v3589 = vunpack.c.l.s4 1966171168
    %v3590 = vunpack.c.0.s8 %v3589
    %v3591 = vlaneseq
    %v3592 = vshrl.u32 %v3591, 7
    %v3593 = vsub.s32 %v3590, %v3592
    %v3594 = vrot.slane %v3566, %v3593
    %v3595 = vcombine.low %v3573, %v3587
    %v3596 = vcombine.low %v3580, %v3594
    %v3597 = vcombine.low %v3307, %v3308
    %v3598 = vcombine.low %v3309, %v3310
    %v3599 = vcombine.low %v3311, %v3312
    %v3600 = vcombine.low %v3313, %v3314
    %v3602 = vunpack.c.l.s4 1966171168
    %v3603 = vunpack.c.0.s8 %v3602
    %v3604 = vlaneseq
    %v3605 = vshrl.u32 %v3604, 7
    %v3606 = vsub.s32 %v3603, %v3605
    %v3607 = vrot.slane %v3597, %v3606
    %v3609 = vunpack.c.l.s4 1966171168
    %v3610 = vunpack.c.0.s8 %v3609
    %v3611 = vlaneseq
    %v3612 = vshrl.u32 %v3611, 7
    %v3613 = vsub.s32 %v3610, %v3612
    %v3614 = vrot.slane %v3598, %v3613
    %v3616 = vunpack.c.l.s4 1966171168
    %v3617 = vunpack.c.0.s8 %v3616
    %v3618 = vlaneseq
    %v3619 = vshrl.u32 %v3618, 7
    %v3620 = vsub.s32 %v3617, %v3619
    %v3621 = vrot.slane %v3599, %v3620
    %v3623 = vunpack.c.l.s4 1966171168
    %v3624 = vunpack.c.0.s8 %v3623
    %v3625 = vlaneseq
    %v3626 = vshrl.u32 %v3625, 7
    %v3627 = vsub.s32 %v3624, %v3626
    %v3628 = vrot.slane %v3600, %v3627
    %v3629 = vcombine.low %v3607, %v3614
    %v3630 = vcombine.high %v3607, %v3614
    %v3631 = vcombine.low %v3621, %v3628
    %v3632 = vcombine.high %v3621, %v3628
    %v3634 = vunpack.c.l.s4 1966171168
    %v3635 = vunpack.c.0.s8 %v3634
    %v3636 = vlaneseq
    %v3637 = vshrl.u32 %v3636, 7
    %v3638 = vsub.s32 %v3635, %v3637
    %v3639 = vrot.slane %v3629, %v3638
    %v3641 = vunpack.c.l.s4 1966171168
    %v3642 = vunpack.c.0.s8 %v3641
    %v3643 = vlaneseq
    %v3644 = vshrl.u32 %v3643, 7
    %v3645 = vsub.s32 %v3642, %v3644
    %v3646 = vrot.slane %v3630, %v3645
    %v3648 = vunpack.c.l.s4 1966171168
    %v3649 = vunpack.c.0.s8 %v3648
    %v3650 = vlaneseq
    %v3651 = vshrl.u32 %v3650, 7
    %v3652 = vsub.s32 %v3649, %v3651
    %v3653 = vrot.slane %v3631, %v3652
    %v3655 = vunpack.c.l.s4 1966171168
    %v3656 = vunpack.c.0.s8 %v3655
    %v3657 = vlaneseq
    %v3658 = vshrl.u32 %v3657, 7
    %v3659 = vsub.s32 %v3656, %v3658
    %v3660 = vrot.slane %v3632, %v3659
    %v3661 = vcombine.low %v3639, %v3653
    %v3662 = vcombine.low %v3646, %v3660
    %v3663 = vcombine.low %v3315, %v3316
    %v3664 = vcombine.low %v3317, %v3318
    %v3665 = vcombine.low %v3319, %v3320
    %v3666 = vcombine.low %v3321, %v3322
    %v3668 = vunpack.c.l.s4 1966171168
    %v3669 = vunpack.c.0.s8 %v3668
    %v3670 = vlaneseq
    %v3671 = vshrl.u32 %v3670, 7
    %v3672 = vsub.s32 %v3669, %v3671
    %v3673 = vrot.slane %v3663, %v3672
    %v3675 = vunpack.c.l.s4 1966171168
    %v3676 = vunpack.c.0.s8 %v3675
    %v3677 = vlaneseq
    %v3678 = vshrl.u32 %v3677, 7
    %v3679 = vsub.s32 %v3676, %v3678
    %v3680 = vrot.slane %v3664, %v3679
    %v3682 = vunpack.c.l.s4 1966171168
    %v3683 = vunpack.c.0.s8 %v3682
    %v3684 = vlaneseq
    %v3685 = vshrl.u32 %v3684, 7
    %v3686 = vsub.s32 %v3683, %v3685
    %v3687 = vrot.slane %v3665, %v3686
    %v3689 = vunpack.c.l.s4 1966171168
    %v3690 = vunpack.c.0.s8 %v3689
    %v3691 = vlaneseq
    %v3692 = vshrl.u32 %v3691, 7
    %v3693 = vsub.s32 %v3690, %v3692
    %v3694 = vrot.slane %v3666, %v3693
    %v3695 = vcombine.low %v3673, %v3680
    %v3696 = vcombine.high %v3673, %v3680
    %v3697 = vcombine.low %v3687, %v3694
    %v3698 = vcombine.high %v3687, %v3694
    %v3700 = vunpack.c.l.s4 1966171168
    %v3701 = vunpack.c.0.s8 %v3700
    %v3702 = vlaneseq
    %v3703 = vshrl.u32 %v3702, 7
    %v3704 = vsub.s32 %v3701, %v3703
    %v3705 = vrot.slane %v3695, %v3704
    %v3707 = vunpack.c.l.s4 1966171168
    %v3708 = vunpack.c.0.s8 %v3707
    %v3709 = vlaneseq
    %v3710 = vshrl.u32 %v3709, 7
    %v3711 = vsub.s32 %v3708, %v3710
    %v3712 = vrot.slane %v3696, %v3711
    %v3714 = vunpack.c.l.s4 1966171168
    %v3715 = vunpack.c.0.s8 %v3714
    %v3716 = vlaneseq
    %v3717 = vshrl.u32 %v3716, 7
    %v3718 = vsub.s32 %v3715, %v3717
    %v3719 = vrot.slane %v3697, %v3718
    %v3721 = vunpack.c.l.s4 1966171168
    %v3722 = vunpack.c.0.s8 %v3721
    %v3723 = vlaneseq
    %v3724 = vshrl.u32 %v3723, 7
    %v3725 = vsub.s32 %v3722, %v3724
    %v3726 = vrot.slane %v3698, %v3725
    %v3727 = vcombine.low %v3705, %v3719
    %v3728 = vcombine.low %v3712, %v3726
    %v3729 = vcombine.low %v3323, %v3324
    %v3730 = vcombine.low %v3325, %v3326
    %v3731 = vcombine.low %v3327, %v3328
    %v3732 = vcombine.low %v3329, %v3330
    %v3734 = vunpack.c.l.s4 1966171168
    %v3735 = vunpack.c.0.s8 %v3734
    %v3736 = vlaneseq
    %v3737 = vshrl.u32 %v3736, 7
    %v3738 = vsub.s32 %v3735, %v3737
    %v3739 = vrot.slane %v3729, %v3738
    %v3741 = vunpack.c.l.s4 1966171168
    %v3742 = vunpack.c.0.s8 %v3741
    %v3743 = vlaneseq
    %v3744 = vshrl.u32 %v3743, 7
    %v3745 = vsub.s32 %v3742, %v3744
    %v3746 = vrot.slane %v3730, %v3745
    %v3748 = vunpack.c.l.s4 1966171168
    %v3749 = vunpack.c.0.s8 %v3748
    %v3750 = vlaneseq
    %v3751 = vshrl.u32 %v3750, 7
    %v3752 = vsub.s32 %v3749, %v3751
    %v3753 = vrot.slane %v3731, %v3752
    %v3755 = vunpack.c.l.s4 1966171168
    %v3756 = vunpack.c.0.s8 %v3755
    %v3757 = vlaneseq
    %v3758 = vshrl.u32 %v3757, 7
    %v3759 = vsub.s32 %v3756, %v3758
    %v3760 = vrot.slane %v3732, %v3759
    %v3761 = vcombine.low %v3739, %v3746
    %v3762 = vcombine.high %v3739, %v3746
    %v3763 = vcombine.low %v3753, %v3760
    %v3764 = vcombine.high %v3753, %v3760
    %v3766 = vunpack.c.l.s4 1966171168
    %v3767 = vunpack.c.0.s8 %v3766
    %v3768 = vlaneseq
    %v3769 = vshrl.u32 %v3768, 7
    %v3770 = vsub.s32 %v3767, %v3769
    %v3771 = vrot.slane %v3761, %v3770
    %v3773 = vunpack.c.l.s4 1966171168
    %v3774 = vunpack.c.0.s8 %v3773
    %v3775 = vlaneseq
    %v3776 = vshrl.u32 %v3775, 7
    %v3777 = vsub.s32 %v3774, %v3776
    %v3778 = vrot.slane %v3762, %v3777
    %v3780 = vunpack.c.l.s4 1966171168
    %v3781 = vunpack.c.0.s8 %v3780
    %v3782 = vlaneseq
    %v3783 = vshrl.u32 %v3782, 7
    %v3784 = vsub.s32 %v3781, %v3783
    %v3785 = vrot.slane %v3763, %v3784
    %v3787 = vunpack.c.l.s4 1966171168
    %v3788 = vunpack.c.0.s8 %v3787
    %v3789 = vlaneseq
    %v3790 = vshrl.u32 %v3789, 7
    %v3791 = vsub.s32 %v3788, %v3790
    %v3792 = vrot.slane %v3764, %v3791
    %v3793 = vcombine.low %v3771, %v3785
    %v3794 = vcombine.low %v3778, %v3792
    %v3795 = vcombine.low %v3331, %v3332
    %v3796 = vcombine.low %v3333, %v3334
    %v3797 = vcombine.low %v3335, %v3336
    %v3798 = vcombine.low %v3337, %v3338
    %v3800 = vunpack.c.l.s4 1966171168
    %v3801 = vunpack.c.0.s8 %v3800
    %v3802 = vlaneseq
    %v3803 = vshrl.u32 %v3802, 7
    %v3804 = vsub.s32 %v3801, %v3803
    %v3805 = vrot.slane %v3795, %v3804
    %v3807 = vunpack.c.l.s4 1966171168
    %v3808 = vunpack.c.0.s8 %v3807
    %v3809 = vlaneseq
    %v3810 = vshrl.u32 %v3809, 7
    %v3811 = vsub.s32 %v3808, %v3810
    %v3812 = vrot.slane %v3796, %v3811
    %v3814 = vunpack.c.l.s4 1966171168
    %v3815 = vunpack.c.0.s8 %v3814
    %v3816 = vlaneseq
    %v3817 = vshrl.u32 %v3816, 7
    %v3818 = vsub.s32 %v3815, %v3817
    %v3819 = vrot.slane %v3797, %v3818
    %v3821 = vunpack.c.l.s4 1966171168
    %v3822 = vunpack.c.0.s8 %v3821
    %v3823 = vlaneseq
    %v3824 = vshrl.u32 %v3823, 7
    %v3825 = vsub.s32 %v3822, %v3824
    %v3826 = vrot.slane %v3798, %v3825
    %v3827 = vcombine.low %v3805, %v3812
    %v3828 = vcombine.high %v3805, %v3812
    %v3829 = vcombine.low %v3819, %v3826
    %v3830 = vcombine.high %v3819, %v3826
    %v3832 = vunpack.c.l.s4 1966171168
    %v3833 = vunpack.c.0.s8 %v3832
    %v3834 = vlaneseq
    %v3835 = vshrl.u32 %v3834, 7
    %v3836 = vsub.s32 %v3833, %v3835
    %v3837 = vrot.slane %v3827, %v3836
    %v3839 = vunpack.c.l.s4 1966171168
    %v3840 = vunpack.c.0.s8 %v3839
    %v3841 = vlaneseq
    %v3842 = vshrl.u32 %v3841, 7
    %v3843 = vsub.s32 %v3840, %v3842
    %v3844 = vrot.slane %v3828, %v3843
    %v3846 = vunpack.c.l.s4 1966171168
    %v3847 = vunpack.c.0.s8 %v3846
    %v3848 = vlaneseq
    %v3849 = vshrl.u32 %v3848, 7
    %v3850 = vsub.s32 %v3847, %v3849
    %v3851 = vrot.slane %v3829, %v3850
    %v3853 = vunpack.c.l.s4 1966171168
    %v3854 = vunpack.c.0.s8 %v3853
    %v3855 = vlaneseq
    %v3856 = vshrl.u32 %v3855, 7
    %v3857 = vsub.s32 %v3854, %v3856
    %v3858 = vrot.slane %v3830, %v3857
    %v3859 = vcombine.low %v3837, %v3851
    %v3860 = vcombine.low %v3844, %v3858
    %v3861 = vcombine.low %v3339, %v3340
    %v3862 = vcombine.low %v3341, %v3342
    %v3863 = vcombine.low %v3343, %v3344
    %v3864 = vcombine.low %v3345, %v3346
    %v3866 = vunpack.c.l.s4 1966171168
    %v3867 = vunpack.c.0.s8 %v3866
    %v3868 = vlaneseq
    %v3869 = vshrl.u32 %v3868, 7
    %v3870 = vsub.s32 %v3867, %v3869
    %v3871 = vrot.slane %v3861, %v3870
    %v3873 = vunpack.c.l.s4 1966171168
    %v3874 = vunpack.c.0.s8 %v3873
    %v3875 = vlaneseq
    %v3876 = vshrl.u32 %v3875, 7
    %v3877 = vsub.s32 %v3874, %v3876
    %v3878 = vrot.slane %v3862, %v3877
    %v3880 = vunpack.c.l.s4 1966171168
    %v3881 = vunpack.c.0.s8 %v3880
    %v3882 = vlaneseq
    %v3883 = vshrl.u32 %v3882, 7
    %v3884 = vsub.s32 %v3881, %v3883
    %v3885 = vrot.slane %v3863, %v3884
    %v3887 = vunpack.c.l.s4 1966171168
    %v3888 = vunpack.c.0.s8 %v3887
    %v3889 = vlaneseq
    %v3890 = vshrl.u32 %v3889, 7
    %v3891 = vsub.s32 %v3888, %v3890
    %v3892 = vrot.slane %v3864, %v3891
    %v3893 = vcombine.low %v3871, %v3878
    %v3894 = vcombine.high %v3871, %v3878
    %v3895 = vcombine.low %v3885, %v3892
    %v3896 = vcombine.high %v3885, %v3892
    %v3898 = vunpack.c.l.s4 1966171168
    %v3899 = vunpack.c.0.s8 %v3898
    %v3900 = vlaneseq
    %v3901 = vshrl.u32 %v3900, 7
    %v3902 = vsub.s32 %v3899, %v3901
    %v3903 = vrot.slane %v3893, %v3902
    %v3905 = vunpack.c.l.s4 1966171168
    %v3906 = vunpack.c.0.s8 %v3905
    %v3907 = vlaneseq
    %v3908 = vshrl.u32 %v3907, 7
    %v3909 = vsub.s32 %v3906, %v3908
    %v3910 = vrot.slane %v3894, %v3909
    %v3912 = vunpack.c.l.s4 1966171168
    %v3913 = vunpack.c.0.s8 %v3912
    %v3914 = vlaneseq
    %v3915 = vshrl.u32 %v3914, 7
    %v3916 = vsub.s32 %v3913, %v3915
    %v3917 = vrot.slane %v3895, %v3916
    %v3919 = vunpack.c.l.s4 1966171168
    %v3920 = vunpack.c.0.s8 %v3919
    %v3921 = vlaneseq
    %v3922 = vshrl.u32 %v3921, 7
    %v3923 = vsub.s32 %v3920, %v3922
    %v3924 = vrot.slane %v3896, %v3923
    %v3925 = vcombine.low %v3903, %v3917
    %v3926 = vcombine.low %v3910, %v3924
    %v3927 = vcombine.low %v3347, %v3348
    %v3928 = vcombine.low %v3349, %v3350
    %v3929 = vcombine.low %v3351, %v3352
    %v3930 = vcombine.low %v3353, %v3354
    %v3932 = vunpack.c.l.s4 1966171168
    %v3933 = vunpack.c.0.s8 %v3932
    %v3934 = vlaneseq
    %v3935 = vshrl.u32 %v3934, 7
    %v3936 = vsub.s32 %v3933, %v3935
    %v3937 = vrot.slane %v3927, %v3936
    %v3939 = vunpack.c.l.s4 1966171168
    %v3940 = vunpack.c.0.s8 %v3939
    %v3941 = vlaneseq
    %v3942 = vshrl.u32 %v3941, 7
    %v3943 = vsub.s32 %v3940, %v3942
    %v3944 = vrot.slane %v3928, %v3943
    %v3946 = vunpack.c.l.s4 1966171168
    %v3947 = vunpack.c.0.s8 %v3946
    %v3948 = vlaneseq
    %v3949 = vshrl.u32 %v3948, 7
    %v3950 = vsub.s32 %v3947, %v3949
    %v3951 = vrot.slane %v3929, %v3950
    %v3953 = vunpack.c.l.s4 1966171168
    %v3954 = vunpack.c.0.s8 %v3953
    %v3955 = vlaneseq
    %v3956 = vshrl.u32 %v3955, 7
    %v3957 = vsub.s32 %v3954, %v3956
    %v3958 = vrot.slane %v3930, %v3957
    %v3959 = vcombine.low %v3937, %v3944
    %v3960 = vcombine.high %v3937, %v3944
    %v3961 = vcombine.low %v3951, %v3958
    %v3962 = vcombine.high %v3951, %v3958
    %v3964 = vunpack.c.l.s4 1966171168
    %v3965 = vunpack.c.0.s8 %v3964
    %v3966 = vlaneseq
    %v3967 = vshrl.u32 %v3966, 7
    %v3968 = vsub.s32 %v3965, %v3967
    %v3969 = vrot.slane %v3959, %v3968
    %v3971 = vunpack.c.l.s4 1966171168
    %v3972 = vunpack.c.0.s8 %v3971
    %v3973 = vlaneseq
    %v3974 = vshrl.u32 %v3973, 7
    %v3975 = vsub.s32 %v3972, %v3974
    %v3976 = vrot.slane %v3960, %v3975
    %v3978 = vunpack.c.l.s4 1966171168
    %v3979 = vunpack.c.0.s8 %v3978
    %v3980 = vlaneseq
    %v3981 = vshrl.u32 %v3980, 7
    %v3982 = vsub.s32 %v3979, %v3981
    %v3983 = vrot.slane %v3961, %v3982
    %v3985 = vunpack.c.l.s4 1966171168
    %v3986 = vunpack.c.0.s8 %v3985
    %v3987 = vlaneseq
    %v3988 = vshrl.u32 %v3987, 7
    %v3989 = vsub.s32 %v3986, %v3988
    %v3990 = vrot.slane %v3962, %v3989
    %v3991 = vcombine.low %v3969, %v3983
    %v3992 = vcombine.low %v3976, %v3990
    %v3993 = vcombine.low %v3355, %v3356
    %v3994 = vcombine.low %v3357, %v3358
    %v3995 = vcombine.low %v3359, %v3360
    %v3996 = vcombine.low %v3361, %v3362
    %v3998 = vunpack.c.l.s4 1966171168
    %v3999 = vunpack.c.0.s8 %v3998
    %v4000 = vlaneseq
    %v4001 = vshrl.u32 %v4000, 7
    %v4002 = vsub.s32 %v3999, %v4001
    %v4003 = vrot.slane %v3993, %v4002
    %v4005 = vunpack.c.l.s4 1966171168
    %v4006 = vunpack.c.0.s8 %v4005
    %v4007 = vlaneseq
    %v4008 = vshrl.u32 %v4007, 7
    %v4009 = vsub.s32 %v4006, %v4008
    %v4010 = vrot.slane %v3994, %v4009
    %v4012 = vunpack.c.l.s4 1966171168
    %v4013 = vunpack.c.0.s8 %v4012
    %v4014 = vlaneseq
    %v4015 = vshrl.u32 %v4014, 7
    %v4016 = vsub.s32 %v4013, %v4015
    %v4017 = vrot.slane %v3995, %v4016
    %v4019 = vunpack.c.l.s4 1966171168
    %v4020 = vunpack.c.0.s8 %v4019
    %v4021 = vlaneseq
    %v4022 = vshrl.u32 %v4021, 7
    %v4023 = vsub.s32 %v4020, %v4022
    %v4024 = vrot.slane %v3996, %v4023
    %v4025 = vcombine.low %v4003, %v4010
    %v4026 = vcombine.high %v4003, %v4010
    %v4027 = vcombine.low %v4017, %v4024
    %v4028 = vcombine.high %v4017, %v4024
    %v4030 = vunpack.c.l.s4 1966171168
    %v4031 = vunpack.c.0.s8 %v4030
    %v4032 = vlaneseq
    %v4033 = vshrl.u32 %v4032, 7
    %v4034 = vsub.s32 %v4031, %v4033
    %v4035 = vrot.slane %v4025, %v4034
    %v4037 = vunpack.c.l.s4 1966171168
    %v4038 = vunpack.c.0.s8 %v4037
    %v4039 = vlaneseq
    %v4040 = vshrl.u32 %v4039, 7
    %v4041 = vsub.s32 %v4038, %v4040
    %v4042 = vrot.slane %v4026, %v4041
    %v4044 = vunpack.c.l.s4 1966171168
    %v4045 = vunpack.c.0.s8 %v4044
    %v4046 = vlaneseq
    %v4047 = vshrl.u32 %v4046, 7
    %v4048 = vsub.s32 %v4045, %v4047
    %v4049 = vrot.slane %v4027, %v4048
    %v4051 = vunpack.c.l.s4 1966171168
    %v4052 = vunpack.c.0.s8 %v4051
    %v4053 = vlaneseq
    %v4054 = vshrl.u32 %v4053, 7
    %v4055 = vsub.s32 %v4052, %v4054
    %v4056 = vrot.slane %v4028, %v4055
    %v4057 = vcombine.low %v4035, %v4049
    %v4058 = vcombine.low %v4042, %v4056
    %v4059 = vcombine.low %v3363, %v3364
    %v4060 = vcombine.low %v3365, %v3366
    %v4061 = vcombine.low %v3367, %v3368
    %v4062 = vcombine.low %v3369, %v3370
    %v4064 = vunpack.c.l.s4 1966171168
    %v4065 = vunpack.c.0.s8 %v4064
    %v4066 = vlaneseq
    %v4067 = vshrl.u32 %v4066, 7
    %v4068 = vsub.s32 %v4065, %v4067
    %v4069 = vrot.slane %v4059, %v4068
    %v4071 = vunpack.c.l.s4 1966171168
    %v4072 = vunpack.c.0.s8 %v4071
    %v4073 = vlaneseq
    %v4074 = vshrl.u32 %v4073, 7
    %v4075 = vsub.s32 %v4072, %v4074
    %v4076 = vrot.slane %v4060, %v4075
    %v4078 = vunpack.c.l.s4 1966171168
    %v4079 = vunpack.c.0.s8 %v4078
    %v4080 = vlaneseq
    %v4081 = vshrl.u32 %v4080, 7
    %v4082 = vsub.s32 %v4079, %v4081
    %v4083 = vrot.slane %v4061, %v4082
    %v4085 = vunpack.c.l.s4 1966171168
    %v4086 = vunpack.c.0.s8 %v4085
    %v4087 = vlaneseq
    %v4088 = vshrl.u32 %v4087, 7
    %v4089 = vsub.s32 %v4086, %v4088
    %v4090 = vrot.slane %v4062, %v4089
    %v4091 = vcombine.low %v4069, %v4076
    %v4092 = vcombine.high %v4069, %v4076
    %v4093 = vcombine.low %v4083, %v4090
    %v4094 = vcombine.high %v4083, %v4090
    %v4096 = vunpack.c.l.s4 1966171168
    %v4097 = vunpack.c.0.s8 %v4096
    %v4098 = vlaneseq
    %v4099 = vshrl.u32 %v4098, 7
    %v4100 = vsub.s32 %v4097, %v4099
    %v4101 = vrot.slane %v4091, %v4100
    %v4103 = vunpack.c.l.s4 1966171168
    %v4104 = vunpack.c.0.s8 %v4103
    %v4105 = vlaneseq
    %v4106 = vshrl.u32 %v4105, 7
    %v4107 = vsub.s32 %v4104, %v4106
    %v4108 = vrot.slane %v4092, %v4107
    %v4110 = vunpack.c.l.s4 1966171168
    %v4111 = vunpack.c.0.s8 %v4110
    %v4112 = vlaneseq
    %v4113 = vshrl.u32 %v4112, 7
    %v4114 = vsub.s32 %v4111, %v4113
    %v4115 = vrot.slane %v4093, %v4114
    %v4117 = vunpack.c.l.s4 1966171168
    %v4118 = vunpack.c.0.s8 %v4117
    %v4119 = vlaneseq
    %v4120 = vshrl.u32 %v4119, 7
    %v4121 = vsub.s32 %v4118, %v4120
    %v4122 = vrot.slane %v4094, %v4121
    %v4123 = vcombine.low %v4101, %v4115
    %v4124 = vcombine.low %v4108, %v4122
    %v4125 = vcombine.low %v3371, %v3372
    %v4126 = vcombine.low %v3373, %v3374
    %v4127 = vcombine.low %v3375, %v3376
    %v4129 = vunpack.c.l.s4 1966171168
    %v4130 = vunpack.c.0.s8 %v4129
    %v4131 = vlaneseq
    %v4132 = vshrl.u32 %v4131, 7
    %v4133 = vsub.s32 %v4130, %v4132
    %v4134 = vrot.slane %v4125, %v4133
    %v4136 = vunpack.c.l.s4 1966171168
    %v4137 = vunpack.c.0.s8 %v4136
    %v4138 = vlaneseq
    %v4139 = vshrl.u32 %v4138, 7
    %v4140 = vsub.s32 %v4137, %v4139
    %v4141 = vrot.slane %v4126, %v4140
    %v4143 = vunpack.c.l.s4 1966171168
    %v4144 = vunpack.c.0.s8 %v4143
    %v4145 = vlaneseq
    %v4146 = vshrl.u32 %v4145, 7
    %v4147 = vsub.s32 %v4144, %v4146
    %v4148 = vrot.slane %v4127, %v4147
    %v4150 = vunpack.c.l.s4 1966171168
    %v4151 = vunpack.c.0.s8 %v4150
    %v4152 = vlaneseq
    %v4153 = vshrl.u32 %v4152, 7
    %v4154 = vsub.s32 %v4151, %v4153
    %v4155 = vrot.slane %v3377, %v4154
    %v4156 = vcombine.low %v4134, %v4141
    %v4157 = vcombine.high %v4134, %v4141
    %v4158 = vcombine.low %v4148, %v4155
    %v4159 = vcombine.high %v4148, %v4155
    %v4161 = vunpack.c.l.s4 1966171168
    %v4162 = vunpack.c.0.s8 %v4161
    %v4163 = vlaneseq
    %v4164 = vshrl.u32 %v4163, 7
    %v4165 = vsub.s32 %v4162, %v4164
    %v4166 = vrot.slane %v4156, %v4165
    %v4168 = vunpack.c.l.s4 1966171168
    %v4169 = vunpack.c.0.s8 %v4168
    %v4170 = vlaneseq
    %v4171 = vshrl.u32 %v4170, 7
    %v4172 = vsub.s32 %v4169, %v4171
    %v4173 = vrot.slane %v4157, %v4172
    %v4175 = vunpack.c.l.s4 1966171168
    %v4176 = vunpack.c.0.s8 %v4175
    %v4177 = vlaneseq
    %v4178 = vshrl.u32 %v4177, 7
    %v4179 = vsub.s32 %v4176, %v4178
    %v4180 = vrot.slane %v4158, %v4179
    %v4182 = vunpack.c.l.s4 1966171168
    %v4183 = vunpack.c.0.s8 %v4182
    %v4184 = vlaneseq
    %v4185 = vshrl.u32 %v4184, 7
    %v4186 = vsub.s32 %v4183, %v4185
    %v4187 = vrot.slane %v4159, %v4186
    %v4188 = vcombine.low %v4166, %v4180
    %v4189 = vcombine.low %v4173, %v4187
    %v4212 = vsel %vm2267, %v3530, 0.0
    %v4213 = vadd.f32 %v3529, %v4212
    %4214 = vadd.xlane.f32.xlu0 %v4213
    %v4215 = vpop.xlane.xlu0 %4214
    %v4216 = vsel %vm2267, %v3596, 0.0
    %v4217 = vadd.f32 %v3595, %v4216
    %4218 = vadd.xlane.f32.xlu0 %v4217
    %v4219 = vpop.xlane.xlu0 %4218
    %v4220 = vsel %vm2267, %v3662, 0.0
    %v4221 = vadd.f32 %v3661, %v4220
    %4222 = vadd.xlane.f32.xlu0 %v4221
    %v4223 = vpop.xlane.xlu0 %4222
    %v4224 = vsel %vm2267, %v3728, 0.0
    %v4225 = vadd.f32 %v3727, %v4224
    %4226 = vadd.xlane.f32.xlu0 %v4225
    %v4227 = vpop.xlane.xlu0 %4226
    %v4228 = vsel %vm2267, %v3794, 0.0
    %v4229 = vadd.f32 %v3793, %v4228
    %4230 = vadd.xlane.f32.xlu0 %v4229
    %v4231 = vpop.xlane.xlu0 %4230
    %v4232 = vsel %vm2267, %v3860, 0.0
    %v4233 = vadd.f32 %v3859, %v4232
    %4234 = vadd.xlane.f32.xlu0 %v4233
    %v4235 = vpop.xlane.xlu0 %4234
    %v4236 = vsel %vm2267, %v3926, 0.0
    %v4237 = vadd.f32 %v3925, %v4236
    %4238 = vadd.xlane.f32.xlu0 %v4237
    %v4239 = vpop.xlane.xlu0 %4238
    %v4240 = vsel %vm2267, %v3992, 0.0
    %v4241 = vadd.f32 %v3991, %v4240
    %4242 = vadd.xlane.f32.xlu0 %v4241
    %v4243 = vpop.xlane.xlu0 %4242
    %v4244 = vsel %vm2267, %v4058, 0.0
    %v4245 = vadd.f32 %v4057, %v4244
    %4246 = vadd.xlane.f32.xlu0 %v4245
    %v4247 = vpop.xlane.xlu0 %4246
    %v4248 = vsel %vm2267, %v4124, 0.0
    %v4249 = vadd.f32 %v4123, %v4248
    %4250 = vadd.xlane.f32.xlu0 %v4249
    %v4251 = vpop.xlane.xlu0 %4250
    %v4252 = vsel %vm2308, %v4188, 0.0
    %v4253 = vsel %vm2310, %v4189, 0.0
    %v4254 = vadd.f32 %v4252, %v4253
    %4255 = vadd.xlane.f32.xlu0 %v4254
    %v4256 = vpop.xlane.xlu0 %4255
    %vm4257 = vcmask 15368
    %4258 = vst.msk [vmem:[%s2] sm:$0xff] %vm4257, %v4215
    %4259 = vst.msk [vmem:[%s2 + $0x8] sm:$0xff] %vm4257, %v4219
    %4260 = vst.msk [vmem:[%s2 + $0x10] sm:$0xff] %vm4257, %v4223
    %4261 = vst.msk [vmem:[%s2 + $0x18] sm:$0xff] %vm4257, %v4227
    %4262 = vst.msk [vmem:[%s2 + $0x20] sm:$0xff] %vm4257, %v4231
    %4263 = vst.msk [vmem:[%s2 + $0x28] sm:$0xff] %vm4257, %v4235
    %4264 = vst.msk [vmem:[%s2 + $0x30] sm:$0xff] %vm4257, %v4239
    %4265 = vst.msk [vmem:[%s2 + $0x38] sm:$0xff] %vm4257, %v4243
    %4266 = vst.msk [vmem:[%s2 + $0x40] sm:$0xff] %vm4257, %v4247
    %4267 = vst.msk [vmem:[%s2 + $0x48] sm:$0xff] %vm4257, %v4251
    %vm4268 = vcmask 14344
    %4269 = vst.msk [vmem:[%s2 + $0x50] sm:$0x7f] %vm4268, %v4256
    %v4270 = vld [vmem:[%s0] ss:$4 sm:$0x3]
    %v4271 = vld [vmem:[%s64] ss:$4 sm:$0x3]
    %v4272 = vld [vmem:[%s66] ss:$4 sm:$0x3]
    %v4273 = vld [vmem:[%s68] ss:$4 sm:$0x3]
    %v4274 = vld [vmem:[%s70] ss:$4 sm:$0x3]
    %v4275 = vld [vmem:[%s72] ss:$4 sm:$0x3]
    %v4276 = vld [vmem:[%s74] ss:$4 sm:$0x3]
    %v4277 = vld [vmem:[%s76] ss:$4 sm:$0x3]
    %v4278 = vld [vmem:[%s78] ss:$4 sm:$0x3]
    %v4279 = vld [vmem:[%s80] ss:$4 sm:$0x3]
    %v4280 = vld [vmem:[%s82] ss:$4 sm:$0x3]
    %v4281 = vld [vmem:[%s84] ss:$4 sm:$0x3]
    %v4282 = vld [vmem:[%s86] ss:$4 sm:$0x3]
    %v4283 = vld [vmem:[%s88] ss:$4 sm:$0x3]
    %v4284 = vld [vmem:[%s90] ss:$4 sm:$0x3]
    %v4285 = vld [vmem:[%s92] ss:$4 sm:$0x3]
    %v4286 = vld [vmem:[%s94] ss:$4 sm:$0x3]
    %v4287 = vld [vmem:[%s96] ss:$4 sm:$0x3]
    %v4288 = vld [vmem:[%s98] ss:$4 sm:$0x3]
    %v4289 = vld [vmem:[%s100] ss:$4 sm:$0x3]
    %v4290 = vld [vmem:[%s102] ss:$4 sm:$0x3]
    %v4291 = vld [vmem:[%s104] ss:$4 sm:$0x3]
    %v4292 = vld [vmem:[%s106] ss:$4 sm:$0x3]
    %v4293 = vld [vmem:[%s108] ss:$4 sm:$0x3]
    %v4294 = vld [vmem:[%s110] ss:$4 sm:$0x3]
    %v4295 = vld [vmem:[%s112] ss:$4 sm:$0x3]
    %v4296 = vld [vmem:[%s114] ss:$4 sm:$0x3]
    %v4297 = vld [vmem:[%s116] ss:$4 sm:$0x3]
    %v4298 = vld [vmem:[%s118] ss:$4 sm:$0x3]
    %v4299 = vld [vmem:[%s120] ss:$4 sm:$0x3]
    %v4300 = vld [vmem:[%s122] ss:$4 sm:$0x3]
    %v4301 = vld [vmem:[%s124] ss:$4 sm:$0x3]
    %v4302 = vld [vmem:[%s126] ss:$4 sm:$0x3]
    %v4303 = vld [vmem:[%s128] ss:$4 sm:$0x3]
    %v4304 = vld [vmem:[%s130] ss:$4 sm:$0x3]
    %v4305 = vld [vmem:[%s132] ss:$4 sm:$0x3]
    %v4306 = vld [vmem:[%s134] ss:$4 sm:$0x3]
    %v4307 = vld [vmem:[%s136] ss:$4 sm:$0x3]
    %v4308 = vld [vmem:[%s138] ss:$4 sm:$0x3]
    %v4309 = vld [vmem:[%s140] ss:$4 sm:$0x3]
    %v4310 = vld [vmem:[%s142] ss:$4 sm:$0x3]
    %v4311 = vld [vmem:[%s144] ss:$4 sm:$0x3]
    %v4312 = vld [vmem:[%s146] ss:$4 sm:$0x3]
    %v4313 = vld [vmem:[%s148] ss:$4 sm:$0x3]
    %v4314 = vld [vmem:[%s150] ss:$4 sm:$0x3]
    %v4315 = vld [vmem:[%s152] ss:$4 sm:$0x3]
    %v4316 = vld [vmem:[%s154] ss:$4 sm:$0x3]
    %v4317 = vld [vmem:[%s156] ss:$4 sm:$0x3]
    %v4318 = vld [vmem:[%s158] ss:$4 sm:$0x3]
    %v4319 = vld [vmem:[%s160] ss:$4 sm:$0x3]
    %v4320 = vld [vmem:[%s162] ss:$4 sm:$0x3]
    %v4321 = vld [vmem:[%s164] ss:$4 sm:$0x3]
    %v4322 = vld [vmem:[%s166] ss:$4 sm:$0x3]
    %v4323 = vld [vmem:[%s168] ss:$4 sm:$0x3]
    %v4324 = vld [vmem:[%s170] ss:$4 sm:$0x3]
    %v4325 = vld [vmem:[%s172] ss:$4 sm:$0x3]
    %v4326 = vld [vmem:[%s174] ss:$4 sm:$0x3]
    %v4327 = vld [vmem:[%s176] ss:$4 sm:$0x3]
    %v4328 = vld [vmem:[%s178] ss:$4 sm:$0x3]
    %v4329 = vld [vmem:[%s180] ss:$4 sm:$0x3]
    %v4330 = vld [vmem:[%s182] ss:$4 sm:$0x3]
    %v4331 = vld [vmem:[%s184] ss:$4 sm:$0x3]
    %v4332 = vld [vmem:[%s186] ss:$4 sm:$0x3]
    %v4333 = vld [vmem:[%s188] ss:$4 sm:$0x3]
    %v4334 = vld [vmem:[%s190] ss:$4 sm:$0x3]
    %v4335 = vld [vmem:[%s192] ss:$4 sm:$0x3]
    %v4336 = vld [vmem:[%s194] ss:$4 sm:$0x3]
    %v4337 = vld [vmem:[%s196] ss:$4 sm:$0x3]
    %v4338 = vld [vmem:[%s198] ss:$4 sm:$0x3]
    %v4339 = vld [vmem:[%s200] ss:$4 sm:$0x3]
    %v4340 = vld [vmem:[%s202] ss:$4 sm:$0x3]
    %v4341 = vld [vmem:[%s204] ss:$4 sm:$0x3]
    %v4342 = vld [vmem:[%s206] ss:$4 sm:$0x3]
    %v4343 = vld [vmem:[%s208] ss:$4 sm:$0x3]
    %v4344 = vld [vmem:[%s210] ss:$4 sm:$0x3]
    %v4345 = vld [vmem:[%s212] ss:$4 sm:$0x3]
    %v4346 = vld [vmem:[%s214] ss:$4 sm:$0x3]
    %v4347 = vld [vmem:[%s216] ss:$4 sm:$0x3]
    %v4348 = vld [vmem:[%s218] ss:$4 sm:$0x3]
    %v4349 = vld [vmem:[%s220] ss:$4 sm:$0x3]
    %v4350 = vld [vmem:[%s222] ss:$4 sm:$0x3]
    %v4351 = vld [vmem:[%s224] ss:$4 sm:$0x3]
    %v4352 = vld [vmem:[%s226] ss:$4 sm:$0x3]
    %v4353 = vld [vmem:[%s228] ss:$4 sm:$0x3]
    %v4354 = vld [vmem:[%s230] ss:$4 sm:$0x3]
    %v4355 = vld [vmem:[%s232] ss:$4 sm:$0x3]
    %v4356 = vld [vmem:[%s234] ss:$4 sm:$0x3]
    %s4357 = sld [smem:[#allocation2 + $0x2]]
    %v4358 = vstv %s4357
    %v4359 = vmul.f32 %v4270, %v4358
    %v4360 = vmul.f32 %v4271, %v4358
    %v4361 = vmul.f32 %v4272, %v4358
    %v4362 = vmul.f32 %v4273, %v4358
    %v4363 = vmul.f32 %v4274, %v4358
    %v4364 = vmul.f32 %v4275, %v4358
    %v4365 = vmul.f32 %v4276, %v4358
    %v4366 = vmul.f32 %v4277, %v4358
    %v4367 = vmul.f32 %v4278, %v4358
    %v4368 = vmul.f32 %v4279, %v4358
    %v4369 = vmul.f32 %v4280, %v4358
    %v4370 = vmul.f32 %v4281, %v4358
    %v4371 = vmul.f32 %v4282, %v4358
    %v4372 = vmul.f32 %v4283, %v4358
    %v4373 = vmul.f32 %v4284, %v4358
    %v4374 = vmul.f32 %v4285, %v4358
    %v4375 = vmul.f32 %v4286, %v4358
    %v4376 = vmul.f32 %v4287, %v4358
    %v4377 = vmul.f32 %v4288, %v4358
    %v4378 = vmul.f32 %v4289, %v4358
    %v4379 = vmul.f32 %v4290, %v4358
    %v4380 = vmul.f32 %v4291, %v4358
    %v4381 = vmul.f32 %v4292, %v4358
    %v4382 = vmul.f32 %v4293, %v4358
    %v4383 = vmul.f32 %v4294, %v4358
    %v4384 = vmul.f32 %v4295, %v4358
    %v4385 = vmul.f32 %v4296, %v4358
    %v4386 = vmul.f32 %v4297, %v4358
    %v4387 = vmul.f32 %v4298, %v4358
    %v4388 = vmul.f32 %v4299, %v4358
    %v4389 = vmul.f32 %v4300, %v4358
    %v4390 = vmul.f32 %v4301, %v4358
    %v4391 = vmul.f32 %v4302, %v4358
    %v4392 = vmul.f32 %v4303, %v4358
    %v4393 = vmul.f32 %v4304, %v4358
    %v4394 = vmul.f32 %v4305, %v4358
    %v4395 = vmul.f32 %v4306, %v4358
    %v4396 = vmul.f32 %v4307, %v4358
    %v4397 = vmul.f32 %v4308, %v4358
    %v4398 = vmul.f32 %v4309, %v4358
    %v4399 = vmul.f32 %v4310, %v4358
    %v4400 = vmul.f32 %v4311, %v4358
    %v4401 = vmul.f32 %v4312, %v4358
    %v4402 = vmul.f32 %v4313, %v4358
    %v4403 = vmul.f32 %v4314, %v4358
    %v4404 = vmul.f32 %v4315, %v4358
    %v4405 = vmul.f32 %v4316, %v4358
    %v4406 = vmul.f32 %v4317, %v4358
    %v4407 = vmul.f32 %v4318, %v4358
    %v4408 = vmul.f32 %v4319, %v4358
    %v4409 = vmul.f32 %v4320, %v4358
    %v4410 = vmul.f32 %v4321, %v4358
    %v4411 = vmul.f32 %v4322, %v4358
    %v4412 = vmul.f32 %v4323, %v4358
    %v4413 = vmul.f32 %v4324, %v4358
    %v4414 = vmul.f32 %v4325, %v4358
    %v4415 = vmul.f32 %v4326, %v4358
    %v4416 = vmul.f32 %v4327, %v4358
    %v4417 = vmul.f32 %v4328, %v4358
    %v4418 = vmul.f32 %v4329, %v4358
    %v4419 = vmul.f32 %v4330, %v4358
    %v4420 = vmul.f32 %v4331, %v4358
    %v4421 = vmul.f32 %v4332, %v4358
    %v4422 = vmul.f32 %v4333, %v4358
    %v4423 = vmul.f32 %v4334, %v4358
    %v4424 = vmul.f32 %v4335, %v4358
    %v4425 = vmul.f32 %v4336, %v4358
    %v4426 = vmul.f32 %v4337, %v4358
    %v4427 = vmul.f32 %v4338, %v4358
    %v4428 = vmul.f32 %v4339, %v4358
    %v4429 = vmul.f32 %v4340, %v4358
    %v4430 = vmul.f32 %v4341, %v4358
    %v4431 = vmul.f32 %v4342, %v4358
    %v4432 = vmul.f32 %v4343, %v4358
    %v4433 = vmul.f32 %v4344, %v4358
    %v4434 = vmul.f32 %v4345, %v4358
    %v4435 = vmul.f32 %v4346, %v4358
    %v4436 = vmul.f32 %v4347, %v4358
    %v4437 = vmul.f32 %v4348, %v4358
    %v4438 = vmul.f32 %v4349, %v4358
    %v4439 = vmul.f32 %v4350, %v4358
    %v4440 = vmul.f32 %v4351, %v4358
    %v4441 = vmul.f32 %v4352, %v4358
    %v4442 = vmul.f32 %v4353, %v4358
    %v4443 = vmul.f32 %v4354, %v4358
    %v4444 = vmul.f32 %v4355, %v4358
    %v4445 = vmul.f32 %v4356, %v4358
    %v4446 = vld [vmem:[%s325] ss:$4 sm:$0x3]
    %v4447 = vld [vmem:[%s327] ss:$4 sm:$0x3]
    %v4448 = vld [vmem:[%s329] ss:$4 sm:$0x3]
    %v4449 = vld [vmem:[%s331] ss:$4 sm:$0x3]
    %v4450 = vld [vmem:[%s333] ss:$4 sm:$0x3]
    %v4451 = vld [vmem:[%s335] ss:$4 sm:$0x3]
    %v4452 = vld [vmem:[%s337] ss:$4 sm:$0x3]
    %v4453 = vld [vmem:[%s339] ss:$4 sm:$0x3]
    %v4454 = vld [vmem:[%s341] ss:$4 sm:$0x3]
    %v4455 = vld [vmem:[%s343] ss:$4 sm:$0x3]
    %v4456 = vld [vmem:[%s345] ss:$4 sm:$0x3]
    %v4457 = vld [vmem:[%s347] ss:$4 sm:$0x3]
    %v4458 = vld [vmem:[%s349] ss:$4 sm:$0x3]
    %v4459 = vld [vmem:[%s351] ss:$4 sm:$0x3]
    %v4460 = vld [vmem:[%s353] ss:$4 sm:$0x3]
    %v4461 = vld [vmem:[%s355] ss:$4 sm:$0x3]
    %v4462 = vld [vmem:[%s357] ss:$4 sm:$0x3]
    %v4463 = vld [vmem:[%s359] ss:$4 sm:$0x3]
    %v4464 = vld [vmem:[%s361] ss:$4 sm:$0x3]
    %v4465 = vld [vmem:[%s363] ss:$4 sm:$0x3]
    %v4466 = vld [vmem:[%s365] ss:$4 sm:$0x3]
    %v4467 = vld [vmem:[%s367] ss:$4 sm:$0x3]
    %v4468 = vld [vmem:[%s369] ss:$4 sm:$0x3]
    %v4469 = vld [vmem:[%s371] ss:$4 sm:$0x3]
    %v4470 = vld [vmem:[%s373] ss:$4 sm:$0x3]
    %v4471 = vld [vmem:[%s375] ss:$4 sm:$0x3]
    %v4472 = vld [vmem:[%s377] ss:$4 sm:$0x3]
    %v4473 = vld [vmem:[%s379] ss:$4 sm:$0x3]
    %v4474 = vld [vmem:[%s381] ss:$4 sm:$0x3]
    %v4475 = vld [vmem:[%s383] ss:$4 sm:$0x3]
    %v4476 = vld [vmem:[%s385] ss:$4 sm:$0x3]
    %v4477 = vld [vmem:[%s387] ss:$4 sm:$0x3]
    %v4478 = vld [vmem:[%s389] ss:$4 sm:$0x3]
    %v4479 = vld [vmem:[%s391] ss:$4 sm:$0x3]
    %v4480 = vld [vmem:[%s393] ss:$4 sm:$0x3]
    %v4481 = vld [vmem:[%s395] ss:$4 sm:$0x3]
    %v4482 = vld [vmem:[%s397] ss:$4 sm:$0x3]
    %v4483 = vld [vmem:[%s399] ss:$4 sm:$0x3]
    %v4484 = vld [vmem:[%s401] ss:$4 sm:$0x3]
    %v4485 = vld [vmem:[%s403] ss:$4 sm:$0x3]
    %v4486 = vld [vmem:[%s405] ss:$4 sm:$0x3]
    %v4487 = vld [vmem:[%s407] ss:$4 sm:$0x3]
    %v4488 = vld [vmem:[%s409] ss:$4 sm:$0x3]
    %v4489 = vld [vmem:[%s411] ss:$4 sm:$0x3]
    %v4490 = vld [vmem:[%s413] ss:$4 sm:$0x3]
    %v4491 = vld [vmem:[%s415] ss:$4 sm:$0x3]
    %v4492 = vld [vmem:[%s417] ss:$4 sm:$0x3]
    %v4493 = vld [vmem:[%s419] ss:$4 sm:$0x3]
    %v4494 = vld [vmem:[%s421] ss:$4 sm:$0x3]
    %v4495 = vld [vmem:[%s423] ss:$4 sm:$0x3]
    %v4496 = vld [vmem:[%s425] ss:$4 sm:$0x3]
    %v4497 = vld [vmem:[%s427] ss:$4 sm:$0x3]
    %v4498 = vld [vmem:[%s429] ss:$4 sm:$0x3]
    %v4499 = vld [vmem:[%s431] ss:$4 sm:$0x3]
    %v4500 = vld [vmem:[%s433] ss:$4 sm:$0x3]
    %v4501 = vld [vmem:[%s435] ss:$4 sm:$0x3]
    %v4502 = vld [vmem:[%s437] ss:$4 sm:$0x3]
    %v4503 = vld [vmem:[%s439] ss:$4 sm:$0x3]
    %v4504 = vld [vmem:[%s441] ss:$4 sm:$0x3]
    %v4505 = vld [vmem:[%s443] ss:$4 sm:$0x3]
    %v4506 = vld [vmem:[%s445] ss:$4 sm:$0x3]
    %v4507 = vld [vmem:[%s447] ss:$4 sm:$0x3]
    %v4508 = vld [vmem:[%s449] ss:$4 sm:$0x3]
    %v4509 = vld [vmem:[%s451] ss:$4 sm:$0x3]
    %v4510 = vld [vmem:[%s453] ss:$4 sm:$0x3]
    %v4511 = vld [vmem:[%s455] ss:$4 sm:$0x3]
    %v4512 = vld [vmem:[%s457] ss:$4 sm:$0x3]
    %v4513 = vld [vmem:[%s459] ss:$4 sm:$0x3]
    %v4514 = vld [vmem:[%s461] ss:$4 sm:$0x3]
    %v4515 = vld [vmem:[%s463] ss:$4 sm:$0x3]
    %v4516 = vld [vmem:[%s465] ss:$4 sm:$0x3]
    %v4517 = vld [vmem:[%s467] ss:$4 sm:$0x3]
    %v4518 = vld [vmem:[%s469] ss:$4 sm:$0x3]
    %v4519 = vld [vmem:[%s471] ss:$4 sm:$0x3]
    %v4520 = vld [vmem:[%s473] ss:$4 sm:$0x3]
    %v4521 = vld [vmem:[%s475] ss:$4 sm:$0x3]
    %v4522 = vld [vmem:[%s477] ss:$4 sm:$0x3]
    %v4523 = vld [vmem:[%s479] ss:$4 sm:$0x3]
    %v4524 = vld [vmem:[%s481] ss:$4 sm:$0x3]
    %v4525 = vld [vmem:[%s483] ss:$4 sm:$0x3]
    %v4526 = vld [vmem:[%s485] ss:$4 sm:$0x3]
    %v4527 = vld [vmem:[%s487] ss:$4 sm:$0x3]
    %v4528 = vld [vmem:[%s489] ss:$4 sm:$0x3]
    %v4529 = vld [vmem:[%s491] ss:$4 sm:$0x3]
    %v4530 = vld [vmem:[%s493] ss:$4 sm:$0x3]
    %v4531 = vld [vmem:[%s495] ss:$4 sm:$0x3]
    %v4532 = vld [vmem:[%s497] ss:$4 sm:$0x3]
    %s4533 = sld [smem:[#allocation2 + $0x82]]
    %v4534 = vstv %s4533
    %v4535 = vmul.f32 %v4446, %v4534
    %v4536 = vmul.f32 %v4447, %v4534
    %v4537 = vmul.f32 %v4448, %v4534
    %v4538 = vmul.f32 %v4449, %v4534
    %v4539 = vmul.f32 %v4450, %v4534
    %v4540 = vmul.f32 %v4451, %v4534
    %v4541 = vmul.f32 %v4452, %v4534
    %v4542 = vmul.f32 %v4453, %v4534
    %v4543 = vmul.f32 %v4454, %v4534
    %v4544 = vmul.f32 %v4455, %v4534
    %v4545 = vmul.f32 %v4456, %v4534
    %v4546 = vmul.f32 %v4457, %v4534
    %v4547 = vmul.f32 %v4458, %v4534
    %v4548 = vmul.f32 %v4459, %v4534
    %v4549 = vmul.f32 %v4460, %v4534
    %v4550 = vmul.f32 %v4461, %v4534
    %v4551 = vmul.f32 %v4462, %v4534
    %v4552 = vmul.f32 %v4463, %v4534
    %v4553 = vmul.f32 %v4464, %v4534
    %v4554 = vmul.f32 %v4465, %v4534
    %v4555 = vmul.f32 %v4466, %v4534
    %v4556 = vmul.f32 %v4467, %v4534
    %v4557 = vmul.f32 %v4468, %v4534
    %v4558 = vmul.f32 %v4469, %v4534
    %v4559 = vmul.f32 %v4470, %v4534
    %v4560 = vmul.f32 %v4471, %v4534
    %v4561 = vmul.f32 %v4472, %v4534
    %v4562 = vmul.f32 %v4473, %v4534
    %v4563 = vmul.f32 %v4474, %v4534
    %v4564 = vmul.f32 %v4475, %v4534
    %v4565 = vmul.f32 %v4476, %v4534
    %v4566 = vmul.f32 %v4477, %v4534
    %v4567 = vmul.f32 %v4478, %v4534
    %v4568 = vmul.f32 %v4479, %v4534
    %v4569 = vmul.f32 %v4480, %v4534
    %v4570 = vmul.f32 %v4481, %v4534
    %v4571 = vmul.f32 %v4482, %v4534
    %v4572 = vmul.f32 %v4483, %v4534
    %v4573 = vmul.f32 %v4484, %v4534
    %v4574 = vmul.f32 %v4485, %v4534
    %v4575 = vmul.f32 %v4486, %v4534
    %v4576 = vmul.f32 %v4487, %v4534
    %v4577 = vmul.f32 %v4488, %v4534
    %v4578 = vmul.f32 %v4489, %v4534
    %v4579 = vmul.f32 %v4490, %v4534
    %v4580 = vmul.f32 %v4491, %v4534
    %v4581 = vmul.f32 %v4492, %v4534
    %v4582 = vmul.f32 %v4493, %v4534
    %v4583 = vmul.f32 %v4494, %v4534
    %v4584 = vmul.f32 %v4495, %v4534
    %v4585 = vmul.f32 %v4496, %v4534
    %v4586 = vmul.f32 %v4497, %v4534
    %v4587 = vmul.f32 %v4498, %v4534
    %v4588 = vmul.f32 %v4499, %v4534
    %v4589 = vmul.f32 %v4500, %v4534
    %v4590 = vmul.f32 %v4501, %v4534
    %v4591 = vmul.f32 %v4502, %v4534
    %v4592 = vmul.f32 %v4503, %v4534
    %v4593 = vmul.f32 %v4504, %v4534
    %v4594 = vmul.f32 %v4505, %v4534
    %v4595 = vmul.f32 %v4506, %v4534
    %v4596 = vmul.f32 %v4507, %v4534
    %v4597 = vmul.f32 %v4508, %v4534
    %v4598 = vmul.f32 %v4509, %v4534
    %v4599 = vmul.f32 %v4510, %v4534
    %v4600 = vmul.f32 %v4511, %v4534
    %v4601 = vmul.f32 %v4512, %v4534
    %v4602 = vmul.f32 %v4513, %v4534
    %v4603 = vmul.f32 %v4514, %v4534
    %v4604 = vmul.f32 %v4515, %v4534
    %v4605 = vmul.f32 %v4516, %v4534
    %v4606 = vmul.f32 %v4517, %v4534
    %v4607 = vmul.f32 %v4518, %v4534
    %v4608 = vmul.f32 %v4519, %v4534
    %v4609 = vmul.f32 %v4520, %v4534
    %v4610 = vmul.f32 %v4521, %v4534
    %v4611 = vmul.f32 %v4522, %v4534
    %v4612 = vmul.f32 %v4523, %v4534
    %v4613 = vmul.f32 %v4524, %v4534
    %v4614 = vmul.f32 %v4525, %v4534
    %v4615 = vmul.f32 %v4526, %v4534
    %v4616 = vmul.f32 %v4527, %v4534
    %v4617 = vmul.f32 %v4528, %v4534
    %v4618 = vmul.f32 %v4529, %v4534
    %v4619 = vmul.f32 %v4530, %v4534
    %v4620 = vmul.f32 %v4531, %v4534
    %v4621 = vmul.f32 %v4532, %v4534
    %v4622 = vadd.f32 %v4359, %v4535
    %v4623 = vadd.f32 %v4360, %v4536
    %v4624 = vadd.f32 %v4361, %v4537
    %v4625 = vadd.f32 %v4362, %v4538
    %v4626 = vadd.f32 %v4363, %v4539
    %v4627 = vadd.f32 %v4364, %v4540
    %v4628 = vadd.f32 %v4365, %v4541
    %v4629 = vadd.f32 %v4366, %v4542
    %v4630 = vadd.f32 %v4367, %v4543
    %v4631 = vadd.f32 %v4368, %v4544
    %v4632 = vadd.f32 %v4369, %v4545
    %v4633 = vadd.f32 %v4370, %v4546
    %v4634 = vadd.f32 %v4371, %v4547
    %v4635 = vadd.f32 %v4372, %v4548
    %v4636 = vadd.f32 %v4373, %v4549
    %v4637 = vadd.f32 %v4374, %v4550
    %v4638 = vadd.f32 %v4375, %v4551
    %v4639 = vadd.f32 %v4376, %v4552
    %v4640 = vadd.f32 %v4377, %v4553
    %v4641 = vadd.f32 %v4378, %v4554
    %v4642 = vadd.f32 %v4379, %v4555
    %v4643 = vadd.f32 %v4380, %v4556
    %v4644 = vadd.f32 %v4381, %v4557
    %v4645 = vadd.f32 %v4382, %v4558
    %v4646 = vadd.f32 %v4383, %v4559
    %v4647 = vadd.f32 %v4384, %v4560
    %v4648 = vadd.f32 %v4385, %v4561
    %v4649 = vadd.f32 %v4386, %v4562
    %v4650 = vadd.f32 %v4387, %v4563
    %v4651 = vadd.f32 %v4388, %v4564
    %v4652 = vadd.f32 %v4389, %v4565
    %v4653 = vadd.f32 %v4390, %v4566
    %v4654 = vadd.f32 %v4391, %v4567
    %v4655 = vadd.f32 %v4392, %v4568
    %v4656 = vadd.f32 %v4393, %v4569
    %v4657 = vadd.f32 %v4394, %v4570
    %v4658 = vadd.f32 %v4395, %v4571
    %v4659 = vadd.f32 %v4396, %v4572
    %v4660 = vadd.f32 %v4397, %v4573
    %v4661 = vadd.f32 %v4398, %v4574
    %v4662 = vadd.f32 %v4399, %v4575
    %v4663 = vadd.f32 %v4400, %v4576
    %v4664 = vadd.f32 %v4401, %v4577
    %v4665 = vadd.f32 %v4402, %v4578
    %v4666 = vadd.f32 %v4403, %v4579
    %v4667 = vadd.f32 %v4404, %v4580
    %v4668 = vadd.f32 %v4405, %v4581
    %v4669 = vadd.f32 %v4406, %v4582
    %v4670 = vadd.f32 %v4407, %v4583
    %v4671 = vadd.f32 %v4408, %v4584
    %v4672 = vadd.f32 %v4409, %v4585
    %v4673 = vadd.f32 %v4410, %v4586
    %v4674 = vadd.f32 %v4411, %v4587
    %v4675 = vadd.f32 %v4412, %v4588
    %v4676 = vadd.f32 %v4413, %v4589
    %v4677 = vadd.f32 %v4414, %v4590
    %v4678 = vadd.f32 %v4415, %v4591
    %v4679 = vadd.f32 %v4416, %v4592
    %v4680 = vadd.f32 %v4417, %v4593
    %v4681 = vadd.f32 %v4418, %v4594
    %v4682 = vadd.f32 %v4419, %v4595
    %v4683 = vadd.f32 %v4420, %v4596
    %v4684 = vadd.f32 %v4421, %v4597
    %v4685 = vadd.f32 %v4422, %v4598
    %v4686 = vadd.f32 %v4423, %v4599
    %v4687 = vadd.f32 %v4424, %v4600
    %v4688 = vadd.f32 %v4425, %v4601
    %v4689 = vadd.f32 %v4426, %v4602
    %v4690 = vadd.f32 %v4427, %v4603
    %v4691 = vadd.f32 %v4428, %v4604
    %v4692 = vadd.f32 %v4429, %v4605
    %v4693 = vadd.f32 %v4430, %v4606
    %v4694 = vadd.f32 %v4431, %v4607
    %v4695 = vadd.f32 %v4432, %v4608
    %v4696 = vadd.f32 %v4433, %v4609
    %v4697 = vadd.f32 %v4434, %v4610
    %v4698 = vadd.f32 %v4435, %v4611
    %v4699 = vadd.f32 %v4436, %v4612
    %v4700 = vadd.f32 %v4437, %v4613
    %v4701 = vadd.f32 %v4438, %v4614
    %v4702 = vadd.f32 %v4439, %v4615
    %v4703 = vadd.f32 %v4440, %v4616
    %v4704 = vadd.f32 %v4441, %v4617
    %v4705 = vadd.f32 %v4442, %v4618
    %v4706 = vadd.f32 %v4443, %v4619
    %v4707 = vadd.f32 %v4444, %v4620
    %v4708 = vadd.f32 %v4445, %v4621
    %v4709 = vld [vmem:[%s675] ss:$4 sm:$0x3]
    %v4710 = vld [vmem:[%s677] ss:$4 sm:$0x3]
    %v4711 = vld [vmem:[%s679] ss:$4 sm:$0x3]
    %v4712 = vld [vmem:[%s681] ss:$4 sm:$0x3]
    %v4713 = vld [vmem:[%s683] ss:$4 sm:$0x3]
    %v4714 = vld [vmem:[%s685] ss:$4 sm:$0x3]
    %v4715 = vld [vmem:[%s687] ss:$4 sm:$0x3]
    %v4716 = vld [vmem:[%s689] ss:$4 sm:$0x3]
    %v4717 = vld [vmem:[%s691] ss:$4 sm:$0x3]
    %v4718 = vld [vmem:[%s693] ss:$4 sm:$0x3]
    %v4719 = vld [vmem:[%s695] ss:$4 sm:$0x3]
    %v4720 = vld [vmem:[%s697] ss:$4 sm:$0x3]
    %v4721 = vld [vmem:[%s699] ss:$4 sm:$0x3]
    %v4722 = vld [vmem:[%s701] ss:$4 sm:$0x3]
    %v4723 = vld [vmem:[%s703] ss:$4 sm:$0x3]
    %v4724 = vld [vmem:[%s705] ss:$4 sm:$0x3]
    %v4725 = vld [vmem:[%s707] ss:$4 sm:$0x3]
    %v4726 = vld [vmem:[%s709] ss:$4 sm:$0x3]
    %v4727 = vld [vmem:[%s711] ss:$4 sm:$0x3]
    %v4728 = vld [vmem:[%s713] ss:$4 sm:$0x3]
    %v4729 = vld [vmem:[%s715] ss:$4 sm:$0x3]
    %v4730 = vld [vmem:[%s717] ss:$4 sm:$0x3]
    %v4731 = vld [vmem:[%s719] ss:$4 sm:$0x3]
    %v4732 = vld [vmem:[%s721] ss:$4 sm:$0x3]
    %v4733 = vld [vmem:[%s723] ss:$4 sm:$0x3]
    %v4734 = vld [vmem:[%s725] ss:$4 sm:$0x3]
    %v4735 = vld [vmem:[%s727] ss:$4 sm:$0x3]
    %v4736 = vld [vmem:[%s729] ss:$4 sm:$0x3]
    %v4737 = vld [vmem:[%s731] ss:$4 sm:$0x3]
    %v4738 = vld [vmem:[%s733] ss:$4 sm:$0x3]
    %v4739 = vld [vmem:[%s735] ss:$4 sm:$0x3]
    %v4740 = vld [vmem:[%s737] ss:$4 sm:$0x3]
    %v4741 = vld [vmem:[%s739] ss:$4 sm:$0x3]
    %v4742 = vld [vmem:[%s741] ss:$4 sm:$0x3]
    %v4743 = vld [vmem:[%s743] ss:$4 sm:$0x3]
    %v4744 = vld [vmem:[%s745] ss:$4 sm:$0x3]
    %v4745 = vld [vmem:[%s747] ss:$4 sm:$0x3]
    %v4746 = vld [vmem:[%s749] ss:$4 sm:$0x3]
    %v4747 = vld [vmem:[%s751] ss:$4 sm:$0x3]
    %v4748 = vld [vmem:[%s753] ss:$4 sm:$0x3]
    %v4749 = vld [vmem:[%s755] ss:$4 sm:$0x3]
    %v4750 = vld [vmem:[%s757] ss:$4 sm:$0x3]
    %v4751 = vld [vmem:[%s759] ss:$4 sm:$0x3]
    %v4752 = vld [vmem:[%s761] ss:$4 sm:$0x3]
    %v4753 = vld [vmem:[%s763] ss:$4 sm:$0x3]
    %v4754 = vld [vmem:[%s765] ss:$4 sm:$0x3]
    %v4755 = vld [vmem:[%s767] ss:$4 sm:$0x3]
    %v4756 = vld [vmem:[%s769] ss:$4 sm:$0x3]
    %v4757 = vld [vmem:[%s771] ss:$4 sm:$0x3]
    %v4758 = vld [vmem:[%s773] ss:$4 sm:$0x3]
    %v4759 = vld [vmem:[%s775] ss:$4 sm:$0x3]
    %v4760 = vld [vmem:[%s777] ss:$4 sm:$0x3]
    %v4761 = vld [vmem:[%s779] ss:$4 sm:$0x3]
    %v4762 = vld [vmem:[%s781] ss:$4 sm:$0x3]
    %v4763 = vld [vmem:[%s783] ss:$4 sm:$0x3]
    %v4764 = vld [vmem:[%s785] ss:$4 sm:$0x3]
    %v4765 = vld [vmem:[%s787] ss:$4 sm:$0x3]
    %v4766 = vld [vmem:[%s789] ss:$4 sm:$0x3]
    %v4767 = vld [vmem:[%s791] ss:$4 sm:$0x3]
    %v4768 = vld [vmem:[%s793] ss:$4 sm:$0x3]
    %v4769 = vld [vmem:[%s795] ss:$4 sm:$0x3]
    %v4770 = vld [vmem:[%s797] ss:$4 sm:$0x3]
    %v4771 = vld [vmem:[%s799] ss:$4 sm:$0x3]
    %v4772 = vld [vmem:[%s801] ss:$4 sm:$0x3]
    %v4773 = vld [vmem:[%s803] ss:$4 sm:$0x3]
    %v4774 = vld [vmem:[%s805] ss:$4 sm:$0x3]
    %v4775 = vld [vmem:[%s807] ss:$4 sm:$0x3]
    %v4776 = vld [vmem:[%s809] ss:$4 sm:$0x3]
    %v4777 = vld [vmem:[%s811] ss:$4 sm:$0x3]
    %v4778 = vld [vmem:[%s813] ss:$4 sm:$0x3]
    %v4779 = vld [vmem:[%s815] ss:$4 sm:$0x3]
    %v4780 = vld [vmem:[%s817] ss:$4 sm:$0x3]
    %v4781 = vld [vmem:[%s819] ss:$4 sm:$0x3]
    %v4782 = vld [vmem:[%s821] ss:$4 sm:$0x3]
    %v4783 = vld [vmem:[%s823] ss:$4 sm:$0x3]
    %v4784 = vld [vmem:[%s825] ss:$4 sm:$0x3]
    %v4785 = vld [vmem:[%s827] ss:$4 sm:$0x3]
    %v4786 = vld [vmem:[%s829] ss:$4 sm:$0x3]
    %v4787 = vld [vmem:[%s831] ss:$4 sm:$0x3]
    %v4788 = vld [vmem:[%s833] ss:$4 sm:$0x3]
    %v4789 = vld [vmem:[%s835] ss:$4 sm:$0x3]
    %v4790 = vld [vmem:[%s837] ss:$4 sm:$0x3]
    %v4791 = vld [vmem:[%s839] ss:$4 sm:$0x3]
    %v4792 = vld [vmem:[%s841] ss:$4 sm:$0x3]
    %v4793 = vld [vmem:[%s843] ss:$4 sm:$0x3]
    %v4794 = vld [vmem:[%s845] ss:$4 sm:$0x3]
    %v4795 = vld [vmem:[%s847] ss:$4 sm:$0x3]
    %s4796 = sld [smem:[#allocation2 + $0x102]]
    %v4797 = vstv %s4796
    %v4798 = vmul.f32 %v4709, %v4797
    %v4799 = vmul.f32 %v4710, %v4797
    %v4800 = vmul.f32 %v4711, %v4797
    %v4801 = vmul.f32 %v4712, %v4797
    %v4802 = vmul.f32 %v4713, %v4797
    %v4803 = vmul.f32 %v4714, %v4797
    %v4804 = vmul.f32 %v4715, %v4797
    %v4805 = vmul.f32 %v4716, %v4797
    %v4806 = vmul.f32 %v4717, %v4797
    %v4807 = vmul.f32 %v4718, %v4797
    %v4808 = vmul.f32 %v4719, %v4797
    %v4809 = vmul.f32 %v4720, %v4797
    %v4810 = vmul.f32 %v4721, %v4797
    %v4811 = vmul.f32 %v4722, %v4797
    %v4812 = vmul.f32 %v4723, %v4797
    %v4813 = vmul.f32 %v4724, %v4797
    %v4814 = vmul.f32 %v4725, %v4797
    %v4815 = vmul.f32 %v4726, %v4797
    %v4816 = vmul.f32 %v4727, %v4797
    %v4817 = vmul.f32 %v4728, %v4797
    %v4818 = vmul.f32 %v4729, %v4797
    %v4819 = vmul.f32 %v4730, %v4797
    %v4820 = vmul.f32 %v4731, %v4797
    %v4821 = vmul.f32 %v4732, %v4797
    %v4822 = vmul.f32 %v4733, %v4797
    %v4823 = vmul.f32 %v4734, %v4797
    %v4824 = vmul.f32 %v4735, %v4797
    %v4825 = vmul.f32 %v4736, %v4797
    %v4826 = vmul.f32 %v4737, %v4797
    %v4827 = vmul.f32 %v4738, %v4797
    %v4828 = vmul.f32 %v4739, %v4797
    %v4829 = vmul.f32 %v4740, %v4797
    %v4830 = vmul.f32 %v4741, %v4797
    %v4831 = vmul.f32 %v4742, %v4797
    %v4832 = vmul.f32 %v4743, %v4797
    %v4833 = vmul.f32 %v4744, %v4797
    %v4834 = vmul.f32 %v4745, %v4797
    %v4835 = vmul.f32 %v4746, %v4797
    %v4836 = vmul.f32 %v4747, %v4797
    %v4837 = vmul.f32 %v4748, %v4797
    %v4838 = vmul.f32 %v4749, %v4797
    %v4839 = vmul.f32 %v4750, %v4797
    %v4840 = vmul.f32 %v4751, %v4797
    %v4841 = vmul.f32 %v4752, %v4797
    %v4842 = vmul.f32 %v4753, %v4797
    %v4843 = vmul.f32 %v4754, %v4797
    %v4844 = vmul.f32 %v4755, %v4797
    %v4845 = vmul.f32 %v4756, %v4797
    %v4846 = vmul.f32 %v4757, %v4797
    %v4847 = vmul.f32 %v4758, %v4797
    %v4848 = vmul.f32 %v4759, %v4797
    %v4849 = vmul.f32 %v4760, %v4797
    %v4850 = vmul.f32 %v4761, %v4797
    %v4851 = vmul.f32 %v4762, %v4797
    %v4852 = vmul.f32 %v4763, %v4797
    %v4853 = vmul.f32 %v4764, %v4797
    %v4854 = vmul.f32 %v4765, %v4797
    %v4855 = vmul.f32 %v4766, %v4797
    %v4856 = vmul.f32 %v4767, %v4797
    %v4857 = vmul.f32 %v4768, %v4797
    %v4858 = vmul.f32 %v4769, %v4797
    %v4859 = vmul.f32 %v4770, %v4797
    %v4860 = vmul.f32 %v4771, %v4797
    %v4861 = vmul.f32 %v4772, %v4797
    %v4862 = vmul.f32 %v4773, %v4797
    %v4863 = vmul.f32 %v4774, %v4797
    %v4864 = vmul.f32 %v4775, %v4797
    %v4865 = vmul.f32 %v4776, %v4797
    %v4866 = vmul.f32 %v4777, %v4797
    %v4867 = vmul.f32 %v4778, %v4797
    %v4868 = vmul.f32 %v4779, %v4797
    %v4869 = vmul.f32 %v4780, %v4797
    %v4870 = vmul.f32 %v4781, %v4797
    %v4871 = vmul.f32 %v4782, %v4797
    %v4872 = vmul.f32 %v4783, %v4797
    %v4873 = vmul.f32 %v4784, %v4797
    %v4874 = vmul.f32 %v4785, %v4797
    %v4875 = vmul.f32 %v4786, %v4797
    %v4876 = vmul.f32 %v4787, %v4797
    %v4877 = vmul.f32 %v4788, %v4797
    %v4878 = vmul.f32 %v4789, %v4797
    %v4879 = vmul.f32 %v4790, %v4797
    %v4880 = vmul.f32 %v4791, %v4797
    %v4881 = vmul.f32 %v4792, %v4797
    %v4882 = vmul.f32 %v4793, %v4797
    %v4883 = vmul.f32 %v4794, %v4797
    %v4884 = vmul.f32 %v4795, %v4797
    %v4885 = vadd.f32 %v4622, %v4798
    %v4886 = vadd.f32 %v4623, %v4799
    %v4887 = vadd.f32 %v4624, %v4800
    %v4888 = vadd.f32 %v4625, %v4801
    %v4889 = vadd.f32 %v4626, %v4802
    %v4890 = vadd.f32 %v4627, %v4803
    %v4891 = vadd.f32 %v4628, %v4804
    %v4892 = vadd.f32 %v4629, %v4805
    %v4893 = vadd.f32 %v4630, %v4806
    %v4894 = vadd.f32 %v4631, %v4807
    %v4895 = vadd.f32 %v4632, %v4808
    %v4896 = vadd.f32 %v4633, %v4809
    %v4897 = vadd.f32 %v4634, %v4810
    %v4898 = vadd.f32 %v4635, %v4811
    %v4899 = vadd.f32 %v4636, %v4812
    %v4900 = vadd.f32 %v4637, %v4813
    %v4901 = vadd.f32 %v4638, %v4814
    %v4902 = vadd.f32 %v4639, %v4815
    %v4903 = vadd.f32 %v4640, %v4816
    %v4904 = vadd.f32 %v4641, %v4817
    %v4905 = vadd.f32 %v4642, %v4818
    %v4906 = vadd.f32 %v4643, %v4819
    %v4907 = vadd.f32 %v4644, %v4820
    %v4908 = vadd.f32 %v4645, %v4821
    %v4909 = vadd.f32 %v4646, %v4822
    %v4910 = vadd.f32 %v4647, %v4823
    %v4911 = vadd.f32 %v4648, %v4824
    %v4912 = vadd.f32 %v4649, %v4825
    %v4913 = vadd.f32 %v4650, %v4826
    %v4914 = vadd.f32 %v4651, %v4827
    %v4915 = vadd.f32 %v4652, %v4828
    %v4916 = vadd.f32 %v4653, %v4829
    %v4917 = vadd.f32 %v4654, %v4830
    %v4918 = vadd.f32 %v4655, %v4831
    %v4919 = vadd.f32 %v4656, %v4832
    %v4920 = vadd.f32 %v4657, %v4833
    %v4921 = vadd.f32 %v4658, %v4834
    %v4922 = vadd.f32 %v4659, %v4835
    %v4923 = vadd.f32 %v4660, %v4836
    %v4924 = vadd.f32 %v4661, %v4837
    %v4925 = vadd.f32 %v4662, %v4838
    %v4926 = vadd.f32 %v4663, %v4839
    %v4927 = vadd.f32 %v4664, %v4840
    %v4928 = vadd.f32 %v4665, %v4841
    %v4929 = vadd.f32 %v4666, %v4842
    %v4930 = vadd.f32 %v4667, %v4843
    %v4931 = vadd.f32 %v4668, %v4844
    %v4932 = vadd.f32 %v4669, %v4845
    %v4933 = vadd.f32 %v4670, %v4846
    %v4934 = vadd.f32 %v4671, %v4847
    %v4935 = vadd.f32 %v4672, %v4848
    %v4936 = vadd.f32 %v4673, %v4849
    %v4937 = vadd.f32 %v4674, %v4850
    %v4938 = vadd.f32 %v4675, %v4851
    %v4939 = vadd.f32 %v4676, %v4852
    %v4940 = vadd.f32 %v4677, %v4853
    %v4941 = vadd.f32 %v4678, %v4854
    %v4942 = vadd.f32 %v4679, %v4855
    %v4943 = vadd.f32 %v4680, %v4856
    %v4944 = vadd.f32 %v4681, %v4857
    %v4945 = vadd.f32 %v4682, %v4858
    %v4946 = vadd.f32 %v4683, %v4859
    %v4947 = vadd.f32 %v4684, %v4860
    %v4948 = vadd.f32 %v4685, %v4861
    %v4949 = vadd.f32 %v4686, %v4862
    %v4950 = vadd.f32 %v4687, %v4863
    %v4951 = vadd.f32 %v4688, %v4864
    %v4952 = vadd.f32 %v4689, %v4865
    %v4953 = vadd.f32 %v4690, %v4866
    %v4954 = vadd.f32 %v4691, %v4867
    %v4955 = vadd.f32 %v4692, %v4868
    %v4956 = vadd.f32 %v4693, %v4869
    %v4957 = vadd.f32 %v4694, %v4870
    %v4958 = vadd.f32 %v4695, %v4871
    %v4959 = vadd.f32 %v4696, %v4872
    %v4960 = vadd.f32 %v4697, %v4873
    %v4961 = vadd.f32 %v4698, %v4874
    %v4962 = vadd.f32 %v4699, %v4875
    %v4963 = vadd.f32 %v4700, %v4876
    %v4964 = vadd.f32 %v4701, %v4877
    %v4965 = vadd.f32 %v4702, %v4878
    %v4966 = vadd.f32 %v4703, %v4879
    %v4967 = vadd.f32 %v4704, %v4880
    %v4968 = vadd.f32 %v4705, %v4881
    %v4969 = vadd.f32 %v4706, %v4882
    %v4970 = vadd.f32 %v4707, %v4883
    %v4971 = vadd.f32 %v4708, %v4884
    %vm4972 = vcmp.gt.f32.partialorder %v4885, 0.0
    %vm4973 = vcmp.gt.f32.partialorder %v4886, 0.0
    %vm4974 = vcmp.gt.f32.partialorder %v4887, 0.0
    %vm4975 = vcmp.gt.f32.partialorder %v4888, 0.0
    %vm4976 = vcmp.gt.f32.partialorder %v4889, 0.0
    %vm4977 = vcmp.gt.f32.partialorder %v4890, 0.0
    %vm4978 = vcmp.gt.f32.partialorder %v4891, 0.0
    %vm4979 = vcmp.gt.f32.partialorder %v4892, 0.0
    %vm4980 = vcmp.gt.f32.partialorder %v4893, 0.0
    %vm4981 = vcmp.gt.f32.partialorder %v4894, 0.0
    %vm4982 = vcmp.gt.f32.partialorder %v4895, 0.0
    %vm4983 = vcmp.gt.f32.partialorder %v4896, 0.0
    %vm4984 = vcmp.gt.f32.partialorder %v4897, 0.0
    %vm4985 = vcmp.gt.f32.partialorder %v4898, 0.0
    %vm4986 = vcmp.gt.f32.partialorder %v4899, 0.0
    %vm4987 = vcmp.gt.f32.partialorder %v4900, 0.0
    %vm4988 = vcmp.gt.f32.partialorder %v4901, 0.0
    %vm4989 = vcmp.gt.f32.partialorder %v4902, 0.0
    %vm4990 = vcmp.gt.f32.partialorder %v4903, 0.0
    %vm4991 = vcmp.gt.f32.partialorder %v4904, 0.0
    %vm4992 = vcmp.gt.f32.partialorder %v4905, 0.0
    %vm4993 = vcmp.gt.f32.partialorder %v4906, 0.0
    %vm4994 = vcmp.gt.f32.partialorder %v4907, 0.0
    %vm4995 = vcmp.gt.f32.partialorder %v4908, 0.0
    %vm4996 = vcmp.gt.f32.partialorder %v4909, 0.0
    %vm4997 = vcmp.gt.f32.partialorder %v4910, 0.0
    %vm4998 = vcmp.gt.f32.partialorder %v4911, 0.0
    %vm4999 = vcmp.gt.f32.partialorder %v4912, 0.0
    %vm5000 = vcmp.gt.f32.partialorder %v4913, 0.0
    %vm5001 = vcmp.gt.f32.partialorder %v4914, 0.0
    %vm5002 = vcmp.gt.f32.partialorder %v4915, 0.0
    %vm5003 = vcmp.gt.f32.partialorder %v4916, 0.0
    %vm5004 = vcmp.gt.f32.partialorder %v4917, 0.0
    %vm5005 = vcmp.gt.f32.partialorder %v4918, 0.0
    %vm5006 = vcmp.gt.f32.partialorder %v4919, 0.0
    %vm5007 = vcmp.gt.f32.partialorder %v4920, 0.0
    %vm5008 = vcmp.gt.f32.partialorder %v4921, 0.0
    %vm5009 = vcmp.gt.f32.partialorder %v4922, 0.0
    %vm5010 = vcmp.gt.f32.partialorder %v4923, 0.0
    %vm5011 = vcmp.gt.f32.partialorder %v4924, 0.0
    %vm5012 = vcmp.gt.f32.partialorder %v4925, 0.0
    %vm5013 = vcmp.gt.f32.partialorder %v4926, 0.0
    %vm5014 = vcmp.gt.f32.partialorder %v4927, 0.0
    %vm5015 = vcmp.gt.f32.partialorder %v4928, 0.0
    %vm5016 = vcmp.gt.f32.partialorder %v4929, 0.0
    %vm5017 = vcmp.gt.f32.partialorder %v4930, 0.0
    %vm5018 = vcmp.gt.f32.partialorder %v4931, 0.0
    %vm5019 = vcmp.gt.f32.partialorder %v4932, 0.0
    %vm5020 = vcmp.gt.f32.partialorder %v4933, 0.0
    %vm5021 = vcmp.gt.f32.partialorder %v4934, 0.0
    %vm5022 = vcmp.gt.f32.partialorder %v4935, 0.0
    %vm5023 = vcmp.gt.f32.partialorder %v4936, 0.0
    %vm5024 = vcmp.gt.f32.partialorder %v4937, 0.0
    %vm5025 = vcmp.gt.f32.partialorder %v4938, 0.0
    %vm5026 = vcmp.gt.f32.partialorder %v4939, 0.0
    %vm5027 = vcmp.gt.f32.partialorder %v4940, 0.0
    %vm5028 = vcmp.gt.f32.partialorder %v4941, 0.0
    %vm5029 = vcmp.gt.f32.partialorder %v4942, 0.0
    %vm5030 = vcmp.gt.f32.partialorder %v4943, 0.0
    %vm5031 = vcmp.gt.f32.partialorder %v4944, 0.0
    %vm5032 = vcmp.gt.f32.partialorder %v4945, 0.0
    %vm5033 = vcmp.gt.f32.partialorder %v4946, 0.0
    %vm5034 = vcmp.gt.f32.partialorder %v4947, 0.0
    %vm5035 = vcmp.gt.f32.partialorder %v4948, 0.0
    %vm5036 = vcmp.gt.f32.partialorder %v4949, 0.0
    %vm5037 = vcmp.gt.f32.partialorder %v4950, 0.0
    %vm5038 = vcmp.gt.f32.partialorder %v4951, 0.0
    %vm5039 = vcmp.gt.f32.partialorder %v4952, 0.0
    %vm5040 = vcmp.gt.f32.partialorder %v4953, 0.0
    %vm5041 = vcmp.gt.f32.partialorder %v4954, 0.0
    %vm5042 = vcmp.gt.f32.partialorder %v4955, 0.0
    %vm5043 = vcmp.gt.f32.partialorder %v4956, 0.0
    %vm5044 = vcmp.gt.f32.partialorder %v4957, 0.0
    %vm5045 = vcmp.gt.f32.partialorder %v4958, 0.0
    %vm5046 = vcmp.gt.f32.partialorder %v4959, 0.0
    %vm5047 = vcmp.gt.f32.partialorder %v4960, 0.0
    %vm5048 = vcmp.gt.f32.partialorder %v4961, 0.0
    %vm5049 = vcmp.gt.f32.partialorder %v4962, 0.0
    %vm5050 = vcmp.gt.f32.partialorder %v4963, 0.0
    %vm5051 = vcmp.gt.f32.partialorder %v4964, 0.0
    %vm5052 = vcmp.gt.f32.partialorder %v4965, 0.0
    %vm5053 = vcmp.gt.f32.partialorder %v4966, 0.0
    %vm5054 = vcmp.gt.f32.partialorder %v4967, 0.0
    %vm5055 = vcmp.gt.f32.partialorder %v4968, 0.0
    %vm5056 = vcmp.gt.f32.partialorder %v4969, 0.0
    %vm5057 = vcmp.gt.f32.partialorder %v4970, 0.0
    %vm5058 = vcmp.gt.f32.partialorder %v4971, 0.0
    %v5059 = vmul.f32 %v4885, -0.153
    %v5060 = vmul.f32 %v4886, -0.153
    %v5061 = vmul.f32 %v4887, -0.153
    %v5062 = vmul.f32 %v4888, -0.153
    %v5063 = vmul.f32 %v4889, -0.153
    %v5064 = vmul.f32 %v4890, -0.153
    %v5065 = vmul.f32 %v4891, -0.153
    %v5066 = vmul.f32 %v4892, -0.153
    %v5067 = vmul.f32 %v4893, -0.153
    %v5068 = vmul.f32 %v4894, -0.153
    %v5069 = vmul.f32 %v4895, -0.153
    %v5070 = vmul.f32 %v4896, -0.153
    %v5071 = vmul.f32 %v4897, -0.153
    %v5072 = vmul.f32 %v4898, -0.153
    %v5073 = vmul.f32 %v4899, -0.153
    %v5074 = vmul.f32 %v4900, -0.153
    %v5075 = vmul.f32 %v4901, -0.153
    %v5076 = vmul.f32 %v4902, -0.153
    %v5077 = vmul.f32 %v4903, -0.153
    %v5078 = vmul.f32 %v4904, -0.153
    %v5079 = vmul.f32 %v4905, -0.153
    %v5080 = vmul.f32 %v4906, -0.153
    %v5081 = vmul.f32 %v4907, -0.153
    %v5082 = vmul.f32 %v4908, -0.153
    %v5083 = vmul.f32 %v4909, -0.153
    %v5084 = vmul.f32 %v4910, -0.153
    %v5085 = vmul.f32 %v4911, -0.153
    %v5086 = vmul.f32 %v4912, -0.153
    %v5087 = vmul.f32 %v4913, -0.153
    %v5088 = vmul.f32 %v4914, -0.153
    %v5089 = vmul.f32 %v4915, -0.153
    %v5090 = vmul.f32 %v4916, -0.153
    %v5091 = vmul.f32 %v4917, -0.153
    %v5092 = vmul.f32 %v4918, -0.153
    %v5093 = vmul.f32 %v4919, -0.153
    %v5094 = vmul.f32 %v4920, -0.153
    %v5095 = vmul.f32 %v4921, -0.153
    %v5096 = vmul.f32 %v4922, -0.153
    %v5097 = vmul.f32 %v4923, -0.153
    %v5098 = vmul.f32 %v4924, -0.153
    %v5099 = vmul.f32 %v4925, -0.153
    %v5100 = vmul.f32 %v4926, -0.153
    %v5101 = vmul.f32 %v4927, -0.153
    %v5102 = vmul.f32 %v4928, -0.153
    %v5103 = vmul.f32 %v4929, -0.153
    %v5104 = vmul.f32 %v4930, -0.153
    %v5105 = vmul.f32 %v4931, -0.153
    %v5106 = vmul.f32 %v4932, -0.153
    %v5107 = vmul.f32 %v4933, -0.153
    %v5108 = vmul.f32 %v4934, -0.153
    %v5109 = vmul.f32 %v4935, -0.153
    %v5110 = vmul.f32 %v4936, -0.153
    %v5111 = vmul.f32 %v4937, -0.153
    %v5112 = vmul.f32 %v4938, -0.153
    %v5113 = vmul.f32 %v4939, -0.153
    %v5114 = vmul.f32 %v4940, -0.153
    %v5115 = vmul.f32 %v4941, -0.153
    %v5116 = vmul.f32 %v4942, -0.153
    %v5117 = vmul.f32 %v4943, -0.153
    %v5118 = vmul.f32 %v4944, -0.153
    %v5119 = vmul.f32 %v4945, -0.153
    %v5120 = vmul.f32 %v4946, -0.153
    %v5121 = vmul.f32 %v4947, -0.153
    %v5122 = vmul.f32 %v4948, -0.153
    %v5123 = vmul.f32 %v4949, -0.153
    %v5124 = vmul.f32 %v4950, -0.153
    %v5125 = vmul.f32 %v4951, -0.153
    %v5126 = vmul.f32 %v4952, -0.153
    %v5127 = vmul.f32 %v4953, -0.153
    %v5128 = vmul.f32 %v4954, -0.153
    %v5129 = vmul.f32 %v4955, -0.153
    %v5130 = vmul.f32 %v4956, -0.153
    %v5131 = vmul.f32 %v4957, -0.153
    %v5132 = vmul.f32 %v4958, -0.153
    %v5133 = vmul.f32 %v4959, -0.153
    %v5134 = vmul.f32 %v4960, -0.153
    %v5135 = vmul.f32 %v4961, -0.153
    %v5136 = vmul.f32 %v4962, -0.153
    %v5137 = vmul.f32 %v4963, -0.153
    %v5138 = vmul.f32 %v4964, -0.153
    %v5139 = vmul.f32 %v4965, -0.153
    %v5140 = vmul.f32 %v4966, -0.153
    %v5141 = vmul.f32 %v4967, -0.153
    %v5142 = vmul.f32 %v4968, -0.153
    %v5143 = vmul.f32 %v4969, -0.153
    %v5144 = vmul.f32 %v4970, -0.153
    %v5145 = vmul.f32 %v4971, -0.153
    %v5146 = vsel %vm4972, %v4885, %v5059
    %v5147 = vsel %vm4973, %v4886, %v5060
    %v5148 = vsel %vm4974, %v4887, %v5061
    %v5149 = vsel %vm4975, %v4888, %v5062
    %v5150 = vsel %vm4976, %v4889, %v5063
    %v5151 = vsel %vm4977, %v4890, %v5064
    %v5152 = vsel %vm4978, %v4891, %v5065
    %v5153 = vsel %vm4979, %v4892, %v5066
    %v5154 = vsel %vm4980, %v4893, %v5067
    %v5155 = vsel %vm4981, %v4894, %v5068
    %v5156 = vsel %vm4982, %v4895, %v5069
    %v5157 = vsel %vm4983, %v4896, %v5070
    %v5158 = vsel %vm4984, %v4897, %v5071
    %v5159 = vsel %vm4985, %v4898, %v5072
    %v5160 = vsel %vm4986, %v4899, %v5073
    %v5161 = vsel %vm4987, %v4900, %v5074
    %v5162 = vsel %vm4988, %v4901, %v5075
    %v5163 = vsel %vm4989, %v4902, %v5076
    %v5164 = vsel %vm4990, %v4903, %v5077
    %v5165 = vsel %vm4991, %v4904, %v5078
    %v5166 = vsel %vm4992, %v4905, %v5079
    %v5167 = vsel %vm4993, %v4906, %v5080
    %v5168 = vsel %vm4994, %v4907, %v5081
    %v5169 = vsel %vm4995, %v4908, %v5082
    %v5170 = vsel %vm4996, %v4909, %v5083
    %v5171 = vsel %vm4997, %v4910, %v5084
    %v5172 = vsel %vm4998, %v4911, %v5085
    %v5173 = vsel %vm4999, %v4912, %v5086
    %v5174 = vsel %vm5000, %v4913, %v5087
    %v5175 = vsel %vm5001, %v4914, %v5088
    %v5176 = vsel %vm5002, %v4915, %v5089
    %v5177 = vsel %vm5003, %v4916, %v5090
    %v5178 = vsel %vm5004, %v4917, %v5091
    %v5179 = vsel %vm5005, %v4918, %v5092
    %v5180 = vsel %vm5006, %v4919, %v5093
    %v5181 = vsel %vm5007, %v4920, %v5094
    %v5182 = vsel %vm5008, %v4921, %v5095
    %v5183 = vsel %vm5009, %v4922, %v5096
    %v5184 = vsel %vm5010, %v4923, %v5097
    %v5185 = vsel %vm5011, %v4924, %v5098
    %v5186 = vsel %vm5012, %v4925, %v5099
    %v5187 = vsel %vm5013, %v4926, %v5100
    %v5188 = vsel %vm5014, %v4927, %v5101
    %v5189 = vsel %vm5015, %v4928, %v5102
    %v5190 = vsel %vm5016, %v4929, %v5103
    %v5191 = vsel %vm5017, %v4930, %v5104
    %v5192 = vsel %vm5018, %v4931, %v5105
    %v5193 = vsel %vm5019, %v4932, %v5106
    %v5194 = vsel %vm5020, %v4933, %v5107
    %v5195 = vsel %vm5021, %v4934, %v5108
    %v5196 = vsel %vm5022, %v4935, %v5109
    %v5197 = vsel %vm5023, %v4936, %v5110
    %v5198 = vsel %vm5024, %v4937, %v5111
    %v5199 = vsel %vm5025, %v4938, %v5112
    %v5200 = vsel %vm5026, %v4939, %v5113
    %v5201 = vsel %vm5027, %v4940, %v5114
    %v5202 = vsel %vm5028, %v4941, %v5115
    %v5203 = vsel %vm5029, %v4942, %v5116
    %v5204 = vsel %vm5030, %v4943, %v5117
    %v5205 = vsel %vm5031, %v4944, %v5118
    %v5206 = vsel %vm5032, %v4945, %v5119
    %v5207 = vsel %vm5033, %v4946, %v5120
    %v5208 = vsel %vm5034, %v4947, %v5121
    %v5209 = vsel %vm5035, %v4948, %v5122
    %v5210 = vsel %vm5036, %v4949, %v5123
    %v5211 = vsel %vm5037, %v4950, %v5124
    %v5212 = vsel %vm5038, %v4951, %v5125
    %v5213 = vsel %vm5039, %v4952, %v5126
    %v5214 = vsel %vm5040, %v4953, %v5127
    %v5215 = vsel %vm5041, %v4954, %v5128
    %v5216 = vsel %vm5042, %v4955, %v5129
    %v5217 = vsel %vm5043, %v4956, %v5130
    %v5218 = vsel %vm5044, %v4957, %v5131
    %v5219 = vsel %vm5045, %v4958, %v5132
    %v5220 = vsel %vm5046, %v4959, %v5133
    %v5221 = vsel %vm5047, %v4960, %v5134
    %v5222 = vsel %vm5048, %v4961, %v5135
    %v5223 = vsel %vm5049, %v4962, %v5136
    %v5224 = vsel %vm5050, %v4963, %v5137
    %v5225 = vsel %vm5051, %v4964, %v5138
    %v5226 = vsel %vm5052, %v4965, %v5139
    %v5227 = vsel %vm5053, %v4966, %v5140
    %v5228 = vsel %vm5054, %v4967, %v5141
    %v5229 = vsel %vm5055, %v4968, %v5142
    %v5230 = vsel %vm5056, %v4969, %v5143
    %v5231 = vsel %vm5057, %v4970, %v5144
    %v5232 = vsel %vm5058, %v4971, %v5145
    %v5233 = vmul.f32 %v5146, %v1312
    %v5234 = vmul.f32 %v5147, %v1326
    %v5235 = vmul.f32 %v5148, %v1334
    %v5236 = vmul.f32 %v5149, %v1336
    %v5237 = vmul.f32 %v5150, %v1319
    %v5238 = vmul.f32 %v5151, %v1333
    %v5239 = vmul.f32 %v5152, %v1335
    %v5240 = vmul.f32 %v5153, %v1337
    %v5241 = vmul.f32 %v5154, %v1312
    %v5242 = vmul.f32 %v5155, %v1326
    %v5243 = vmul.f32 %v5156, %v1334
    %v5244 = vmul.f32 %v5157, %v1336
    %v5245 = vmul.f32 %v5158, %v1319
    %v5246 = vmul.f32 %v5159, %v1333
    %v5247 = vmul.f32 %v5160, %v1335
    %v5248 = vmul.f32 %v5161, %v1337
    %v5249 = vmul.f32 %v5162, %v1312
    %v5250 = vmul.f32 %v5163, %v1326
    %v5251 = vmul.f32 %v5164, %v1334
    %v5252 = vmul.f32 %v5165, %v1336
    %v5253 = vmul.f32 %v5166, %v1319
    %v5254 = vmul.f32 %v5167, %v1333
    %v5255 = vmul.f32 %v5168, %v1335
    %v5256 = vmul.f32 %v5169, %v1337
    %v5257 = vmul.f32 %v5170, %v1312
    %v5258 = vmul.f32 %v5171, %v1326
    %v5259 = vmul.f32 %v5172, %v1334
    %v5260 = vmul.f32 %v5173, %v1336
    %v5261 = vmul.f32 %v5174, %v1319
    %v5262 = vmul.f32 %v5175, %v1333
    %v5263 = vmul.f32 %v5176, %v1335
    %v5264 = vmul.f32 %v5177, %v1337
    %v5265 = vmul.f32 %v5178, %v1312
    %v5266 = vmul.f32 %v5179, %v1326
    %v5267 = vmul.f32 %v5180, %v1334
    %v5268 = vmul.f32 %v5181, %v1336
    %v5269 = vmul.f32 %v5182, %v1319
    %v5270 = vmul.f32 %v5183, %v1333
    %v5271 = vmul.f32 %v5184, %v1335
    %v5272 = vmul.f32 %v5185, %v1337
    %v5273 = vmul.f32 %v5186, %v1312
    %v5274 = vmul.f32 %v5187, %v1326
    %v5275 = vmul.f32 %v5188, %v1334
    %v5276 = vmul.f32 %v5189, %v1336
    %v5277 = vmul.f32 %v5190, %v1319
    %v5278 = vmul.f32 %v5191, %v1333
    %v5279 = vmul.f32 %v5192, %v1335
    %v5280 = vmul.f32 %v5193, %v1337
    %v5281 = vmul.f32 %v5194, %v1312
    %v5282 = vmul.f32 %v5195, %v1326
    %v5283 = vmul.f32 %v5196, %v1334
    %v5284 = vmul.f32 %v5197, %v1336
    %v5285 = vmul.f32 %v5198, %v1319
    %v5286 = vmul.f32 %v5199, %v1333
    %v5287 = vmul.f32 %v5200, %v1335
    %v5288 = vmul.f32 %v5201, %v1337
    %v5289 = vmul.f32 %v5202, %v1312
    %v5290 = vmul.f32 %v5203, %v1326
    %v5291 = vmul.f32 %v5204, %v1334
    %v5292 = vmul.f32 %v5205, %v1336
    %v5293 = vmul.f32 %v5206, %v1319
    %v5294 = vmul.f32 %v5207, %v1333
    %v5295 = vmul.f32 %v5208, %v1335
    %v5296 = vmul.f32 %v5209, %v1337
    %v5297 = vmul.f32 %v5210, %v1312
    %v5298 = vmul.f32 %v5211, %v1326
    %v5299 = vmul.f32 %v5212, %v1334
    %v5300 = vmul.f32 %v5213, %v1336
    %v5301 = vmul.f32 %v5214, %v1319
    %v5302 = vmul.f32 %v5215, %v1333
    %v5303 = vmul.f32 %v5216, %v1335
    %v5304 = vmul.f32 %v5217, %v1337
    %v5305 = vmul.f32 %v5218, %v1312
    %v5306 = vmul.f32 %v5219, %v1326
    %v5307 = vmul.f32 %v5220, %v1334
    %v5308 = vmul.f32 %v5221, %v1336
    %v5309 = vmul.f32 %v5222, %v1319
    %v5310 = vmul.f32 %v5223, %v1333
    %v5311 = vmul.f32 %v5224, %v1335
    %v5312 = vmul.f32 %v5225, %v1337
    %v5313 = vmul.f32 %v5226, %v1312
    %v5314 = vmul.f32 %v5227, %v1326
    %v5315 = vmul.f32 %v5228, %v1334
    %v5316 = vmul.f32 %v5229, %v1336
    %v5317 = vmul.f32 %v5230, %v1319
    %v5318 = vmul.f32 %v5231, %v1333
    %v5319 = vmul.f32 %v5232, %v1335
    %v5407 = vcombine.low %v5233, %v5234
    %v5408 = vcombine.low %v5235, %v5236
    %v5409 = vcombine.low %v5237, %v5238
    %v5410 = vcombine.low %v5239, %v5240
    %v5412 = vunpack.c.l.s4 1966171168
    %v5413 = vunpack.c.0.s8 %v5412
    %v5414 = vlaneseq
    %v5415 = vshrl.u32 %v5414, 7
    %v5416 = vsub.s32 %v5413, %v5415
    %v5417 = vrot.slane %v5407, %v5416
    %v5419 = vunpack.c.l.s4 1966171168
    %v5420 = vunpack.c.0.s8 %v5419
    %v5421 = vlaneseq
    %v5422 = vshrl.u32 %v5421, 7
    %v5423 = vsub.s32 %v5420, %v5422
    %v5424 = vrot.slane %v5408, %v5423
    %v5426 = vunpack.c.l.s4 1966171168
    %v5427 = vunpack.c.0.s8 %v5426
    %v5428 = vlaneseq
    %v5429 = vshrl.u32 %v5428, 7
    %v5430 = vsub.s32 %v5427, %v5429
    %v5431 = vrot.slane %v5409, %v5430
    %v5433 = vunpack.c.l.s4 1966171168
    %v5434 = vunpack.c.0.s8 %v5433
    %v5435 = vlaneseq
    %v5436 = vshrl.u32 %v5435, 7
    %v5437 = vsub.s32 %v5434, %v5436
    %v5438 = vrot.slane %v5410, %v5437
    %v5439 = vcombine.low %v5417, %v5424
    %v5440 = vcombine.high %v5417, %v5424
    %v5441 = vcombine.low %v5431, %v5438
    %v5442 = vcombine.high %v5431, %v5438
    %v5444 = vunpack.c.l.s4 1966171168
    %v5445 = vunpack.c.0.s8 %v5444
    %v5446 = vlaneseq
    %v5447 = vshrl.u32 %v5446, 7
    %v5448 = vsub.s32 %v5445, %v5447
    %v5449 = vrot.slane %v5439, %v5448
    %v5451 = vunpack.c.l.s4 1966171168
    %v5452 = vunpack.c.0.s8 %v5451
    %v5453 = vlaneseq
    %v5454 = vshrl.u32 %v5453, 7
    %v5455 = vsub.s32 %v5452, %v5454
    %v5456 = vrot.slane %v5440, %v5455
    %v5458 = vunpack.c.l.s4 1966171168
    %v5459 = vunpack.c.0.s8 %v5458
    %v5460 = vlaneseq
    %v5461 = vshrl.u32 %v5460, 7
    %v5462 = vsub.s32 %v5459, %v5461
    %v5463 = vrot.slane %v5441, %v5462
    %v5465 = vunpack.c.l.s4 1966171168
    %v5466 = vunpack.c.0.s8 %v5465
    %v5467 = vlaneseq
    %v5468 = vshrl.u32 %v5467, 7
    %v5469 = vsub.s32 %v5466, %v5468
    %v5470 = vrot.slane %v5442, %v5469
    %v5471 = vcombine.low %v5449, %v5463
    %v5472 = vcombine.low %v5456, %v5470
    %v5473 = vcombine.low %v5241, %v5242
    %v5474 = vcombine.low %v5243, %v5244
    %v5475 = vcombine.low %v5245, %v5246
    %v5476 = vcombine.low %v5247, %v5248
    %v5478 = vunpack.c.l.s4 1966171168
    %v5479 = vunpack.c.0.s8 %v5478
    %v5480 = vlaneseq
    %v5481 = vshrl.u32 %v5480, 7
    %v5482 = vsub.s32 %v5479, %v5481
    %v5483 = vrot.slane %v5473, %v5482
    %v5485 = vunpack.c.l.s4 1966171168
    %v5486 = vunpack.c.0.s8 %v5485
    %v5487 = vlaneseq
    %v5488 = vshrl.u32 %v5487, 7
    %v5489 = vsub.s32 %v5486, %v5488
    %v5490 = vrot.slane %v5474, %v5489
    %v5492 = vunpack.c.l.s4 1966171168
    %v5493 = vunpack.c.0.s8 %v5492
    %v5494 = vlaneseq
    %v5495 = vshrl.u32 %v5494, 7
    %v5496 = vsub.s32 %v5493, %v5495
    %v5497 = vrot.slane %v5475, %v5496
    %v5499 = vunpack.c.l.s4 1966171168
    %v5500 = vunpack.c.0.s8 %v5499
    %v5501 = vlaneseq
    %v5502 = vshrl.u32 %v5501, 7
    %v5503 = vsub.s32 %v5500, %v5502
    %v5504 = vrot.slane %v5476, %v5503
    %v5505 = vcombine.low %v5483, %v5490
    %v5506 = vcombine.high %v5483, %v5490
    %v5507 = vcombine.low %v5497, %v5504
    %v5508 = vcombine.high %v5497, %v5504
    %v5510 = vunpack.c.l.s4 1966171168
    %v5511 = vunpack.c.0.s8 %v5510
    %v5512 = vlaneseq
    %v5513 = vshrl.u32 %v5512, 7
    %v5514 = vsub.s32 %v5511, %v5513
    %v5515 = vrot.slane %v5505, %v5514
    %v5517 = vunpack.c.l.s4 1966171168
    %v5518 = vunpack.c.0.s8 %v5517
    %v5519 = vlaneseq
    %v5520 = vshrl.u32 %v5519, 7
    %v5521 = vsub.s32 %v5518, %v5520
    %v5522 = vrot.slane %v5506, %v5521
    %v5524 = vunpack.c.l.s4 1966171168
    %v5525 = vunpack.c.0.s8 %v5524
    %v5526 = vlaneseq
    %v5527 = vshrl.u32 %v5526, 7
    %v5528 = vsub.s32 %v5525, %v5527
    %v5529 = vrot.slane %v5507, %v5528
    %v5531 = vunpack.c.l.s4 1966171168
    %v5532 = vunpack.c.0.s8 %v5531
    %v5533 = vlaneseq
    %v5534 = vshrl.u32 %v5533, 7
    %v5535 = vsub.s32 %v5532, %v5534
    %v5536 = vrot.slane %v5508, %v5535
    %v5537 = vcombine.low %v5515, %v5529
    %v5538 = vcombine.low %v5522, %v5536
    %v5539 = vcombine.low %v5249, %v5250
    %v5540 = vcombine.low %v5251, %v5252
    %v5541 = vcombine.low %v5253, %v5254
    %v5542 = vcombine.low %v5255, %v5256
    %v5544 = vunpack.c.l.s4 1966171168
    %v5545 = vunpack.c.0.s8 %v5544
    %v5546 = vlaneseq
    %v5547 = vshrl.u32 %v5546, 7
    %v5548 = vsub.s32 %v5545, %v5547
    %v5549 = vrot.slane %v5539, %v5548
    %v5551 = vunpack.c.l.s4 1966171168
    %v5552 = vunpack.c.0.s8 %v5551
    %v5553 = vlaneseq
    %v5554 = vshrl.u32 %v5553, 7
    %v5555 = vsub.s32 %v5552, %v5554
    %v5556 = vrot.slane %v5540, %v5555
    %v5558 = vunpack.c.l.s4 1966171168
    %v5559 = vunpack.c.0.s8 %v5558
    %v5560 = vlaneseq
    %v5561 = vshrl.u32 %v5560, 7
    %v5562 = vsub.s32 %v5559, %v5561
    %v5563 = vrot.slane %v5541, %v5562
    %v5565 = vunpack.c.l.s4 1966171168
    %v5566 = vunpack.c.0.s8 %v5565
    %v5567 = vlaneseq
    %v5568 = vshrl.u32 %v5567, 7
    %v5569 = vsub.s32 %v5566, %v5568
    %v5570 = vrot.slane %v5542, %v5569
    %v5571 = vcombine.low %v5549, %v5556
    %v5572 = vcombine.high %v5549, %v5556
    %v5573 = vcombine.low %v5563, %v5570
    %v5574 = vcombine.high %v5563, %v5570
    %v5576 = vunpack.c.l.s4 1966171168
    %v5577 = vunpack.c.0.s8 %v5576
    %v5578 = vlaneseq
    %v5579 = vshrl.u32 %v5578, 7
    %v5580 = vsub.s32 %v5577, %v5579
    %v5581 = vrot.slane %v5571, %v5580
    %v5583 = vunpack.c.l.s4 1966171168
    %v5584 = vunpack.c.0.s8 %v5583
    %v5585 = vlaneseq
    %v5586 = vshrl.u32 %v5585, 7
    %v5587 = vsub.s32 %v5584, %v5586
    %v5588 = vrot.slane %v5572, %v5587
    %v5590 = vunpack.c.l.s4 1966171168
    %v5591 = vunpack.c.0.s8 %v5590
    %v5592 = vlaneseq
    %v5593 = vshrl.u32 %v5592, 7
    %v5594 = vsub.s32 %v5591, %v5593
    %v5595 = vrot.slane %v5573, %v5594
    %v5597 = vunpack.c.l.s4 1966171168
    %v5598 = vunpack.c.0.s8 %v5597
    %v5599 = vlaneseq
    %v5600 = vshrl.u32 %v5599, 7
    %v5601 = vsub.s32 %v5598, %v5600
    %v5602 = vrot.slane %v5574, %v5601
    %v5603 = vcombine.low %v5581, %v5595
    %v5604 = vcombine.low %v5588, %v5602
    %v5605 = vcombine.low %v5257, %v5258
    %v5606 = vcombine.low %v5259, %v5260
    %v5607 = vcombine.low %v5261, %v5262
    %v5608 = vcombine.low %v5263, %v5264
    %v5610 = vunpack.c.l.s4 1966171168
    %v5611 = vunpack.c.0.s8 %v5610
    %v5612 = vlaneseq
    %v5613 = vshrl.u32 %v5612, 7
    %v5614 = vsub.s32 %v5611, %v5613
    %v5615 = vrot.slane %v5605, %v5614
    %v5617 = vunpack.c.l.s4 1966171168
    %v5618 = vunpack.c.0.s8 %v5617
    %v5619 = vlaneseq
    %v5620 = vshrl.u32 %v5619, 7
    %v5621 = vsub.s32 %v5618, %v5620
    %v5622 = vrot.slane %v5606, %v5621
    %v5624 = vunpack.c.l.s4 1966171168
    %v5625 = vunpack.c.0.s8 %v5624
    %v5626 = vlaneseq
    %v5627 = vshrl.u32 %v5626, 7
    %v5628 = vsub.s32 %v5625, %v5627
    %v5629 = vrot.slane %v5607, %v5628
    %v5631 = vunpack.c.l.s4 1966171168
    %v5632 = vunpack.c.0.s8 %v5631
    %v5633 = vlaneseq
    %v5634 = vshrl.u32 %v5633, 7
    %v5635 = vsub.s32 %v5632, %v5634
    %v5636 = vrot.slane %v5608, %v5635
    %v5637 = vcombine.low %v5615, %v5622
    %v5638 = vcombine.high %v5615, %v5622
    %v5639 = vcombine.low %v5629, %v5636
    %v5640 = vcombine.high %v5629, %v5636
    %v5642 = vunpack.c.l.s4 1966171168
    %v5643 = vunpack.c.0.s8 %v5642
    %v5644 = vlaneseq
    %v5645 = vshrl.u32 %v5644, 7
    %v5646 = vsub.s32 %v5643, %v5645
    %v5647 = vrot.slane %v5637, %v5646
    %v5649 = vunpack.c.l.s4 1966171168
    %v5650 = vunpack.c.0.s8 %v5649
    %v5651 = vlaneseq
    %v5652 = vshrl.u32 %v5651, 7
    %v5653 = vsub.s32 %v5650, %v5652
    %v5654 = vrot.slane %v5638, %v5653
    %v5656 = vunpack.c.l.s4 1966171168
    %v5657 = vunpack.c.0.s8 %v5656
    %v5658 = vlaneseq
    %v5659 = vshrl.u32 %v5658, 7
    %v5660 = vsub.s32 %v5657, %v5659
    %v5661 = vrot.slane %v5639, %v5660
    %v5663 = vunpack.c.l.s4 1966171168
    %v5664 = vunpack.c.0.s8 %v5663
    %v5665 = vlaneseq
    %v5666 = vshrl.u32 %v5665, 7
    %v5667 = vsub.s32 %v5664, %v5666
    %v5668 = vrot.slane %v5640, %v5667
    %v5669 = vcombine.low %v5647, %v5661
    %v5670 = vcombine.low %v5654, %v5668
    %v5671 = vcombine.low %v5265, %v5266
    %v5672 = vcombine.low %v5267, %v5268
    %v5673 = vcombine.low %v5269, %v5270
    %v5674 = vcombine.low %v5271, %v5272
    %v5676 = vunpack.c.l.s4 1966171168
    %v5677 = vunpack.c.0.s8 %v5676
    %v5678 = vlaneseq
    %v5679 = vshrl.u32 %v5678, 7
    %v5680 = vsub.s32 %v5677, %v5679
    %v5681 = vrot.slane %v5671, %v5680
    %v5683 = vunpack.c.l.s4 1966171168
    %v5684 = vunpack.c.0.s8 %v5683
    %v5685 = vlaneseq
    %v5686 = vshrl.u32 %v5685, 7
    %v5687 = vsub.s32 %v5684, %v5686
    %v5688 = vrot.slane %v5672, %v5687
    %v5690 = vunpack.c.l.s4 1966171168
    %v5691 = vunpack.c.0.s8 %v5690
    %v5692 = vlaneseq
    %v5693 = vshrl.u32 %v5692, 7
    %v5694 = vsub.s32 %v5691, %v5693
    %v5695 = vrot.slane %v5673, %v5694
    %v5697 = vunpack.c.l.s4 1966171168
    %v5698 = vunpack.c.0.s8 %v5697
    %v5699 = vlaneseq
    %v5700 = vshrl.u32 %v5699, 7
    %v5701 = vsub.s32 %v5698, %v5700
    %v5702 = vrot.slane %v5674, %v5701
    %v5703 = vcombine.low %v5681, %v5688
    %v5704 = vcombine.high %v5681, %v5688
    %v5705 = vcombine.low %v5695, %v5702
    %v5706 = vcombine.high %v5695, %v5702
    %v5708 = vunpack.c.l.s4 1966171168
    %v5709 = vunpack.c.0.s8 %v5708
    %v5710 = vlaneseq
    %v5711 = vshrl.u32 %v5710, 7
    %v5712 = vsub.s32 %v5709, %v5711
    %v5713 = vrot.slane %v5703, %v5712
    %v5715 = vunpack.c.l.s4 1966171168
    %v5716 = vunpack.c.0.s8 %v5715
    %v5717 = vlaneseq
    %v5718 = vshrl.u32 %v5717, 7
    %v5719 = vsub.s32 %v5716, %v5718
    %v5720 = vrot.slane %v5704, %v5719
    %v5722 = vunpack.c.l.s4 1966171168
    %v5723 = vunpack.c.0.s8 %v5722
    %v5724 = vlaneseq
    %v5725 = vshrl.u32 %v5724, 7
    %v5726 = vsub.s32 %v5723, %v5725
    %v5727 = vrot.slane %v5705, %v5726
    %v5729 = vunpack.c.l.s4 1966171168
    %v5730 = vunpack.c.0.s8 %v5729
    %v5731 = vlaneseq
    %v5732 = vshrl.u32 %v5731, 7
    %v5733 = vsub.s32 %v5730, %v5732
    %v5734 = vrot.slane %v5706, %v5733
    %v5735 = vcombine.low %v5713, %v5727
    %v5736 = vcombine.low %v5720, %v5734
    %v5737 = vcombine.low %v5273, %v5274
    %v5738 = vcombine.low %v5275, %v5276
    %v5739 = vcombine.low %v5277, %v5278
    %v5740 = vcombine.low %v5279, %v5280
    %v5742 = vunpack.c.l.s4 1966171168
    %v5743 = vunpack.c.0.s8 %v5742
    %v5744 = vlaneseq
    %v5745 = vshrl.u32 %v5744, 7
    %v5746 = vsub.s32 %v5743, %v5745
    %v5747 = vrot.slane %v5737, %v5746
    %v5749 = vunpack.c.l.s4 1966171168
    %v5750 = vunpack.c.0.s8 %v5749
    %v5751 = vlaneseq
    %v5752 = vshrl.u32 %v5751, 7
    %v5753 = vsub.s32 %v5750, %v5752
    %v5754 = vrot.slane %v5738, %v5753
    %v5756 = vunpack.c.l.s4 1966171168
    %v5757 = vunpack.c.0.s8 %v5756
    %v5758 = vlaneseq
    %v5759 = vshrl.u32 %v5758, 7
    %v5760 = vsub.s32 %v5757, %v5759
    %v5761 = vrot.slane %v5739, %v5760
    %v5763 = vunpack.c.l.s4 1966171168
    %v5764 = vunpack.c.0.s8 %v5763
    %v5765 = vlaneseq
    %v5766 = vshrl.u32 %v5765, 7
    %v5767 = vsub.s32 %v5764, %v5766
    %v5768 = vrot.slane %v5740, %v5767
    %v5769 = vcombine.low %v5747, %v5754
    %v5770 = vcombine.high %v5747, %v5754
    %v5771 = vcombine.low %v5761, %v5768
    %v5772 = vcombine.high %v5761, %v5768
    %v5774 = vunpack.c.l.s4 1966171168
    %v5775 = vunpack.c.0.s8 %v5774
    %v5776 = vlaneseq
    %v5777 = vshrl.u32 %v5776, 7
    %v5778 = vsub.s32 %v5775, %v5777
    %v5779 = vrot.slane %v5769, %v5778
    %v5781 = vunpack.c.l.s4 1966171168
    %v5782 = vunpack.c.0.s8 %v5781
    %v5783 = vlaneseq
    %v5784 = vshrl.u32 %v5783, 7
    %v5785 = vsub.s32 %v5782, %v5784
    %v5786 = vrot.slane %v5770, %v5785
    %v5788 = vunpack.c.l.s4 1966171168
    %v5789 = vunpack.c.0.s8 %v5788
    %v5790 = vlaneseq
    %v5791 = vshrl.u32 %v5790, 7
    %v5792 = vsub.s32 %v5789, %v5791
    %v5793 = vrot.slane %v5771, %v5792
    %v5795 = vunpack.c.l.s4 1966171168
    %v5796 = vunpack.c.0.s8 %v5795
    %v5797 = vlaneseq
    %v5798 = vshrl.u32 %v5797, 7
    %v5799 = vsub.s32 %v5796, %v5798
    %v5800 = vrot.slane %v5772, %v5799
    %v5801 = vcombine.low %v5779, %v5793
    %v5802 = vcombine.low %v5786, %v5800
    %v5803 = vcombine.low %v5281, %v5282
    %v5804 = vcombine.low %v5283, %v5284
    %v5805 = vcombine.low %v5285, %v5286
    %v5806 = vcombine.low %v5287, %v5288
    %v5808 = vunpack.c.l.s4 1966171168
    %v5809 = vunpack.c.0.s8 %v5808
    %v5810 = vlaneseq
    %v5811 = vshrl.u32 %v5810, 7
    %v5812 = vsub.s32 %v5809, %v5811
    %v5813 = vrot.slane %v5803, %v5812
    %v5815 = vunpack.c.l.s4 1966171168
    %v5816 = vunpack.c.0.s8 %v5815
    %v5817 = vlaneseq
    %v5818 = vshrl.u32 %v5817, 7
    %v5819 = vsub.s32 %v5816, %v5818
    %v5820 = vrot.slane %v5804, %v5819
    %v5822 = vunpack.c.l.s4 1966171168
    %v5823 = vunpack.c.0.s8 %v5822
    %v5824 = vlaneseq
    %v5825 = vshrl.u32 %v5824, 7
    %v5826 = vsub.s32 %v5823, %v5825
    %v5827 = vrot.slane %v5805, %v5826
    %v5829 = vunpack.c.l.s4 1966171168
    %v5830 = vunpack.c.0.s8 %v5829
    %v5831 = vlaneseq
    %v5832 = vshrl.u32 %v5831, 7
    %v5833 = vsub.s32 %v5830, %v5832
    %v5834 = vrot.slane %v5806, %v5833
    %v5835 = vcombine.low %v5813, %v5820
    %v5836 = vcombine.high %v5813, %v5820
    %v5837 = vcombine.low %v5827, %v5834
    %v5838 = vcombine.high %v5827, %v5834
    %v5840 = vunpack.c.l.s4 1966171168
    %v5841 = vunpack.c.0.s8 %v5840
    %v5842 = vlaneseq
    %v5843 = vshrl.u32 %v5842, 7
    %v5844 = vsub.s32 %v5841, %v5843
    %v5845 = vrot.slane %v5835, %v5844
    %v5847 = vunpack.c.l.s4 1966171168
    %v5848 = vunpack.c.0.s8 %v5847
    %v5849 = vlaneseq
    %v5850 = vshrl.u32 %v5849, 7
    %v5851 = vsub.s32 %v5848, %v5850
    %v5852 = vrot.slane %v5836, %v5851
    %v5854 = vunpack.c.l.s4 1966171168
    %v5855 = vunpack.c.0.s8 %v5854
    %v5856 = vlaneseq
    %v5857 = vshrl.u32 %v5856, 7
    %v5858 = vsub.s32 %v5855, %v5857
    %v5859 = vrot.slane %v5837, %v5858
    %v5861 = vunpack.c.l.s4 1966171168
    %v5862 = vunpack.c.0.s8 %v5861
    %v5863 = vlaneseq
    %v5864 = vshrl.u32 %v5863, 7
    %v5865 = vsub.s32 %v5862, %v5864
    %v5866 = vrot.slane %v5838, %v5865
    %v5867 = vcombine.low %v5845, %v5859
    %v5868 = vcombine.low %v5852, %v5866
    %v5869 = vcombine.low %v5289, %v5290
    %v5870 = vcombine.low %v5291, %v5292
    %v5871 = vcombine.low %v5293, %v5294
    %v5872 = vcombine.low %v5295, %v5296
    %v5874 = vunpack.c.l.s4 1966171168
    %v5875 = vunpack.c.0.s8 %v5874
    %v5876 = vlaneseq
    %v5877 = vshrl.u32 %v5876, 7
    %v5878 = vsub.s32 %v5875, %v5877
    %v5879 = vrot.slane %v5869, %v5878
    %v5881 = vunpack.c.l.s4 1966171168
    %v5882 = vunpack.c.0.s8 %v5881
    %v5883 = vlaneseq
    %v5884 = vshrl.u32 %v5883, 7
    %v5885 = vsub.s32 %v5882, %v5884
    %v5886 = vrot.slane %v5870, %v5885
    %v5888 = vunpack.c.l.s4 1966171168
    %v5889 = vunpack.c.0.s8 %v5888
    %v5890 = vlaneseq
    %v5891 = vshrl.u32 %v5890, 7
    %v5892 = vsub.s32 %v5889, %v5891
    %v5893 = vrot.slane %v5871, %v5892
    %v5895 = vunpack.c.l.s4 1966171168
    %v5896 = vunpack.c.0.s8 %v5895
    %v5897 = vlaneseq
    %v5898 = vshrl.u32 %v5897, 7
    %v5899 = vsub.s32 %v5896, %v5898
    %v5900 = vrot.slane %v5872, %v5899
    %v5901 = vcombine.low %v5879, %v5886
    %v5902 = vcombine.high %v5879, %v5886
    %v5903 = vcombine.low %v5893, %v5900
    %v5904 = vcombine.high %v5893, %v5900
    %v5906 = vunpack.c.l.s4 1966171168
    %v5907 = vunpack.c.0.s8 %v5906
    %v5908 = vlaneseq
    %v5909 = vshrl.u32 %v5908, 7
    %v5910 = vsub.s32 %v5907, %v5909
    %v5911 = vrot.slane %v5901, %v5910
    %v5913 = vunpack.c.l.s4 1966171168
    %v5914 = vunpack.c.0.s8 %v5913
    %v5915 = vlaneseq
    %v5916 = vshrl.u32 %v5915, 7
    %v5917 = vsub.s32 %v5914, %v5916
    %v5918 = vrot.slane %v5902, %v5917
    %v5920 = vunpack.c.l.s4 1966171168
    %v5921 = vunpack.c.0.s8 %v5920
    %v5922 = vlaneseq
    %v5923 = vshrl.u32 %v5922, 7
    %v5924 = vsub.s32 %v5921, %v5923
    %v5925 = vrot.slane %v5903, %v5924
    %v5927 = vunpack.c.l.s4 1966171168
    %v5928 = vunpack.c.0.s8 %v5927
    %v5929 = vlaneseq
    %v5930 = vshrl.u32 %v5929, 7
    %v5931 = vsub.s32 %v5928, %v5930
    %v5932 = vrot.slane %v5904, %v5931
    %v5933 = vcombine.low %v5911, %v5925
    %v5934 = vcombine.low %v5918, %v5932
    %v5935 = vcombine.low %v5297, %v5298
    %v5936 = vcombine.low %v5299, %v5300
    %v5937 = vcombine.low %v5301, %v5302
    %v5938 = vcombine.low %v5303, %v5304
    %v5940 = vunpack.c.l.s4 1966171168
    %v5941 = vunpack.c.0.s8 %v5940
    %v5942 = vlaneseq
    %v5943 = vshrl.u32 %v5942, 7
    %v5944 = vsub.s32 %v5941, %v5943
    %v5945 = vrot.slane %v5935, %v5944
    %v5947 = vunpack.c.l.s4 1966171168
    %v5948 = vunpack.c.0.s8 %v5947
    %v5949 = vlaneseq
    %v5950 = vshrl.u32 %v5949, 7
    %v5951 = vsub.s32 %v5948, %v5950
    %v5952 = vrot.slane %v5936, %v5951
    %v5954 = vunpack.c.l.s4 1966171168
    %v5955 = vunpack.c.0.s8 %v5954
    %v5956 = vlaneseq
    %v5957 = vshrl.u32 %v5956, 7
    %v5958 = vsub.s32 %v5955, %v5957
    %v5959 = vrot.slane %v5937, %v5958
    %v5961 = vunpack.c.l.s4 1966171168
    %v5962 = vunpack.c.0.s8 %v5961
    %v5963 = vlaneseq
    %v5964 = vshrl.u32 %v5963, 7
    %v5965 = vsub.s32 %v5962, %v5964
    %v5966 = vrot.slane %v5938, %v5965
    %v5967 = vcombine.low %v5945, %v5952
    %v5968 = vcombine.high %v5945, %v5952
    %v5969 = vcombine.low %v5959, %v5966
    %v5970 = vcombine.high %v5959, %v5966
    %v5972 = vunpack.c.l.s4 1966171168
    %v5973 = vunpack.c.0.s8 %v5972
    %v5974 = vlaneseq
    %v5975 = vshrl.u32 %v5974, 7
    %v5976 = vsub.s32 %v5973, %v5975
    %v5977 = vrot.slane %v5967, %v5976
    %v5979 = vunpack.c.l.s4 1966171168
    %v5980 = vunpack.c.0.s8 %v5979
    %v5981 = vlaneseq
    %v5982 = vshrl.u32 %v5981, 7
    %v5983 = vsub.s32 %v5980, %v5982
    %v5984 = vrot.slane %v5968, %v5983
    %v5986 = vunpack.c.l.s4 1966171168
    %v5987 = vunpack.c.0.s8 %v5986
    %v5988 = vlaneseq
    %v5989 = vshrl.u32 %v5988, 7
    %v5990 = vsub.s32 %v5987, %v5989
    %v5991 = vrot.slane %v5969, %v5990
    %v5993 = vunpack.c.l.s4 1966171168
    %v5994 = vunpack.c.0.s8 %v5993
    %v5995 = vlaneseq
    %v5996 = vshrl.u32 %v5995, 7
    %v5997 = vsub.s32 %v5994, %v5996
    %v5998 = vrot.slane %v5970, %v5997
    %v5999 = vcombine.low %v5977, %v5991
    %v6000 = vcombine.low %v5984, %v5998
    %v6001 = vcombine.low %v5305, %v5306
    %v6002 = vcombine.low %v5307, %v5308
    %v6003 = vcombine.low %v5309, %v5310
    %v6004 = vcombine.low %v5311, %v5312
    %v6006 = vunpack.c.l.s4 1966171168
    %v6007 = vunpack.c.0.s8 %v6006
    %v6008 = vlaneseq
    %v6009 = vshrl.u32 %v6008, 7
    %v6010 = vsub.s32 %v6007, %v6009
    %v6011 = vrot.slane %v6001, %v6010
    %v6013 = vunpack.c.l.s4 1966171168
    %v6014 = vunpack.c.0.s8 %v6013
    %v6015 = vlaneseq
    %v6016 = vshrl.u32 %v6015, 7
    %v6017 = vsub.s32 %v6014, %v6016
    %v6018 = vrot.slane %v6002, %v6017
    %v6020 = vunpack.c.l.s4 1966171168
    %v6021 = vunpack.c.0.s8 %v6020
    %v6022 = vlaneseq
    %v6023 = vshrl.u32 %v6022, 7
    %v6024 = vsub.s32 %v6021, %v6023
    %v6025 = vrot.slane %v6003, %v6024
    %v6027 = vunpack.c.l.s4 1966171168
    %v6028 = vunpack.c.0.s8 %v6027
    %v6029 = vlaneseq
    %v6030 = vshrl.u32 %v6029, 7
    %v6031 = vsub.s32 %v6028, %v6030
    %v6032 = vrot.slane %v6004, %v6031
    %v6033 = vcombine.low %v6011, %v6018
    %v6034 = vcombine.high %v6011, %v6018
    %v6035 = vcombine.low %v6025, %v6032
    %v6036 = vcombine.high %v6025, %v6032
    %v6038 = vunpack.c.l.s4 1966171168
    %v6039 = vunpack.c.0.s8 %v6038
    %v6040 = vlaneseq
    %v6041 = vshrl.u32 %v6040, 7
    %v6042 = vsub.s32 %v6039, %v6041
    %v6043 = vrot.slane %v6033, %v6042
    %v6045 = vunpack.c.l.s4 1966171168
    %v6046 = vunpack.c.0.s8 %v6045
    %v6047 = vlaneseq
    %v6048 = vshrl.u32 %v6047, 7
    %v6049 = vsub.s32 %v6046, %v6048
    %v6050 = vrot.slane %v6034, %v6049
    %v6052 = vunpack.c.l.s4 1966171168
    %v6053 = vunpack.c.0.s8 %v6052
    %v6054 = vlaneseq
    %v6055 = vshrl.u32 %v6054, 7
    %v6056 = vsub.s32 %v6053, %v6055
    %v6057 = vrot.slane %v6035, %v6056
    %v6059 = vunpack.c.l.s4 1966171168
    %v6060 = vunpack.c.0.s8 %v6059
    %v6061 = vlaneseq
    %v6062 = vshrl.u32 %v6061, 7
    %v6063 = vsub.s32 %v6060, %v6062
    %v6064 = vrot.slane %v6036, %v6063
    %v6065 = vcombine.low %v6043, %v6057
    %v6066 = vcombine.low %v6050, %v6064
    %v6067 = vcombine.low %v5313, %v5314
    %v6068 = vcombine.low %v5315, %v5316
    %v6069 = vcombine.low %v5317, %v5318
    %v6071 = vunpack.c.l.s4 1966171168
    %v6072 = vunpack.c.0.s8 %v6071
    %v6073 = vlaneseq
    %v6074 = vshrl.u32 %v6073, 7
    %v6075 = vsub.s32 %v6072, %v6074
    %v6076 = vrot.slane %v6067, %v6075
    %v6078 = vunpack.c.l.s4 1966171168
    %v6079 = vunpack.c.0.s8 %v6078
    %v6080 = vlaneseq
    %v6081 = vshrl.u32 %v6080, 7
    %v6082 = vsub.s32 %v6079, %v6081
    %v6083 = vrot.slane %v6068, %v6082
    %v6085 = vunpack.c.l.s4 1966171168
    %v6086 = vunpack.c.0.s8 %v6085
    %v6087 = vlaneseq
    %v6088 = vshrl.u32 %v6087, 7
    %v6089 = vsub.s32 %v6086, %v6088
    %v6090 = vrot.slane %v6069, %v6089
    %v6092 = vunpack.c.l.s4 1966171168
    %v6093 = vunpack.c.0.s8 %v6092
    %v6094 = vlaneseq
    %v6095 = vshrl.u32 %v6094, 7
    %v6096 = vsub.s32 %v6093, %v6095
    %v6097 = vrot.slane %v5319, %v6096
    %v6098 = vcombine.low %v6076, %v6083
    %v6099 = vcombine.high %v6076, %v6083
    %v6100 = vcombine.low %v6090, %v6097
    %v6101 = vcombine.high %v6090, %v6097
    %v6103 = vunpack.c.l.s4 1966171168
    %v6104 = vunpack.c.0.s8 %v6103
    %v6105 = vlaneseq
    %v6106 = vshrl.u32 %v6105, 7
    %v6107 = vsub.s32 %v6104, %v6106
    %v6108 = vrot.slane %v6098, %v6107
    %v6110 = vunpack.c.l.s4 1966171168
    %v6111 = vunpack.c.0.s8 %v6110
    %v6112 = vlaneseq
    %v6113 = vshrl.u32 %v6112, 7
    %v6114 = vsub.s32 %v6111, %v6113
    %v6115 = vrot.slane %v6099, %v6114
    %v6117 = vunpack.c.l.s4 1966171168
    %v6118 = vunpack.c.0.s8 %v6117
    %v6119 = vlaneseq
    %v6120 = vshrl.u32 %v6119, 7
    %v6121 = vsub.s32 %v6118, %v6120
    %v6122 = vrot.slane %v6100, %v6121
    %v6124 = vunpack.c.l.s4 1966171168
    %v6125 = vunpack.c.0.s8 %v6124
    %v6126 = vlaneseq
    %v6127 = vshrl.u32 %v6126, 7
    %v6128 = vsub.s32 %v6125, %v6127
    %v6129 = vrot.slane %v6101, %v6128
    %v6130 = vcombine.low %v6108, %v6122
    %v6131 = vcombine.low %v6115, %v6129
    %v6154 = vsel %vm2267, %v5472, 0.0
    %v6155 = vadd.f32 %v5471, %v6154
    %6156 = vadd.xlane.f32.xlu0 %v6155
    %v6157 = vpop.xlane.xlu0 %6156
    %v6158 = vsel %vm2267, %v5538, 0.0
    %v6159 = vadd.f32 %v5537, %v6158
    %6160 = vadd.xlane.f32.xlu0 %v6159
    %v6161 = vpop.xlane.xlu0 %6160
    %v6162 = vsel %vm2267, %v5604, 0.0
    %v6163 = vadd.f32 %v5603, %v6162
    %6164 = vadd.xlane.f32.xlu0 %v6163
    %v6165 = vpop.xlane.xlu0 %6164
    %v6166 = vsel %vm2267, %v5670, 0.0
    %v6167 = vadd.f32 %v5669, %v6166
    %6168 = vadd.xlane.f32.xlu0 %v6167
    %v6169 = vpop.xlane.xlu0 %6168
    %v6170 = vsel %vm2267, %v5736, 0.0
    %v6171 = vadd.f32 %v5735, %v6170
    %6172 = vadd.xlane.f32.xlu0 %v6171
    %v6173 = vpop.xlane.xlu0 %6172
    %v6174 = vsel %vm2267, %v5802, 0.0
    %v6175 = vadd.f32 %v5801, %v6174
    %6176 = vadd.xlane.f32.xlu0 %v6175
    %v6177 = vpop.xlane.xlu0 %6176
    %v6178 = vsel %vm2267, %v5868, 0.0
    %v6179 = vadd.f32 %v5867, %v6178
    %6180 = vadd.xlane.f32.xlu0 %v6179
    %v6181 = vpop.xlane.xlu0 %6180
    %v6182 = vsel %vm2267, %v5934, 0.0
    %v6183 = vadd.f32 %v5933, %v6182
    %6184 = vadd.xlane.f32.xlu0 %v6183
    %v6185 = vpop.xlane.xlu0 %6184
    %v6186 = vsel %vm2267, %v6000, 0.0
    %v6187 = vadd.f32 %v5999, %v6186
    %6188 = vadd.xlane.f32.xlu0 %v6187
    %v6189 = vpop.xlane.xlu0 %6188
    %v6190 = vsel %vm2267, %v6066, 0.0
    %v6191 = vadd.f32 %v6065, %v6190
    %6192 = vadd.xlane.f32.xlu0 %v6191
    %v6193 = vpop.xlane.xlu0 %6192
    %v6194 = vsel %vm2308, %v6130, 0.0
    %v6195 = vsel %vm2310, %v6131, 0.0
    %v6196 = vadd.f32 %v6194, %v6195
    %6197 = vadd.xlane.f32.xlu0 %v6196
    %v6198 = vpop.xlane.xlu0 %6197
    %vm6199 = vcmask 23568
    %6200 = vst.msk [vmem:[%s2] sm:$0xff] %vm6199, %v6157
    %6201 = vst.msk [vmem:[%s2 + $0x8] sm:$0xff] %vm6199, %v6161
    %6202 = vst.msk [vmem:[%s2 + $0x10] sm:$0xff] %vm6199, %v6165
    %6203 = vst.msk [vmem:[%s2 + $0x18] sm:$0xff] %vm6199, %v6169
    %6204 = vst.msk [vmem:[%s2 + $0x20] sm:$0xff] %vm6199, %v6173
    %6205 = vst.msk [vmem:[%s2 + $0x28] sm:$0xff] %vm6199, %v6177
    %6206 = vst.msk [vmem:[%s2 + $0x30] sm:$0xff] %vm6199, %v6181
    %6207 = vst.msk [vmem:[%s2 + $0x38] sm:$0xff] %vm6199, %v6185
    %6208 = vst.msk [vmem:[%s2 + $0x40] sm:$0xff] %vm6199, %v6189
    %6209 = vst.msk [vmem:[%s2 + $0x48] sm:$0xff] %vm6199, %v6193
    %vm6210 = vcmask 22544
    %6211 = vst.msk [vmem:[%s2 + $0x50] sm:$0x7f] %vm6210, %v6198
    // Predicated region
    $region14: #{model_forward.1} parent=1 // pred_check
      _
    $region15: #{model_forward.1} parent=1 // pred_check_branch
      %6213 = sbr.rel (0) target = $region17
    $region16: #{model_forward.1} parent=1 // pred_region
      _
    $region17: #{model_forward.1} parent=1 // pred_fallthru
      _
    // Predicated region
    $region18: #{model_forward.1} parent=1 // pred_check
      _
    $region19: #{model_forward.1} parent=1 // pred_check_branch
      %6215 = sbr.rel (0) target = $region21
    $region20: #{model_forward.1} parent=1 // pred_region
      _
    $region21: #{model_forward.1} parent=1 // pred_fallthru
      _
    %6216 = vsyncpa [#allocation3], 1

</llo_original>
